<compile_context>
chip_gen: v7x
topology: tpu7x:2x2x1
jax: 0.10.0
libtpu: 0.0.40
codegen_flags: <defaults>
</compile_context>

<pallas_src>
import jax
import jax.numpy as jnp
from jax.experimental import pallas as pl
from jax.experimental.pallas import tpu as pltpu

# ----------------------------- model config ---------------------------------
HIDDEN = 32
NUM_HEADS = 4
HEAD_DIM = HIDDEN // NUM_HEADS          # 8
NUM_LAYERS = 2
NUM_SEGMENTS = 8                        # encoder sequence length
PRED_HORIZON = 8                        # decoder output length
FFN_DIM = 4 * HIDDEN                    # 128
TRAJ_FEAT = 4                           # per-step input feature dim
POS_DIM = 2                             # (x, y)
NUM_INTENT = 3                          # candidate intent points
OUT_DIM = 2                             # predicted (x, y) per future step
OUT_PAD = 128                           # lane-dense padded head width
IN_PAD = 128                            # lane-dense padded input width
SLAB_W = 128                            # packed weight slab lane width
BATCH = 2
LN_EPS = 1e-5

ROWS = BATCH * NUM_SEGMENTS             # folded-batch row count (== BATCH*PRED_HORIZON)
assert BATCH * NUM_SEGMENTS == BATCH * PRED_HORIZON, "shared attn masks need T == P"
PACKED = NUM_HEADS * ROWS               # head-packed key/score width
INTENT_ROWS = 8                         # BATCH*NUM_INTENT (=6) padded to a sublane multiple


# ------------------------------ fused kernel ---------------------------------
def _intentformer_kernel(traj_ref, intent_ref, w_ref, out_ref, offs):
    """Whole forward pass; `offs` is a static name -> (row_off, rows, cols) table."""

    def w(name):
        off, r, c = offs[name]
        return w_ref[off:off + r, 0:c]          # static, sublane-aligned ref slice

    def mm(a, b):                               # bf16 operands, f32 accumulation
        return jnp.dot(a.astype(jnp.bfloat16), b.astype(jnp.bfloat16),
                       preferred_element_type=jnp.float32)

    def mm_nt(a, b):                            # a @ b.T (contract last dims)
        return jax.lax.dot_general(
            a.astype(jnp.bfloat16), b.astype(jnp.bfloat16),
            (((1,), (1,)), ((), ())), preferred_element_type=jnp.float32)

    def layer_norm(x, gb):                      # gb rows: [gamma; beta]
        g, beta = gb[0:1, :], gb[1:2, :]
        mu = jnp.mean(x, axis=-1, keepdims=True)
        var = jnp.mean(jnp.square(x - mu), axis=-1, keepdims=True)
        return (x - mu) * jax.lax.rsqrt(var + LN_EPS) * g + beta

    # hoisted attention constants (shared by all 6 attention calls)
    head_mask = w("head_mask")                  # (PACKED, HIDDEN) 0/1 head selector
    batch_bias = w("batch_bias")                # (ROWS, PACKED)   0 / -1e9 cross-batch
    pool = w("pool").astype(jnp.bfloat16)       # (PACKED, PACKED) block-diag ones
    scale = 1.0 / (HEAD_DIM ** 0.5)

    def attention(q, k, v, wo, bo):
        # head-packed block-diagonal K/V: block h rows carry head h features only.
        kb = jnp.concatenate([k] * NUM_HEADS, axis=0) * head_mask     # (PACKED, H)
        vb = jnp.concatenate([v] * NUM_HEADS, axis=0) * head_mask     # (PACKED, H)
        s = mm_nt(q, kb) * scale + batch_bias                          # (ROWS, PACKED)
        m = jnp.max(s, axis=-1, keepdims=True)
        p = jnp.exp(s - m)
        # per-head-block softmax denominator broadcast back via block-pool matmul
        denom = jnp.dot(p.astype(jnp.bfloat16), pool,
                        preferred_element_type=jnp.float32)
        p = p * pl.reciprocal(jnp.maximum(denom, 1e-30), approx=True)
        o = mm(p, vb)                                                  # head-concat (ROWS, H)
        return mm(o, wo) + bo

    def self_attention(x, pre):
        qkv = mm(x, w(pre + "wqkv")) + w(pre + "bqkv")                 # fused QKV (ROWS, 3H)
        return attention(qkv[:, 0:HIDDEN], qkv[:, HIDDEN:2 * HIDDEN],
                         qkv[:, 2 * HIDDEN:3 * HIDDEN],
                         w(pre + "wo"), w(pre + "bo"))

    def cross_attention(xq, mem, pre):
        q = mm(xq, w(pre + "cwq")) + w(pre + "cbq")
        kv = mm(mem, w(pre + "cwkv")) + w(pre + "cbkv")                # fused KV (ROWS, 2H)
        return attention(q, kv[:, 0:HIDDEN], kv[:, HIDDEN:2 * HIDDEN],
                         w(pre + "cwo"), w(pre + "cbo"))

    def ffn(x, pre):
        h = jnp.maximum(mm(x, w(pre + "w1")) + w(pre + "b1"), 0.0)
        return mm(h, w(pre + "w2")) + w(pre + "b2")

    # ------------------------------ encoder ---------------------------------
    # traj input is lane-padded to 128 and embed weight row-padded to 128, so
    # embedding is a single un-sliced matmul; bias + pos-emb pre-combined in "peb".
    x = mm(traj_ref[...], w("ew")) + w("peb")                          # (ROWS, H)
    for l in range(NUM_LAYERS):
        pre = f"e{l}_"
        x = layer_norm(x + self_attention(x, pre), w(pre + "ln1"))
        x = layer_norm(x + ffn(x, pre), w(pre + "ln2"))
    memory = x

    # ------------------------------ decoder ---------------------------------
    ie = mm(intent_ref[...], w("iw"))                                  # (INTENT_ROWS, H)
    ctx = mm(w("mix"), ie)                                             # per-batch mean -> P rows
    q = w("qeb") + ctx                                                 # queries + intent bias + ctx
    for l in range(NUM_LAYERS):
        q = layer_norm(q + self_attention(q, f"d{l}_s"), w(f"d{l}_ln1"))
        q = layer_norm(q + cross_attention(q, memory, f"d{l}_"), w(f"d{l}_ln2"))
        q = layer_norm(q + ffn(q, f"d{l}_"), w(f"d{l}_ln3"))

    # lane-dense (ROWS, 128) head output; real (x, y) live in lanes [0:2].
    out_ref[...] = (mm(q, w("hw")) + w("hb")).astype(out_ref.dtype)


# --------------------- single packed weight-slab builder ---------------------
def _prepare_packed_params(params):
    """Pack every weight/bias/LN/mask into ONE (rows, 128) f32 slab.

    Returns (slab, offsets) where offsets[name] = (row_offset, rows, cols) are
    static Python ints (row offsets are multiples of 8 -> sublane aligned)."""
    enc, dec = params["encoder"], params["decoder"]
    entries = []

    def add(name, arr):
        a = jnp.asarray(arr, jnp.float32)
        if a.ndim == 1:
            a = a[None, :]
        entries.append((name, a))

    # --- encoder ---
    ew = jnp.zeros((IN_PAD, HIDDEN), jnp.float32)
    ew = ew.at[:TRAJ_FEAT + POS_DIM].set(enc["embed_w"])
    add("ew", ew)                                                           # (128, 32)
    add("peb", jnp.tile(enc["pos_emb"], (BATCH, 1)) + enc["embed_b"][None, :])
    for l, L in enumerate(enc["layers"]):
        A = L["attn"]
        add(f"e{l}_wqkv", jnp.concatenate([A["wq"], A["wk"], A["wv"]], axis=1))
        add(f"e{l}_bqkv", jnp.concatenate([A["bq"], A["bk"], A["bv"]]))
        add(f"e{l}_wo", A["wo"])
        add(f"e{l}_bo", A["bo"])
        add(f"e{l}_ln1", jnp.stack([L["ln1_g"], L["ln1_b"]]))
        add(f"e{l}_ln2", jnp.stack([L["ln2_g"], L["ln2_b"]]))
        add(f"e{l}_w1", L["ffn_w1"])
        add(f"e{l}_b1", L["ffn_b1"])
        add(f"e{l}_w2", L["ffn_w2"])
        add(f"e{l}_b2", L["ffn_b2"])
    # --- decoder ---
    iw = jnp.zeros((IN_PAD, HIDDEN), jnp.float32).at[:POS_DIM].set(dec["intent_w"])
    add("iw", iw)                                                           # (128, 32)
    add("qeb", jnp.tile(dec["query_emb"], (BATCH, 1)) + dec["intent_b"][None, :])
    mix = jnp.zeros((ROWS, INTENT_ROWS), jnp.float32)
    for b in range(BATCH):
        mix = mix.at[b * PRED_HORIZON:(b + 1) * PRED_HORIZON,
                     b * NUM_INTENT:(b + 1) * NUM_INTENT].set(1.0 / NUM_INTENT)
    add("mix", mix)                                                         # per-batch mean matrix
    for l, L in enumerate(dec["layers"]):
        S, C = L["self_attn"], L["cross_attn"]
        add(f"d{l}_swqkv", jnp.concatenate([S["wq"], S["wk"], S["wv"]], axis=1))
        add(f"d{l}_sbqkv", jnp.concatenate([S["bq"], S["bk"], S["bv"]]))
        add(f"d{l}_swo", S["wo"])
        add(f"d{l}_sbo", S["bo"])
        add(f"d{l}_cwq", C["wq"])
        add(f"d{l}_cbq", C["bq"])
        add(f"d{l}_cwkv", jnp.concatenate([C["wk"], C["wv"]], axis=1))
        add(f"d{l}_cbkv", jnp.concatenate([C["bk"], C["bv"]]))
        add(f"d{l}_cwo", C["wo"])
        add(f"d{l}_cbo", C["bo"])
        add(f"d{l}_ln1", jnp.stack([L["ln1_g"], L["ln1_b"]]))
        add(f"d{l}_ln2", jnp.stack([L["ln2_g"], L["ln2_b"]]))
        add(f"d{l}_ln3", jnp.stack([L["ln3_g"], L["ln3_b"]]))
        add(f"d{l}_w1", L["ffn_w1"])
        add(f"d{l}_b1", L["ffn_b1"])
        add(f"d{l}_w2", L["ffn_w2"])
        add(f"d{l}_b2", L["ffn_b2"])
    # lane-dense zero-padded regression head
    add("hw", jnp.pad(dec["head_w"], ((0, 0), (0, OUT_PAD - OUT_DIM))))
    add("hb", jnp.pad(dec["head_b"], (0, OUT_PAD - OUT_DIM)))
    # --- attention constants: head-block selector, cross-batch bias, block-pool ---
    rh = jnp.arange(PACKED) // ROWS                       # head id of packed K/V row
    ch = jnp.arange(HIDDEN) // HEAD_DIM                   # head id of feature lane
    add("head_mask", (rh[:, None] == ch[None, :]).astype(jnp.float32))
    qb = jnp.arange(ROWS) // NUM_SEGMENTS                 # batch id of query row
    kb = (jnp.arange(PACKED) % ROWS) // NUM_SEGMENTS      # batch id of packed key col
    add("batch_bias",
        jnp.where(qb[:, None] == kb[None, :], 0.0, -1e9).astype(jnp.float32))
    add("pool", (rh[:, None] == rh[None, :]).astype(jnp.float32))

    offsets, blocks, cur = {}, [], 0
    for name, a in entries:
        r, c = a.shape
        rp = ((r + 7) // 8) * 8                           # keep row offsets 8-aligned
        blocks.append(jnp.pad(a, ((0, rp - r), (0, SLAB_W - c))))
        offsets[name] = (cur, r, c)
        cur += rp
    return jnp.concatenate(blocks, axis=0), offsets


# ------------------------------ forward (wrapper) ----------------------------
def intentformer_forward(params, inp, pos_history, intent_points):
    B, T, _ = inp.shape
    slab, offs = _prepare_packed_params(params)

    # batch folded into the row dimension; inputs lane-padded to 128 for dense DMAs
    traj = jnp.concatenate([inp, pos_history], axis=-1).reshape(B * T, TRAJ_FEAT + POS_DIM)
    traj = jnp.pad(traj.astype(jnp.float32),
                   ((0, 0), (0, IN_PAD - (TRAJ_FEAT + POS_DIM))))
    ipts = intent_points.reshape(B * NUM_INTENT, POS_DIM).astype(jnp.float32)
    ipts = jnp.pad(ipts, ((0, INTENT_ROWS - B * NUM_INTENT), (0, IN_PAD - POS_DIM)))

    def kernel(traj_ref, intent_ref, w_ref, out_ref):
        _intentformer_kernel(traj_ref, intent_ref, w_ref, out_ref, offs)

    out = pl.pallas_call(
        kernel,
        out_shape=jax.ShapeDtypeStruct((B * PRED_HORIZON, OUT_PAD), jnp.float32),
        in_specs=[pl.BlockSpec(memory_space=pltpu.MemorySpace.VMEM)] * 3,
        out_specs=pl.BlockSpec(memory_space=pltpu.MemorySpace.VMEM),
    )(traj, ipts, slab)

    return out.reshape(B, PRED_HORIZON, OUT_PAD)[..., :OUT_DIM]


# ------------------------------ parameters ----------------------------------
def init_params(key):
    kiter = iter(jax.random.split(key, 512))

    def nk():
        return next(kiter)

    def dense(fan_in, fan_out):
        w = jax.random.normal(nk(), (fan_in, fan_out), jnp.float32) * (fan_in ** -0.5)
        b = jnp.zeros((fan_out,), jnp.float32)
        return w, b

    def attn_params():
        p = {}
        for name in ("q", "k", "v", "o"):
            w, b = dense(HIDDEN, HIDDEN)
            p["w" + name], p["b" + name] = w, b
        return p

    def ln_params():
        return jnp.ones((HIDDEN,), jnp.float32), jnp.zeros((HIDDEN,), jnp.float32)

    def ffn_params():
        w1, b1 = dense(HIDDEN, FFN_DIM)
        w2, b2 = dense(FFN_DIM, HIDDEN)
        return dict(ffn_w1=w1, ffn_b1=b1, ffn_w2=w2, ffn_b2=b2)

    # encoder
    embed_w, embed_b = dense(TRAJ_FEAT + POS_DIM, HIDDEN)
    enc_layers = []
    for _ in range(NUM_LAYERS):
        g1, b1 = ln_params()
        g2, b2 = ln_params()
        enc_layers.append(dict(attn=attn_params(), ln1_g=g1, ln1_b=b1,
                               ln2_g=g2, ln2_b=b2, **ffn_params()))
    encoder = dict(
        embed_w=embed_w, embed_b=embed_b,
        pos_emb=jax.random.normal(nk(), (NUM_SEGMENTS, HIDDEN), jnp.float32) * 0.02,
        layers=enc_layers)

    # decoder
    intent_w, intent_b = dense(POS_DIM, HIDDEN)
    dec_layers = []
    for _ in range(NUM_LAYERS):
        g1, b1 = ln_params()
        g2, b2 = ln_params()
        g3, b3 = ln_params()
        dec_layers.append(dict(self_attn=attn_params(), cross_attn=attn_params(),
                               ln1_g=g1, ln1_b=b1, ln2_g=g2, ln2_b=b2,
                               ln3_g=g3, ln3_b=b3, **ffn_params()))
    head_w, head_b = dense(HIDDEN, OUT_DIM)
    decoder = dict(
        intent_w=intent_w, intent_b=intent_b,
        query_emb=jax.random.normal(nk(), (PRED_HORIZON, HIDDEN), jnp.float32) * 0.02,
        layers=dec_layers, head_w=head_w, head_b=head_b)

    return dict(encoder=encoder, decoder=decoder)


# --------------------------------- main --------------------------------------
if __name__ == "__main__":
    root = jax.random.PRNGKey(0)
    k_par, k_in, k_pos, k_int = jax.random.split(root, 4)

    params = init_params(k_par)

    inp = jax.random.normal(k_in, (BATCH, NUM_SEGMENTS, TRAJ_FEAT), jnp.float32)
    pos_history = jax.random.normal(k_pos, (BATCH, NUM_SEGMENTS, POS_DIM), jnp.float32)
    intent_points = jax.random.normal(k_int, (BATCH, NUM_INTENT, POS_DIM), jnp.float32)

    fwd = jax.jit(intentformer_forward)
    out = fwd(params, inp, pos_history, intent_points)
    out = jax.block_until_ready(out)

    assert out.shape == (BATCH, PRED_HORIZON, OUT_DIM), out.shape
    assert bool(jnp.all(jnp.isfinite(out)))
    print("KERNEL_OK")
</pallas_src>

<mosaic_0001>
module attributes {stable_mosaic.version = 11 : i64} {
  func.func @kernel(%arg0: memref<16x128xf32, #tpu.memory_space<vmem>>, %arg1: memref<8x128xf32, #tpu.memory_space<vmem>>, %arg2: memref<1832x128xf32, #tpu.memory_space<vmem>>, %arg3: memref<16x128xf32, #tpu.memory_space<vmem>>) attributes {dimension_semantics = [], scalar_prefetch = 0 : i64, scratch_operands = 0 : i64, tpu.core_type = #tpu.core_type<tc>} {
    %c1688 = arith.constant 1688 : index
    %c0 = arith.constant 0 : index
    %0 = vector.load %arg2[%c1688, %c0] : memref<1832x128xf32, #tpu.memory_space<vmem>>, vector<64x32xf32>
    %c1752 = arith.constant 1752 : index
    %c0_0 = arith.constant 0 : index
    %1 = vector.load %arg2[%c1752, %c0_0] : memref<1832x128xf32, #tpu.memory_space<vmem>>, vector<16x64xf32>
    %c1768 = arith.constant 1768 : index
    %c0_1 = arith.constant 0 : index
    %2 = vector.load %arg2[%c1768, %c0_1] : memref<1832x128xf32, #tpu.memory_space<vmem>>, vector<64x64xf32>
    %3 = arith.truncf %2 : vector<64x64xf32> to vector<64x64xbf16>
    %c0_2 = arith.constant 0 : index
    %c0_3 = arith.constant 0 : index
    %4 = vector.load %arg0[%c0_2, %c0_3] : memref<16x128xf32, #tpu.memory_space<vmem>>, vector<16x128xf32>
    %c0_4 = arith.constant 0 : index
    %c0_5 = arith.constant 0 : index
    %5 = vector.load %arg2[%c0_4, %c0_5] : memref<1832x128xf32, #tpu.memory_space<vmem>>, vector<128x32xf32>
    %6 = arith.truncf %4 : vector<16x128xf32> to vector<16x128xbf16>
    %7 = arith.truncf %5 : vector<128x32xf32> to vector<128x32xbf16>
    %cst = arith.constant dense<0.000000e+00> : vector<16x32xf32>
    %8 = tpu.matmul %6, %7, %cst {dimension_numbers = #tpu.dot_dimension_numbers<[1], [0], [0], [1], [0, 0, 1, 1], [], []>} : vector<16x128xbf16>, vector<128x32xbf16>, vector<16x32xf32> -> vector<16x32xf32>
    %c128 = arith.constant 128 : index
    %c0_6 = arith.constant 0 : index
    %9 = vector.load %arg2[%c128, %c0_6] : memref<1832x128xf32, #tpu.memory_space<vmem>>, vector<16x32xf32>
    %10 = arith.addf %8, %9 : vector<16x32xf32>
    %c144 = arith.constant 144 : index
    %c0_7 = arith.constant 0 : index
    %11 = vector.load %arg2[%c144, %c0_7] : memref<1832x128xf32, #tpu.memory_space<vmem>>, vector<32x96xf32>
    %12 = arith.truncf %10 : vector<16x32xf32> to vector<16x32xbf16>
    %13 = arith.truncf %11 : vector<32x96xf32> to vector<32x96xbf16>
    %cst_8 = arith.constant dense<0.000000e+00> : vector<16x96xf32>
    %14 = tpu.matmul %12, %13, %cst_8 {dimension_numbers = #tpu.dot_dimension_numbers<[1], [0], [0], [1], [0, 0, 1, 1], [], []>} : vector<16x32xbf16>, vector<32x96xbf16>, vector<16x96xf32> -> vector<16x96xf32>
    %c176 = arith.constant 176 : index
    %c0_9 = arith.constant 0 : index
    %15 = vector.load %arg2[%c176, %c0_9] : memref<1832x128xf32, #tpu.memory_space<vmem>>, vector<1x96xf32>
    %16 = vector.broadcast %15 : vector<1x96xf32> to vector<16x96xf32>
    %17 = arith.addf %14, %16 : vector<16x96xf32>
    %18 = vector.extract_strided_slice %17 {offsets = [0, 0], sizes = [16, 32], strides = [1, 1]} : vector<16x96xf32> to vector<16x32xf32>
    %19 = vector.extract_strided_slice %17 {offsets = [0, 32], sizes = [16, 32], strides = [1, 1]} : vector<16x96xf32> to vector<16x32xf32>
    %20 = vector.extract_strided_slice %17 {offsets = [0, 64], sizes = [16, 32], strides = [1, 1]} : vector<16x96xf32> to vector<16x32xf32>
    %c184 = arith.constant 184 : index
    %c0_10 = arith.constant 0 : index
    %21 = vector.load %arg2[%c184, %c0_10] : memref<1832x128xf32, #tpu.memory_space<vmem>>, vector<32x32xf32>
    %c216 = arith.constant 216 : index
    %c0_11 = arith.constant 0 : index
    %22 = vector.load %arg2[%c216, %c0_11] : memref<1832x128xf32, #tpu.memory_space<vmem>>, vector<1x32xf32>
    %23 = tpu.concatenate %19, %19, %19, %19 in 0 : vector<16x32xf32>, vector<16x32xf32>, vector<16x32xf32>, vector<16x32xf32> -> vector<64x32xf32>
    %24 = arith.mulf %23, %0 : vector<64x32xf32>
    %25 = tpu.concatenate %20, %20, %20, %20 in 0 : vector<16x32xf32>, vector<16x32xf32>, vector<16x32xf32>, vector<16x32xf32> -> vector<64x32xf32>
    %26 = arith.mulf %25, %0 : vector<64x32xf32>
    %27 = arith.truncf %18 : vector<16x32xf32> to vector<16x32xbf16>
    %28 = arith.truncf %24 : vector<64x32xf32> to vector<64x32xbf16>
    %cst_12 = arith.constant dense<0.000000e+00> : vector<16x64xf32>
    %29 = tpu.matmul %27, %28, %cst_12 {dimension_numbers = #tpu.dot_dimension_numbers<[1], [1], [0], [0], [0, 0, 1, 0], [], []>} : vector<16x32xbf16>, vector<64x32xbf16>, vector<16x64xf32> -> vector<16x64xf32>
    %cst_13 = arith.constant 0.353553385 : f32
    %30 = vector.broadcast %cst_13 : f32 to vector<16x64xf32>
    %31 = arith.mulf %29, %30 : vector<16x64xf32>
    %32 = arith.addf %31, %1 : vector<16x64xf32>
    %cst_14 = arith.constant dense<0xFF800000> : vector<16xf32>
    %33 = vector.multi_reduction <maximumf>, %32, %cst_14 [1] : vector<16x64xf32> to vector<16xf32>
    %34 = vector.shape_cast %33 : vector<16xf32> to vector<16x1xf32>
    %35 = vector.broadcast %34 : vector<16x1xf32> to vector<16x64xf32>
    %36 = arith.subf %32, %35 : vector<16x64xf32>
    %37 = math.exp %36 : vector<16x64xf32>
    %38 = arith.truncf %37 : vector<16x64xf32> to vector<16x64xbf16>
    %cst_15 = arith.constant dense<0.000000e+00> : vector<16x64xf32>
    %39 = tpu.matmul %38, %3, %cst_15 {dimension_numbers = #tpu.dot_dimension_numbers<[1], [0], [0], [1], [0, 0, 1, 1], [], []>} : vector<16x64xbf16>, vector<64x64xbf16>, vector<16x64xf32> -> vector<16x64xf32>
    %cst_16 = arith.constant 1.000000e-30 : f32
    %40 = vector.broadcast %cst_16 : f32 to vector<16x64xf32>
    %41 = arith.maximumf %39, %40 : vector<16x64xf32>
    %42 = tpu.reciprocal %41 {approx = true} : vector<16x64xf32> -> vector<16x64xf32>
    %43 = arith.mulf %37, %42 : vector<16x64xf32>
    %44 = arith.truncf %43 : vector<16x64xf32> to vector<16x64xbf16>
    %45 = arith.truncf %26 : vector<64x32xf32> to vector<64x32xbf16>
    %cst_17 = arith.constant dense<0.000000e+00> : vector<16x32xf32>
    %46 = tpu.matmul %44, %45, %cst_17 {dimension_numbers = #tpu.dot_dimension_numbers<[1], [0], [0], [1], [0, 0, 1, 1], [], []>} : vector<16x64xbf16>, vector<64x32xbf16>, vector<16x32xf32> -> vector<16x32xf32>
    %47 = arith.truncf %46 : vector<16x32xf32> to vector<16x32xbf16>
    %48 = arith.truncf %21 : vector<32x32xf32> to vector<32x32xbf16>
    %cst_18 = arith.constant dense<0.000000e+00> : vector<16x32xf32>
    %49 = tpu.matmul %47, %48, %cst_18 {dimension_numbers = #tpu.dot_dimension_numbers<[1], [0], [0], [1], [0, 0, 1, 1], [], []>} : vector<16x32xbf16>, vector<32x32xbf16>, vector<16x32xf32> -> vector<16x32xf32>
    %50 = vector.broadcast %22 : vector<1x32xf32> to vector<16x32xf32>
    %51 = arith.addf %49, %50 : vector<16x32xf32>
    %52 = arith.addf %10, %51 : vector<16x32xf32>
    %c224 = arith.constant 224 : index
    %c0_19 = arith.constant 0 : index
    %53 = vector.load %arg2[%c224, %c0_19] : memref<1832x128xf32, #tpu.memory_space<vmem>>, vector<2x32xf32>
    %54 = vector.extract_strided_slice %53 {offsets = [0, 0], sizes = [1, 32], strides = [1, 1]} : vector<2x32xf32> to vector<1x32xf32>
    %55 = vector.extract_strided_slice %53 {offsets = [1, 0], sizes = [1, 32], strides = [1, 1]} : vector<2x32xf32> to vector<1x32xf32>
    %cst_20 = arith.constant dense<0.000000e+00> : vector<16xf32>
    %56 = vector.multi_reduction <add>, %52, %cst_20 [1] : vector<16x32xf32> to vector<16xf32>
    %57 = vector.shape_cast %56 : vector<16xf32> to vector<16x1xf32>
    %cst_21 = arith.constant 3.200000e+01 : f32
    %58 = vector.broadcast %cst_21 : f32 to vector<16x1xf32>
    %59 = arith.divf %57, %58 : vector<16x1xf32>
    %60 = vector.broadcast %59 : vector<16x1xf32> to vector<16x32xf32>
    %61 = arith.subf %52, %60 : vector<16x32xf32>
    %62 = arith.mulf %61, %61 : vector<16x32xf32>
    %cst_22 = arith.constant dense<0.000000e+00> : vector<16xf32>
    %63 = vector.multi_reduction <add>, %62, %cst_22 [1] : vector<16x32xf32> to vector<16xf32>
    %64 = vector.shape_cast %63 : vector<16xf32> to vector<16x1xf32>
    %cst_23 = arith.constant 3.200000e+01 : f32
    %65 = vector.broadcast %cst_23 : f32 to vector<16x1xf32>
    %66 = arith.divf %64, %65 : vector<16x1xf32>
    %67 = vector.broadcast %59 : vector<16x1xf32> to vector<16x32xf32>
    %68 = arith.subf %52, %67 : vector<16x32xf32>
    %cst_24 = arith.constant 9.99999974E-6 : f32
    %69 = vector.broadcast %cst_24 : f32 to vector<16x1xf32>
    %70 = arith.addf %66, %69 : vector<16x1xf32>
    %71 = math.rsqrt %70 : vector<16x1xf32>
    %72 = vector.broadcast %71 : vector<16x1xf32> to vector<16x32xf32>
    %73 = arith.mulf %68, %72 : vector<16x32xf32>
    %74 = vector.broadcast %54 : vector<1x32xf32> to vector<16x32xf32>
    %75 = arith.mulf %73, %74 : vector<16x32xf32>
    %76 = vector.broadcast %55 : vector<1x32xf32> to vector<16x32xf32>
    %77 = arith.addf %75, %76 : vector<16x32xf32>
    %c240 = arith.constant 240 : index
    %c0_25 = arith.constant 0 : index
    %78 = vector.load %arg2[%c240, %c0_25] : memref<1832x128xf32, #tpu.memory_space<vmem>>, vector<32x128xf32>
    %79 = arith.truncf %77 : vector<16x32xf32> to vector<16x32xbf16>
    %80 = arith.truncf %78 : vector<32x128xf32> to vector<32x128xbf16>
    %cst_26 = arith.constant dense<0.000000e+00> : vector<16x128xf32>
    %81 = tpu.matmul %79, %80, %cst_26 {dimension_numbers = #tpu.dot_dimension_numbers<[1], [0], [0], [1], [0, 0, 1, 1], [], []>} : vector<16x32xbf16>, vector<32x128xbf16>, vector<16x128xf32> -> vector<16x128xf32>
    %c272 = arith.constant 272 : index
    %c0_27 = arith.constant 0 : index
    %82 = vector.load %arg2[%c272, %c0_27] : memref<1832x128xf32, #tpu.memory_space<vmem>>, vector<1x128xf32>
    %83 = vector.broadcast %82 : vector<1x128xf32> to vector<16x128xf32>
    %84 = arith.addf %81, %83 : vector<16x128xf32>
    %cst_28 = arith.constant 0.000000e+00 : f32
    %85 = vector.broadcast %cst_28 : f32 to vector<16x128xf32>
    %86 = arith.maximumf %84, %85 : vector<16x128xf32>
    %c280 = arith.constant 280 : index
    %c0_29 = arith.constant 0 : index
    %87 = vector.load %arg2[%c280, %c0_29] : memref<1832x128xf32, #tpu.memory_space<vmem>>, vector<128x32xf32>
    %88 = arith.truncf %86 : vector<16x128xf32> to vector<16x128xbf16>
    %89 = arith.truncf %87 : vector<128x32xf32> to vector<128x32xbf16>
    %cst_30 = arith.constant dense<0.000000e+00> : vector<16x32xf32>
    %90 = tpu.matmul %88, %89, %cst_30 {dimension_numbers = #tpu.dot_dimension_numbers<[1], [0], [0], [1], [0, 0, 1, 1], [], []>} : vector<16x128xbf16>, vector<128x32xbf16>, vector<16x32xf32> -> vector<16x32xf32>
    %c408 = arith.constant 408 : index
    %c0_31 = arith.constant 0 : index
    %91 = vector.load %arg2[%c408, %c0_31] : memref<1832x128xf32, #tpu.memory_space<vmem>>, vector<1x32xf32>
    %92 = vector.broadcast %91 : vector<1x32xf32> to vector<16x32xf32>
    %93 = arith.addf %90, %92 : vector<16x32xf32>
    %94 = arith.addf %77, %93 : vector<16x32xf32>
    %c232 = arith.constant 232 : index
    %c0_32 = arith.constant 0 : index
    %95 = vector.load %arg2[%c232, %c0_32] : memref<1832x128xf32, #tpu.memory_space<vmem>>, vector<2x32xf32>
    %96 = vector.extract_strided_slice %95 {offsets = [0, 0], sizes = [1, 32], strides = [1, 1]} : vector<2x32xf32> to vector<1x32xf32>
    %97 = vector.extract_strided_slice %95 {offsets = [1, 0], sizes = [1, 32], strides = [1, 1]} : vector<2x32xf32> to vector<1x32xf32>
    %cst_33 = arith.constant dense<0.000000e+00> : vector<16xf32>
    %98 = vector.multi_reduction <add>, %94, %cst_33 [1] : vector<16x32xf32> to vector<16xf32>
    %99 = vector.shape_cast %98 : vector<16xf32> to vector<16x1xf32>
    %cst_34 = arith.constant 3.200000e+01 : f32
    %100 = vector.broadcast %cst_34 : f32 to vector<16x1xf32>
    %101 = arith.divf %99, %100 : vector<16x1xf32>
    %102 = vector.broadcast %101 : vector<16x1xf32> to vector<16x32xf32>
    %103 = arith.subf %94, %102 : vector<16x32xf32>
    %104 = arith.mulf %103, %103 : vector<16x32xf32>
    %cst_35 = arith.constant dense<0.000000e+00> : vector<16xf32>
    %105 = vector.multi_reduction <add>, %104, %cst_35 [1] : vector<16x32xf32> to vector<16xf32>
    %106 = vector.shape_cast %105 : vector<16xf32> to vector<16x1xf32>
    %cst_36 = arith.constant 3.200000e+01 : f32
    %107 = vector.broadcast %cst_36 : f32 to vector<16x1xf32>
    %108 = arith.divf %106, %107 : vector<16x1xf32>
    %109 = vector.broadcast %101 : vector<16x1xf32> to vector<16x32xf32>
    %110 = arith.subf %94, %109 : vector<16x32xf32>
    %cst_37 = arith.constant 9.99999974E-6 : f32
    %111 = vector.broadcast %cst_37 : f32 to vector<16x1xf32>
    %112 = arith.addf %108, %111 : vector<16x1xf32>
    %113 = math.rsqrt %112 : vector<16x1xf32>
    %114 = vector.broadcast %113 : vector<16x1xf32> to vector<16x32xf32>
    %115 = arith.mulf %110, %114 : vector<16x32xf32>
    %116 = vector.broadcast %96 : vector<1x32xf32> to vector<16x32xf32>
    %117 = arith.mulf %115, %116 : vector<16x32xf32>
    %118 = vector.broadcast %97 : vector<1x32xf32> to vector<16x32xf32>
    %119 = arith.addf %117, %118 : vector<16x32xf32>
    %c416 = arith.constant 416 : index
    %c0_38 = arith.constant 0 : index
    %120 = vector.load %arg2[%c416, %c0_38] : memref<1832x128xf32, #tpu.memory_space<vmem>>, vector<32x96xf32>
    %121 = arith.truncf %119 : vector<16x32xf32> to vector<16x32xbf16>
    %122 = arith.truncf %120 : vector<32x96xf32> to vector<32x96xbf16>
    %cst_39 = arith.constant dense<0.000000e+00> : vector<16x96xf32>
    %123 = tpu.matmul %121, %122, %cst_39 {dimension_numbers = #tpu.dot_dimension_numbers<[1], [0], [0], [1], [0, 0, 1, 1], [], []>} : vector<16x32xbf16>, vector<32x96xbf16>, vector<16x96xf32> -> vector<16x96xf32>
    %c448 = arith.constant 448 : index
    %c0_40 = arith.constant 0 : index
    %124 = vector.load %arg2[%c448, %c0_40] : memref<1832x128xf32, #tpu.memory_space<vmem>>, vector<1x96xf32>
    %125 = vector.broadcast %124 : vector<1x96xf32> to vector<16x96xf32>
    %126 = arith.addf %123, %125 : vector<16x96xf32>
    %127 = vector.extract_strided_slice %126 {offsets = [0, 0], sizes = [16, 32], strides = [1, 1]} : vector<16x96xf32> to vector<16x32xf32>
    %128 = vector.extract_strided_slice %126 {offsets = [0, 32], sizes = [16, 32], strides = [1, 1]} : vector<16x96xf32> to vector<16x32xf32>
    %129 = vector.extract_strided_slice %126 {offsets = [0, 64], sizes = [16, 32], strides = [1, 1]} : vector<16x96xf32> to vector<16x32xf32>
    %c456 = arith.constant 456 : index
    %c0_41 = arith.constant 0 : index
    %130 = vector.load %arg2[%c456, %c0_41] : memref<1832x128xf32, #tpu.memory_space<vmem>>, vector<32x32xf32>
    %c488 = arith.constant 488 : index
    %c0_42 = arith.constant 0 : index
    %131 = vector.load %arg2[%c488, %c0_42] : memref<1832x128xf32, #tpu.memory_space<vmem>>, vector<1x32xf32>
    %132 = tpu.concatenate %128, %128, %128, %128 in 0 : vector<16x32xf32>, vector<16x32xf32>, vector<16x32xf32>, vector<16x32xf32> -> vector<64x32xf32>
    %133 = arith.mulf %132, %0 : vector<64x32xf32>
    %134 = tpu.concatenate %129, %129, %129, %129 in 0 : vector<16x32xf32>, vector<16x32xf32>, vector<16x32xf32>, vector<16x32xf32> -> vector<64x32xf32>
    %135 = arith.mulf %134, %0 : vector<64x32xf32>
    %136 = arith.truncf %127 : vector<16x32xf32> to vector<16x32xbf16>
    %137 = arith.truncf %133 : vector<64x32xf32> to vector<64x32xbf16>
    %cst_43 = arith.constant dense<0.000000e+00> : vector<16x64xf32>
    %138 = tpu.matmul %136, %137, %cst_43 {dimension_numbers = #tpu.dot_dimension_numbers<[1], [1], [0], [0], [0, 0, 1, 0], [], []>} : vector<16x32xbf16>, vector<64x32xbf16>, vector<16x64xf32> -> vector<16x64xf32>
    %cst_44 = arith.constant 0.353553385 : f32
    %139 = vector.broadcast %cst_44 : f32 to vector<16x64xf32>
    %140 = arith.mulf %138, %139 : vector<16x64xf32>
    %141 = arith.addf %140, %1 : vector<16x64xf32>
    %cst_45 = arith.constant dense<0xFF800000> : vector<16xf32>
    %142 = vector.multi_reduction <maximumf>, %141, %cst_45 [1] : vector<16x64xf32> to vector<16xf32>
    %143 = vector.shape_cast %142 : vector<16xf32> to vector<16x1xf32>
    %144 = vector.broadcast %143 : vector<16x1xf32> to vector<16x64xf32>
    %145 = arith.subf %141, %144 : vector<16x64xf32>
    %146 = math.exp %145 : vector<16x64xf32>
    %147 = arith.truncf %146 : vector<16x64xf32> to vector<16x64xbf16>
    %cst_46 = arith.constant dense<0.000000e+00> : vector<16x64xf32>
    %148 = tpu.matmul %147, %3, %cst_46 {dimension_numbers = #tpu.dot_dimension_numbers<[1], [0], [0], [1], [0, 0, 1, 1], [], []>} : vector<16x64xbf16>, vector<64x64xbf16>, vector<16x64xf32> -> vector<16x64xf32>
    %cst_47 = arith.constant 1.000000e-30 : f32
    %149 = vector.broadcast %cst_47 : f32 to vector<16x64xf32>
    %150 = arith.maximumf %148, %149 : vector<16x64xf32>
    %151 = tpu.reciprocal %150 {approx = true} : vector<16x64xf32> -> vector<16x64xf32>
    %152 = arith.mulf %146, %151 : vector<16x64xf32>
    %153 = arith.truncf %152 : vector<16x64xf32> to vector<16x64xbf16>
    %154 = arith.truncf %135 : vector<64x32xf32> to vector<64x32xbf16>
    %cst_48 = arith.constant dense<0.000000e+00> : vector<16x32xf32>
    %155 = tpu.matmul %153, %154, %cst_48 {dimension_numbers = #tpu.dot_dimension_numbers<[1], [0], [0], [1], [0, 0, 1, 1], [], []>} : vector<16x64xbf16>, vector<64x32xbf16>, vector<16x32xf32> -> vector<16x32xf32>
    %156 = arith.truncf %155 : vector<16x32xf32> to vector<16x32xbf16>
    %157 = arith.truncf %130 : vector<32x32xf32> to vector<32x32xbf16>
    %cst_49 = arith.constant dense<0.000000e+00> : vector<16x32xf32>
    %158 = tpu.matmul %156, %157, %cst_49 {dimension_numbers = #tpu.dot_dimension_numbers<[1], [0], [0], [1], [0, 0, 1, 1], [], []>} : vector<16x32xbf16>, vector<32x32xbf16>, vector<16x32xf32> -> vector<16x32xf32>
    %159 = vector.broadcast %131 : vector<1x32xf32> to vector<16x32xf32>
    %160 = arith.addf %158, %159 : vector<16x32xf32>
    %161 = arith.addf %119, %160 : vector<16x32xf32>
    %c496 = arith.constant 496 : index
    %c0_50 = arith.constant 0 : index
    %162 = vector.load %arg2[%c496, %c0_50] : memref<1832x128xf32, #tpu.memory_space<vmem>>, vector<2x32xf32>
    %163 = vector.extract_strided_slice %162 {offsets = [0, 0], sizes = [1, 32], strides = [1, 1]} : vector<2x32xf32> to vector<1x32xf32>
    %164 = vector.extract_strided_slice %162 {offsets = [1, 0], sizes = [1, 32], strides = [1, 1]} : vector<2x32xf32> to vector<1x32xf32>
    %cst_51 = arith.constant dense<0.000000e+00> : vector<16xf32>
    %165 = vector.multi_reduction <add>, %161, %cst_51 [1] : vector<16x32xf32> to vector<16xf32>
    %166 = vector.shape_cast %165 : vector<16xf32> to vector<16x1xf32>
    %cst_52 = arith.constant 3.200000e+01 : f32
    %167 = vector.broadcast %cst_52 : f32 to vector<16x1xf32>
    %168 = arith.divf %166, %167 : vector<16x1xf32>
    %169 = vector.broadcast %168 : vector<16x1xf32> to vector<16x32xf32>
    %170 = arith.subf %161, %169 : vector<16x32xf32>
    %171 = arith.mulf %170, %170 : vector<16x32xf32>
    %cst_53 = arith.constant dense<0.000000e+00> : vector<16xf32>
    %172 = vector.multi_reduction <add>, %171, %cst_53 [1] : vector<16x32xf32> to vector<16xf32>
    %173 = vector.shape_cast %172 : vector<16xf32> to vector<16x1xf32>
    %cst_54 = arith.constant 3.200000e+01 : f32
    %174 = vector.broadcast %cst_54 : f32 to vector<16x1xf32>
    %175 = arith.divf %173, %174 : vector<16x1xf32>
    %176 = vector.broadcast %168 : vector<16x1xf32> to vector<16x32xf32>
    %177 = arith.subf %161, %176 : vector<16x32xf32>
    %cst_55 = arith.constant 9.99999974E-6 : f32
    %178 = vector.broadcast %cst_55 : f32 to vector<16x1xf32>
    %179 = arith.addf %175, %178 : vector<16x1xf32>
    %180 = math.rsqrt %179 : vector<16x1xf32>
    %181 = vector.broadcast %180 : vector<16x1xf32> to vector<16x32xf32>
    %182 = arith.mulf %177, %181 : vector<16x32xf32>
    %183 = vector.broadcast %163 : vector<1x32xf32> to vector<16x32xf32>
    %184 = arith.mulf %182, %183 : vector<16x32xf32>
    %185 = vector.broadcast %164 : vector<1x32xf32> to vector<16x32xf32>
    %186 = arith.addf %184, %185 : vector<16x32xf32>
    %c512 = arith.constant 512 : index
    %c0_56 = arith.constant 0 : index
    %187 = vector.load %arg2[%c512, %c0_56] : memref<1832x128xf32, #tpu.memory_space<vmem>>, vector<32x128xf32>
    %188 = arith.truncf %186 : vector<16x32xf32> to vector<16x32xbf16>
    %189 = arith.truncf %187 : vector<32x128xf32> to vector<32x128xbf16>
    %cst_57 = arith.constant dense<0.000000e+00> : vector<16x128xf32>
    %190 = tpu.matmul %188, %189, %cst_57 {dimension_numbers = #tpu.dot_dimension_numbers<[1], [0], [0], [1], [0, 0, 1, 1], [], []>} : vector<16x32xbf16>, vector<32x128xbf16>, vector<16x128xf32> -> vector<16x128xf32>
    %c544 = arith.constant 544 : index
    %c0_58 = arith.constant 0 : index
    %191 = vector.load %arg2[%c544, %c0_58] : memref<1832x128xf32, #tpu.memory_space<vmem>>, vector<1x128xf32>
    %192 = vector.broadcast %191 : vector<1x128xf32> to vector<16x128xf32>
    %193 = arith.addf %190, %192 : vector<16x128xf32>
    %cst_59 = arith.constant 0.000000e+00 : f32
    %194 = vector.broadcast %cst_59 : f32 to vector<16x128xf32>
    %195 = arith.maximumf %193, %194 : vector<16x128xf32>
    %c552 = arith.constant 552 : index
    %c0_60 = arith.constant 0 : index
    %196 = vector.load %arg2[%c552, %c0_60] : memref<1832x128xf32, #tpu.memory_space<vmem>>, vector<128x32xf32>
    %197 = arith.truncf %195 : vector<16x128xf32> to vector<16x128xbf16>
    %198 = arith.truncf %196 : vector<128x32xf32> to vector<128x32xbf16>
    %cst_61 = arith.constant dense<0.000000e+00> : vector<16x32xf32>
    %199 = tpu.matmul %197, %198, %cst_61 {dimension_numbers = #tpu.dot_dimension_numbers<[1], [0], [0], [1], [0, 0, 1, 1], [], []>} : vector<16x128xbf16>, vector<128x32xbf16>, vector<16x32xf32> -> vector<16x32xf32>
    %c680 = arith.constant 680 : index
    %c0_62 = arith.constant 0 : index
    %200 = vector.load %arg2[%c680, %c0_62] : memref<1832x128xf32, #tpu.memory_space<vmem>>, vector<1x32xf32>
    %201 = vector.broadcast %200 : vector<1x32xf32> to vector<16x32xf32>
    %202 = arith.addf %199, %201 : vector<16x32xf32>
    %203 = arith.addf %186, %202 : vector<16x32xf32>
    %c504 = arith.constant 504 : index
    %c0_63 = arith.constant 0 : index
    %204 = vector.load %arg2[%c504, %c0_63] : memref<1832x128xf32, #tpu.memory_space<vmem>>, vector<2x32xf32>
    %205 = vector.extract_strided_slice %204 {offsets = [0, 0], sizes = [1, 32], strides = [1, 1]} : vector<2x32xf32> to vector<1x32xf32>
    %206 = vector.extract_strided_slice %204 {offsets = [1, 0], sizes = [1, 32], strides = [1, 1]} : vector<2x32xf32> to vector<1x32xf32>
    %cst_64 = arith.constant dense<0.000000e+00> : vector<16xf32>
    %207 = vector.multi_reduction <add>, %203, %cst_64 [1] : vector<16x32xf32> to vector<16xf32>
    %208 = vector.shape_cast %207 : vector<16xf32> to vector<16x1xf32>
    %cst_65 = arith.constant 3.200000e+01 : f32
    %209 = vector.broadcast %cst_65 : f32 to vector<16x1xf32>
    %210 = arith.divf %208, %209 : vector<16x1xf32>
    %211 = vector.broadcast %210 : vector<16x1xf32> to vector<16x32xf32>
    %212 = arith.subf %203, %211 : vector<16x32xf32>
    %213 = arith.mulf %212, %212 : vector<16x32xf32>
    %cst_66 = arith.constant dense<0.000000e+00> : vector<16xf32>
    %214 = vector.multi_reduction <add>, %213, %cst_66 [1] : vector<16x32xf32> to vector<16xf32>
    %215 = vector.shape_cast %214 : vector<16xf32> to vector<16x1xf32>
    %cst_67 = arith.constant 3.200000e+01 : f32
    %216 = vector.broadcast %cst_67 : f32 to vector<16x1xf32>
    %217 = arith.divf %215, %216 : vector<16x1xf32>
    %218 = vector.broadcast %210 : vector<16x1xf32> to vector<16x32xf32>
    %219 = arith.subf %203, %218 : vector<16x32xf32>
    %cst_68 = arith.constant 9.99999974E-6 : f32
    %220 = vector.broadcast %cst_68 : f32 to vector<16x1xf32>
    %221 = arith.addf %217, %220 : vector<16x1xf32>
    %222 = math.rsqrt %221 : vector<16x1xf32>
    %223 = vector.broadcast %222 : vector<16x1xf32> to vector<16x32xf32>
    %224 = arith.mulf %219, %223 : vector<16x32xf32>
    %225 = vector.broadcast %205 : vector<1x32xf32> to vector<16x32xf32>
    %226 = arith.mulf %224, %225 : vector<16x32xf32>
    %227 = vector.broadcast %206 : vector<1x32xf32> to vector<16x32xf32>
    %228 = arith.addf %226, %227 : vector<16x32xf32>
    %c0_69 = arith.constant 0 : index
    %c0_70 = arith.constant 0 : index
    %229 = vector.load %arg1[%c0_69, %c0_70] : memref<8x128xf32, #tpu.memory_space<vmem>>, vector<8x128xf32>
    %c688 = arith.constant 688 : index
    %c0_71 = arith.constant 0 : index
    %230 = vector.load %arg2[%c688, %c0_71] : memref<1832x128xf32, #tpu.memory_space<vmem>>, vector<128x32xf32>
    %231 = arith.truncf %229 : vector<8x128xf32> to vector<8x128xbf16>
    %232 = arith.truncf %230 : vector<128x32xf32> to vector<128x32xbf16>
    %cst_72 = arith.constant dense<0.000000e+00> : vector<8x32xf32>
    %233 = tpu.matmul %231, %232, %cst_72 {dimension_numbers = #tpu.dot_dimension_numbers<[1], [0], [0], [1], [0, 0, 1, 1], [], []>} : vector<8x128xbf16>, vector<128x32xbf16>, vector<8x32xf32> -> vector<8x32xf32>
    %c832 = arith.constant 832 : index
    %c0_73 = arith.constant 0 : index
    %234 = vector.load %arg2[%c832, %c0_73] : memref<1832x128xf32, #tpu.memory_space<vmem>>, vector<16x8xf32>
    %235 = arith.truncf %234 : vector<16x8xf32> to vector<16x8xbf16>
    %236 = arith.truncf %233 : vector<8x32xf32> to vector<8x32xbf16>
    %cst_74 = arith.constant dense<0.000000e+00> : vector<16x32xf32>
    %237 = tpu.matmul %235, %236, %cst_74 {dimension_numbers = #tpu.dot_dimension_numbers<[1], [0], [0], [1], [0, 0, 1, 1], [], []>} : vector<16x8xbf16>, vector<8x32xbf16>, vector<16x32xf32> -> vector<16x32xf32>
    %c816 = arith.constant 816 : index
    %c0_75 = arith.constant 0 : index
    %238 = vector.load %arg2[%c816, %c0_75] : memref<1832x128xf32, #tpu.memory_space<vmem>>, vector<16x32xf32>
    %239 = arith.addf %238, %237 : vector<16x32xf32>
    %c848 = arith.constant 848 : index
    %c0_76 = arith.constant 0 : index
    %240 = vector.load %arg2[%c848, %c0_76] : memref<1832x128xf32, #tpu.memory_space<vmem>>, vector<32x96xf32>
    %241 = arith.truncf %239 : vector<16x32xf32> to vector<16x32xbf16>
    %242 = arith.truncf %240 : vector<32x96xf32> to vector<32x96xbf16>
    %cst_77 = arith.constant dense<0.000000e+00> : vector<16x96xf32>
    %243 = tpu.matmul %241, %242, %cst_77 {dimension_numbers = #tpu.dot_dimension_numbers<[1], [0], [0], [1], [0, 0, 1, 1], [], []>} : vector<16x32xbf16>, vector<32x96xbf16>, vector<16x96xf32> -> vector<16x96xf32>
    %c880 = arith.constant 880 : index
    %c0_78 = arith.constant 0 : index
    %244 = vector.load %arg2[%c880, %c0_78] : memref<1832x128xf32, #tpu.memory_space<vmem>>, vector<1x96xf32>
    %245 = vector.broadcast %244 : vector<1x96xf32> to vector<16x96xf32>
    %246 = arith.addf %243, %245 : vector<16x96xf32>
    %247 = vector.extract_strided_slice %246 {offsets = [0, 0], sizes = [16, 32], strides = [1, 1]} : vector<16x96xf32> to vector<16x32xf32>
    %248 = vector.extract_strided_slice %246 {offsets = [0, 32], sizes = [16, 32], strides = [1, 1]} : vector<16x96xf32> to vector<16x32xf32>
    %249 = vector.extract_strided_slice %246 {offsets = [0, 64], sizes = [16, 32], strides = [1, 1]} : vector<16x96xf32> to vector<16x32xf32>
    %c888 = arith.constant 888 : index
    %c0_79 = arith.constant 0 : index
    %250 = vector.load %arg2[%c888, %c0_79] : memref<1832x128xf32, #tpu.memory_space<vmem>>, vector<32x32xf32>
    %c920 = arith.constant 920 : index
    %c0_80 = arith.constant 0 : index
    %251 = vector.load %arg2[%c920, %c0_80] : memref<1832x128xf32, #tpu.memory_space<vmem>>, vector<1x32xf32>
    %252 = tpu.concatenate %248, %248, %248, %248 in 0 : vector<16x32xf32>, vector<16x32xf32>, vector<16x32xf32>, vector<16x32xf32> -> vector<64x32xf32>
    %253 = arith.mulf %252, %0 : vector<64x32xf32>
    %254 = tpu.concatenate %249, %249, %249, %249 in 0 : vector<16x32xf32>, vector<16x32xf32>, vector<16x32xf32>, vector<16x32xf32> -> vector<64x32xf32>
    %255 = arith.mulf %254, %0 : vector<64x32xf32>
    %256 = arith.truncf %247 : vector<16x32xf32> to vector<16x32xbf16>
    %257 = arith.truncf %253 : vector<64x32xf32> to vector<64x32xbf16>
    %cst_81 = arith.constant dense<0.000000e+00> : vector<16x64xf32>
    %258 = tpu.matmul %256, %257, %cst_81 {dimension_numbers = #tpu.dot_dimension_numbers<[1], [1], [0], [0], [0, 0, 1, 0], [], []>} : vector<16x32xbf16>, vector<64x32xbf16>, vector<16x64xf32> -> vector<16x64xf32>
    %cst_82 = arith.constant 0.353553385 : f32
    %259 = vector.broadcast %cst_82 : f32 to vector<16x64xf32>
    %260 = arith.mulf %258, %259 : vector<16x64xf32>
    %261 = arith.addf %260, %1 : vector<16x64xf32>
    %cst_83 = arith.constant dense<0xFF800000> : vector<16xf32>
    %262 = vector.multi_reduction <maximumf>, %261, %cst_83 [1] : vector<16x64xf32> to vector<16xf32>
    %263 = vector.shape_cast %262 : vector<16xf32> to vector<16x1xf32>
    %264 = vector.broadcast %263 : vector<16x1xf32> to vector<16x64xf32>
    %265 = arith.subf %261, %264 : vector<16x64xf32>
    %266 = math.exp %265 : vector<16x64xf32>
    %267 = arith.truncf %266 : vector<16x64xf32> to vector<16x64xbf16>
    %cst_84 = arith.constant dense<0.000000e+00> : vector<16x64xf32>
    %268 = tpu.matmul %267, %3, %cst_84 {dimension_numbers = #tpu.dot_dimension_numbers<[1], [0], [0], [1], [0, 0, 1, 1], [], []>} : vector<16x64xbf16>, vector<64x64xbf16>, vector<16x64xf32> -> vector<16x64xf32>
    %cst_85 = arith.constant 1.000000e-30 : f32
    %269 = vector.broadcast %cst_85 : f32 to vector<16x64xf32>
    %270 = arith.maximumf %268, %269 : vector<16x64xf32>
    %271 = tpu.reciprocal %270 {approx = true} : vector<16x64xf32> -> vector<16x64xf32>
    %272 = arith.mulf %266, %271 : vector<16x64xf32>
    %273 = arith.truncf %272 : vector<16x64xf32> to vector<16x64xbf16>
    %274 = arith.truncf %255 : vector<64x32xf32> to vector<64x32xbf16>
    %cst_86 = arith.constant dense<0.000000e+00> : vector<16x32xf32>
    %275 = tpu.matmul %273, %274, %cst_86 {dimension_numbers = #tpu.dot_dimension_numbers<[1], [0], [0], [1], [0, 0, 1, 1], [], []>} : vector<16x64xbf16>, vector<64x32xbf16>, vector<16x32xf32> -> vector<16x32xf32>
    %276 = arith.truncf %275 : vector<16x32xf32> to vector<16x32xbf16>
    %277 = arith.truncf %250 : vector<32x32xf32> to vector<32x32xbf16>
    %cst_87 = arith.constant dense<0.000000e+00> : vector<16x32xf32>
    %278 = tpu.matmul %276, %277, %cst_87 {dimension_numbers = #tpu.dot_dimension_numbers<[1], [0], [0], [1], [0, 0, 1, 1], [], []>} : vector<16x32xbf16>, vector<32x32xbf16>, vector<16x32xf32> -> vector<16x32xf32>
    %279 = vector.broadcast %251 : vector<1x32xf32> to vector<16x32xf32>
    %280 = arith.addf %278, %279 : vector<16x32xf32>
    %281 = arith.addf %239, %280 : vector<16x32xf32>
    %c1048 = arith.constant 1048 : index
    %c0_88 = arith.constant 0 : index
    %282 = vector.load %arg2[%c1048, %c0_88] : memref<1832x128xf32, #tpu.memory_space<vmem>>, vector<2x32xf32>
    %283 = vector.extract_strided_slice %282 {offsets = [0, 0], sizes = [1, 32], strides = [1, 1]} : vector<2x32xf32> to vector<1x32xf32>
    %284 = vector.extract_strided_slice %282 {offsets = [1, 0], sizes = [1, 32], strides = [1, 1]} : vector<2x32xf32> to vector<1x32xf32>
    %cst_89 = arith.constant dense<0.000000e+00> : vector<16xf32>
    %285 = vector.multi_reduction <add>, %281, %cst_89 [1] : vector<16x32xf32> to vector<16xf32>
    %286 = vector.shape_cast %285 : vector<16xf32> to vector<16x1xf32>
    %cst_90 = arith.constant 3.200000e+01 : f32
    %287 = vector.broadcast %cst_90 : f32 to vector<16x1xf32>
    %288 = arith.divf %286, %287 : vector<16x1xf32>
    %289 = vector.broadcast %288 : vector<16x1xf32> to vector<16x32xf32>
    %290 = arith.subf %281, %289 : vector<16x32xf32>
    %291 = arith.mulf %290, %290 : vector<16x32xf32>
    %cst_91 = arith.constant dense<0.000000e+00> : vector<16xf32>
    %292 = vector.multi_reduction <add>, %291, %cst_91 [1] : vector<16x32xf32> to vector<16xf32>
    %293 = vector.shape_cast %292 : vector<16xf32> to vector<16x1xf32>
    %cst_92 = arith.constant 3.200000e+01 : f32
    %294 = vector.broadcast %cst_92 : f32 to vector<16x1xf32>
    %295 = arith.divf %293, %294 : vector<16x1xf32>
    %296 = vector.broadcast %288 : vector<16x1xf32> to vector<16x32xf32>
    %297 = arith.subf %281, %296 : vector<16x32xf32>
    %cst_93 = arith.constant 9.99999974E-6 : f32
    %298 = vector.broadcast %cst_93 : f32 to vector<16x1xf32>
    %299 = arith.addf %295, %298 : vector<16x1xf32>
    %300 = math.rsqrt %299 : vector<16x1xf32>
    %301 = vector.broadcast %300 : vector<16x1xf32> to vector<16x32xf32>
    %302 = arith.mulf %297, %301 : vector<16x32xf32>
    %303 = vector.broadcast %283 : vector<1x32xf32> to vector<16x32xf32>
    %304 = arith.mulf %302, %303 : vector<16x32xf32>
    %305 = vector.broadcast %284 : vector<1x32xf32> to vector<16x32xf32>
    %306 = arith.addf %304, %305 : vector<16x32xf32>
    %c928 = arith.constant 928 : index
    %c0_94 = arith.constant 0 : index
    %307 = vector.load %arg2[%c928, %c0_94] : memref<1832x128xf32, #tpu.memory_space<vmem>>, vector<32x32xf32>
    %308 = arith.truncf %306 : vector<16x32xf32> to vector<16x32xbf16>
    %309 = arith.truncf %307 : vector<32x32xf32> to vector<32x32xbf16>
    %cst_95 = arith.constant dense<0.000000e+00> : vector<16x32xf32>
    %310 = tpu.matmul %308, %309, %cst_95 {dimension_numbers = #tpu.dot_dimension_numbers<[1], [0], [0], [1], [0, 0, 1, 1], [], []>} : vector<16x32xbf16>, vector<32x32xbf16>, vector<16x32xf32> -> vector<16x32xf32>
    %c960 = arith.constant 960 : index
    %c0_96 = arith.constant 0 : index
    %311 = vector.load %arg2[%c960, %c0_96] : memref<1832x128xf32, #tpu.memory_space<vmem>>, vector<1x32xf32>
    %312 = vector.broadcast %311 : vector<1x32xf32> to vector<16x32xf32>
    %313 = arith.addf %310, %312 : vector<16x32xf32>
    %c968 = arith.constant 968 : index
    %c0_97 = arith.constant 0 : index
    %314 = vector.load %arg2[%c968, %c0_97] : memref<1832x128xf32, #tpu.memory_space<vmem>>, vector<32x64xf32>
    %315 = arith.truncf %228 : vector<16x32xf32> to vector<16x32xbf16>
    %316 = arith.truncf %314 : vector<32x64xf32> to vector<32x64xbf16>
    %cst_98 = arith.constant dense<0.000000e+00> : vector<16x64xf32>
    %317 = tpu.matmul %315, %316, %cst_98 {dimension_numbers = #tpu.dot_dimension_numbers<[1], [0], [0], [1], [0, 0, 1, 1], [], []>} : vector<16x32xbf16>, vector<32x64xbf16>, vector<16x64xf32> -> vector<16x64xf32>
    %c1000 = arith.constant 1000 : index
    %c0_99 = arith.constant 0 : index
    %318 = vector.load %arg2[%c1000, %c0_99] : memref<1832x128xf32, #tpu.memory_space<vmem>>, vector<1x64xf32>
    %319 = vector.broadcast %318 : vector<1x64xf32> to vector<16x64xf32>
    %320 = arith.addf %317, %319 : vector<16x64xf32>
    %321 = vector.extract_strided_slice %320 {offsets = [0, 0], sizes = [16, 32], strides = [1, 1]} : vector<16x64xf32> to vector<16x32xf32>
    %322 = vector.extract_strided_slice %320 {offsets = [0, 32], sizes = [16, 32], strides = [1, 1]} : vector<16x64xf32> to vector<16x32xf32>
    %c1008 = arith.constant 1008 : index
    %c0_100 = arith.constant 0 : index
    %323 = vector.load %arg2[%c1008, %c0_100] : memref<1832x128xf32, #tpu.memory_space<vmem>>, vector<32x32xf32>
    %c1040 = arith.constant 1040 : index
    %c0_101 = arith.constant 0 : index
    %324 = vector.load %arg2[%c1040, %c0_101] : memref<1832x128xf32, #tpu.memory_space<vmem>>, vector<1x32xf32>
    %325 = tpu.concatenate %321, %321, %321, %321 in 0 : vector<16x32xf32>, vector<16x32xf32>, vector<16x32xf32>, vector<16x32xf32> -> vector<64x32xf32>
    %326 = arith.mulf %325, %0 : vector<64x32xf32>
    %327 = tpu.concatenate %322, %322, %322, %322 in 0 : vector<16x32xf32>, vector<16x32xf32>, vector<16x32xf32>, vector<16x32xf32> -> vector<64x32xf32>
    %328 = arith.mulf %327, %0 : vector<64x32xf32>
    %329 = arith.truncf %313 : vector<16x32xf32> to vector<16x32xbf16>
    %330 = arith.truncf %326 : vector<64x32xf32> to vector<64x32xbf16>
    %cst_102 = arith.constant dense<0.000000e+00> : vector<16x64xf32>
    %331 = tpu.matmul %329, %330, %cst_102 {dimension_numbers = #tpu.dot_dimension_numbers<[1], [1], [0], [0], [0, 0, 1, 0], [], []>} : vector<16x32xbf16>, vector<64x32xbf16>, vector<16x64xf32> -> vector<16x64xf32>
    %cst_103 = arith.constant 0.353553385 : f32
    %332 = vector.broadcast %cst_103 : f32 to vector<16x64xf32>
    %333 = arith.mulf %331, %332 : vector<16x64xf32>
    %334 = arith.addf %333, %1 : vector<16x64xf32>
    %cst_104 = arith.constant dense<0xFF800000> : vector<16xf32>
    %335 = vector.multi_reduction <maximumf>, %334, %cst_104 [1] : vector<16x64xf32> to vector<16xf32>
    %336 = vector.shape_cast %335 : vector<16xf32> to vector<16x1xf32>
    %337 = vector.broadcast %336 : vector<16x1xf32> to vector<16x64xf32>
    %338 = arith.subf %334, %337 : vector<16x64xf32>
    %339 = math.exp %338 : vector<16x64xf32>
    %340 = arith.truncf %339 : vector<16x64xf32> to vector<16x64xbf16>
    %cst_105 = arith.constant dense<0.000000e+00> : vector<16x64xf32>
    %341 = tpu.matmul %340, %3, %cst_105 {dimension_numbers = #tpu.dot_dimension_numbers<[1], [0], [0], [1], [0, 0, 1, 1], [], []>} : vector<16x64xbf16>, vector<64x64xbf16>, vector<16x64xf32> -> vector<16x64xf32>
    %cst_106 = arith.constant 1.000000e-30 : f32
    %342 = vector.broadcast %cst_106 : f32 to vector<16x64xf32>
    %343 = arith.maximumf %341, %342 : vector<16x64xf32>
    %344 = tpu.reciprocal %343 {approx = true} : vector<16x64xf32> -> vector<16x64xf32>
    %345 = arith.mulf %339, %344 : vector<16x64xf32>
    %346 = arith.truncf %345 : vector<16x64xf32> to vector<16x64xbf16>
    %347 = arith.truncf %328 : vector<64x32xf32> to vector<64x32xbf16>
    %cst_107 = arith.constant dense<0.000000e+00> : vector<16x32xf32>
    %348 = tpu.matmul %346, %347, %cst_107 {dimension_numbers = #tpu.dot_dimension_numbers<[1], [0], [0], [1], [0, 0, 1, 1], [], []>} : vector<16x64xbf16>, vector<64x32xbf16>, vector<16x32xf32> -> vector<16x32xf32>
    %349 = arith.truncf %348 : vector<16x32xf32> to vector<16x32xbf16>
    %350 = arith.truncf %323 : vector<32x32xf32> to vector<32x32xbf16>
    %cst_108 = arith.constant dense<0.000000e+00> : vector<16x32xf32>
    %351 = tpu.matmul %349, %350, %cst_108 {dimension_numbers = #tpu.dot_dimension_numbers<[1], [0], [0], [1], [0, 0, 1, 1], [], []>} : vector<16x32xbf16>, vector<32x32xbf16>, vector<16x32xf32> -> vector<16x32xf32>
    %352 = vector.broadcast %324 : vector<1x32xf32> to vector<16x32xf32>
    %353 = arith.addf %351, %352 : vector<16x32xf32>
    %354 = arith.addf %306, %353 : vector<16x32xf32>
    %c1056 = arith.constant 1056 : index
    %c0_109 = arith.constant 0 : index
    %355 = vector.load %arg2[%c1056, %c0_109] : memref<1832x128xf32, #tpu.memory_space<vmem>>, vector<2x32xf32>
    %356 = vector.extract_strided_slice %355 {offsets = [0, 0], sizes = [1, 32], strides = [1, 1]} : vector<2x32xf32> to vector<1x32xf32>
    %357 = vector.extract_strided_slice %355 {offsets = [1, 0], sizes = [1, 32], strides = [1, 1]} : vector<2x32xf32> to vector<1x32xf32>
    %cst_110 = arith.constant dense<0.000000e+00> : vector<16xf32>
    %358 = vector.multi_reduction <add>, %354, %cst_110 [1] : vector<16x32xf32> to vector<16xf32>
    %359 = vector.shape_cast %358 : vector<16xf32> to vector<16x1xf32>
    %cst_111 = arith.constant 3.200000e+01 : f32
    %360 = vector.broadcast %cst_111 : f32 to vector<16x1xf32>
    %361 = arith.divf %359, %360 : vector<16x1xf32>
    %362 = vector.broadcast %361 : vector<16x1xf32> to vector<16x32xf32>
    %363 = arith.subf %354, %362 : vector<16x32xf32>
    %364 = arith.mulf %363, %363 : vector<16x32xf32>
    %cst_112 = arith.constant dense<0.000000e+00> : vector<16xf32>
    %365 = vector.multi_reduction <add>, %364, %cst_112 [1] : vector<16x32xf32> to vector<16xf32>
    %366 = vector.shape_cast %365 : vector<16xf32> to vector<16x1xf32>
    %cst_113 = arith.constant 3.200000e+01 : f32
    %367 = vector.broadcast %cst_113 : f32 to vector<16x1xf32>
    %368 = arith.divf %366, %367 : vector<16x1xf32>
    %369 = vector.broadcast %361 : vector<16x1xf32> to vector<16x32xf32>
    %370 = arith.subf %354, %369 : vector<16x32xf32>
    %cst_114 = arith.constant 9.99999974E-6 : f32
    %371 = vector.broadcast %cst_114 : f32 to vector<16x1xf32>
    %372 = arith.addf %368, %371 : vector<16x1xf32>
    %373 = math.rsqrt %372 : vector<16x1xf32>
    %374 = vector.broadcast %373 : vector<16x1xf32> to vector<16x32xf32>
    %375 = arith.mulf %370, %374 : vector<16x32xf32>
    %376 = vector.broadcast %356 : vector<1x32xf32> to vector<16x32xf32>
    %377 = arith.mulf %375, %376 : vector<16x32xf32>
    %378 = vector.broadcast %357 : vector<1x32xf32> to vector<16x32xf32>
    %379 = arith.addf %377, %378 : vector<16x32xf32>
    %c1072 = arith.constant 1072 : index
    %c0_115 = arith.constant 0 : index
    %380 = vector.load %arg2[%c1072, %c0_115] : memref<1832x128xf32, #tpu.memory_space<vmem>>, vector<32x128xf32>
    %381 = arith.truncf %379 : vector<16x32xf32> to vector<16x32xbf16>
    %382 = arith.truncf %380 : vector<32x128xf32> to vector<32x128xbf16>
    %cst_116 = arith.constant dense<0.000000e+00> : vector<16x128xf32>
    %383 = tpu.matmul %381, %382, %cst_116 {dimension_numbers = #tpu.dot_dimension_numbers<[1], [0], [0], [1], [0, 0, 1, 1], [], []>} : vector<16x32xbf16>, vector<32x128xbf16>, vector<16x128xf32> -> vector<16x128xf32>
    %c1104 = arith.constant 1104 : index
    %c0_117 = arith.constant 0 : index
    %384 = vector.load %arg2[%c1104, %c0_117] : memref<1832x128xf32, #tpu.memory_space<vmem>>, vector<1x128xf32>
    %385 = vector.broadcast %384 : vector<1x128xf32> to vector<16x128xf32>
    %386 = arith.addf %383, %385 : vector<16x128xf32>
    %cst_118 = arith.constant 0.000000e+00 : f32
    %387 = vector.broadcast %cst_118 : f32 to vector<16x128xf32>
    %388 = arith.maximumf %386, %387 : vector<16x128xf32>
    %c1112 = arith.constant 1112 : index
    %c0_119 = arith.constant 0 : index
    %389 = vector.load %arg2[%c1112, %c0_119] : memref<1832x128xf32, #tpu.memory_space<vmem>>, vector<128x32xf32>
    %390 = arith.truncf %388 : vector<16x128xf32> to vector<16x128xbf16>
    %391 = arith.truncf %389 : vector<128x32xf32> to vector<128x32xbf16>
    %cst_120 = arith.constant dense<0.000000e+00> : vector<16x32xf32>
    %392 = tpu.matmul %390, %391, %cst_120 {dimension_numbers = #tpu.dot_dimension_numbers<[1], [0], [0], [1], [0, 0, 1, 1], [], []>} : vector<16x128xbf16>, vector<128x32xbf16>, vector<16x32xf32> -> vector<16x32xf32>
    %c1240 = arith.constant 1240 : index
    %c0_121 = arith.constant 0 : index
    %393 = vector.load %arg2[%c1240, %c0_121] : memref<1832x128xf32, #tpu.memory_space<vmem>>, vector<1x32xf32>
    %394 = vector.broadcast %393 : vector<1x32xf32> to vector<16x32xf32>
    %395 = arith.addf %392, %394 : vector<16x32xf32>
    %396 = arith.addf %379, %395 : vector<16x32xf32>
    %c1064 = arith.constant 1064 : index
    %c0_122 = arith.constant 0 : index
    %397 = vector.load %arg2[%c1064, %c0_122] : memref<1832x128xf32, #tpu.memory_space<vmem>>, vector<2x32xf32>
    %398 = vector.extract_strided_slice %397 {offsets = [0, 0], sizes = [1, 32], strides = [1, 1]} : vector<2x32xf32> to vector<1x32xf32>
    %399 = vector.extract_strided_slice %397 {offsets = [1, 0], sizes = [1, 32], strides = [1, 1]} : vector<2x32xf32> to vector<1x32xf32>
    %cst_123 = arith.constant dense<0.000000e+00> : vector<16xf32>
    %400 = vector.multi_reduction <add>, %396, %cst_123 [1] : vector<16x32xf32> to vector<16xf32>
    %401 = vector.shape_cast %400 : vector<16xf32> to vector<16x1xf32>
    %cst_124 = arith.constant 3.200000e+01 : f32
    %402 = vector.broadcast %cst_124 : f32 to vector<16x1xf32>
    %403 = arith.divf %401, %402 : vector<16x1xf32>
    %404 = vector.broadcast %403 : vector<16x1xf32> to vector<16x32xf32>
    %405 = arith.subf %396, %404 : vector<16x32xf32>
    %406 = arith.mulf %405, %405 : vector<16x32xf32>
    %cst_125 = arith.constant dense<0.000000e+00> : vector<16xf32>
    %407 = vector.multi_reduction <add>, %406, %cst_125 [1] : vector<16x32xf32> to vector<16xf32>
    %408 = vector.shape_cast %407 : vector<16xf32> to vector<16x1xf32>
    %cst_126 = arith.constant 3.200000e+01 : f32
    %409 = vector.broadcast %cst_126 : f32 to vector<16x1xf32>
    %410 = arith.divf %408, %409 : vector<16x1xf32>
    %411 = vector.broadcast %403 : vector<16x1xf32> to vector<16x32xf32>
    %412 = arith.subf %396, %411 : vector<16x32xf32>
    %cst_127 = arith.constant 9.99999974E-6 : f32
    %413 = vector.broadcast %cst_127 : f32 to vector<16x1xf32>
    %414 = arith.addf %410, %413 : vector<16x1xf32>
    %415 = math.rsqrt %414 : vector<16x1xf32>
    %416 = vector.broadcast %415 : vector<16x1xf32> to vector<16x32xf32>
    %417 = arith.mulf %412, %416 : vector<16x32xf32>
    %418 = vector.broadcast %398 : vector<1x32xf32> to vector<16x32xf32>
    %419 = arith.mulf %417, %418 : vector<16x32xf32>
    %420 = vector.broadcast %399 : vector<1x32xf32> to vector<16x32xf32>
    %421 = arith.addf %419, %420 : vector<16x32xf32>
    %c1248 = arith.constant 1248 : index
    %c0_128 = arith.constant 0 : index
    %422 = vector.load %arg2[%c1248, %c0_128] : memref<1832x128xf32, #tpu.memory_space<vmem>>, vector<32x96xf32>
    %423 = arith.truncf %421 : vector<16x32xf32> to vector<16x32xbf16>
    %424 = arith.truncf %422 : vector<32x96xf32> to vector<32x96xbf16>
    %cst_129 = arith.constant dense<0.000000e+00> : vector<16x96xf32>
    %425 = tpu.matmul %423, %424, %cst_129 {dimension_numbers = #tpu.dot_dimension_numbers<[1], [0], [0], [1], [0, 0, 1, 1], [], []>} : vector<16x32xbf16>, vector<32x96xbf16>, vector<16x96xf32> -> vector<16x96xf32>
    %c1280 = arith.constant 1280 : index
    %c0_130 = arith.constant 0 : index
    %426 = vector.load %arg2[%c1280, %c0_130] : memref<1832x128xf32, #tpu.memory_space<vmem>>, vector<1x96xf32>
    %427 = vector.broadcast %426 : vector<1x96xf32> to vector<16x96xf32>
    %428 = arith.addf %425, %427 : vector<16x96xf32>
    %429 = vector.extract_strided_slice %428 {offsets = [0, 0], sizes = [16, 32], strides = [1, 1]} : vector<16x96xf32> to vector<16x32xf32>
    %430 = vector.extract_strided_slice %428 {offsets = [0, 32], sizes = [16, 32], strides = [1, 1]} : vector<16x96xf32> to vector<16x32xf32>
    %431 = vector.extract_strided_slice %428 {offsets = [0, 64], sizes = [16, 32], strides = [1, 1]} : vector<16x96xf32> to vector<16x32xf32>
    %c1288 = arith.constant 1288 : index
    %c0_131 = arith.constant 0 : index
    %432 = vector.load %arg2[%c1288, %c0_131] : memref<1832x128xf32, #tpu.memory_space<vmem>>, vector<32x32xf32>
    %c1320 = arith.constant 1320 : index
    %c0_132 = arith.constant 0 : index
    %433 = vector.load %arg2[%c1320, %c0_132] : memref<1832x128xf32, #tpu.memory_space<vmem>>, vector<1x32xf32>
    %434 = tpu.concatenate %430, %430, %430, %430 in 0 : vector<16x32xf32>, vector<16x32xf32>, vector<16x32xf32>, vector<16x32xf32> -> vector<64x32xf32>
    %435 = arith.mulf %434, %0 : vector<64x32xf32>
    %436 = tpu.concatenate %431, %431, %431, %431 in 0 : vector<16x32xf32>, vector<16x32xf32>, vector<16x32xf32>, vector<16x32xf32> -> vector<64x32xf32>
    %437 = arith.mulf %436, %0 : vector<64x32xf32>
    %438 = arith.truncf %429 : vector<16x32xf32> to vector<16x32xbf16>
    %439 = arith.truncf %435 : vector<64x32xf32> to vector<64x32xbf16>
    %cst_133 = arith.constant dense<0.000000e+00> : vector<16x64xf32>
    %440 = tpu.matmul %438, %439, %cst_133 {dimension_numbers = #tpu.dot_dimension_numbers<[1], [1], [0], [0], [0, 0, 1, 0], [], []>} : vector<16x32xbf16>, vector<64x32xbf16>, vector<16x64xf32> -> vector<16x64xf32>
    %cst_134 = arith.constant 0.353553385 : f32
    %441 = vector.broadcast %cst_134 : f32 to vector<16x64xf32>
    %442 = arith.mulf %440, %441 : vector<16x64xf32>
    %443 = arith.addf %442, %1 : vector<16x64xf32>
    %cst_135 = arith.constant dense<0xFF800000> : vector<16xf32>
    %444 = vector.multi_reduction <maximumf>, %443, %cst_135 [1] : vector<16x64xf32> to vector<16xf32>
    %445 = vector.shape_cast %444 : vector<16xf32> to vector<16x1xf32>
    %446 = vector.broadcast %445 : vector<16x1xf32> to vector<16x64xf32>
    %447 = arith.subf %443, %446 : vector<16x64xf32>
    %448 = math.exp %447 : vector<16x64xf32>
    %449 = arith.truncf %448 : vector<16x64xf32> to vector<16x64xbf16>
    %cst_136 = arith.constant dense<0.000000e+00> : vector<16x64xf32>
    %450 = tpu.matmul %449, %3, %cst_136 {dimension_numbers = #tpu.dot_dimension_numbers<[1], [0], [0], [1], [0, 0, 1, 1], [], []>} : vector<16x64xbf16>, vector<64x64xbf16>, vector<16x64xf32> -> vector<16x64xf32>
    %cst_137 = arith.constant 1.000000e-30 : f32
    %451 = vector.broadcast %cst_137 : f32 to vector<16x64xf32>
    %452 = arith.maximumf %450, %451 : vector<16x64xf32>
    %453 = tpu.reciprocal %452 {approx = true} : vector<16x64xf32> -> vector<16x64xf32>
    %454 = arith.mulf %448, %453 : vector<16x64xf32>
    %455 = arith.truncf %454 : vector<16x64xf32> to vector<16x64xbf16>
    %456 = arith.truncf %437 : vector<64x32xf32> to vector<64x32xbf16>
    %cst_138 = arith.constant dense<0.000000e+00> : vector<16x32xf32>
    %457 = tpu.matmul %455, %456, %cst_138 {dimension_numbers = #tpu.dot_dimension_numbers<[1], [0], [0], [1], [0, 0, 1, 1], [], []>} : vector<16x64xbf16>, vector<64x32xbf16>, vector<16x32xf32> -> vector<16x32xf32>
    %458 = arith.truncf %457 : vector<16x32xf32> to vector<16x32xbf16>
    %459 = arith.truncf %432 : vector<32x32xf32> to vector<32x32xbf16>
    %cst_139 = arith.constant dense<0.000000e+00> : vector<16x32xf32>
    %460 = tpu.matmul %458, %459, %cst_139 {dimension_numbers = #tpu.dot_dimension_numbers<[1], [0], [0], [1], [0, 0, 1, 1], [], []>} : vector<16x32xbf16>, vector<32x32xbf16>, vector<16x32xf32> -> vector<16x32xf32>
    %461 = vector.broadcast %433 : vector<1x32xf32> to vector<16x32xf32>
    %462 = arith.addf %460, %461 : vector<16x32xf32>
    %463 = arith.addf %421, %462 : vector<16x32xf32>
    %c1448 = arith.constant 1448 : index
    %c0_140 = arith.constant 0 : index
    %464 = vector.load %arg2[%c1448, %c0_140] : memref<1832x128xf32, #tpu.memory_space<vmem>>, vector<2x32xf32>
    %465 = vector.extract_strided_slice %464 {offsets = [0, 0], sizes = [1, 32], strides = [1, 1]} : vector<2x32xf32> to vector<1x32xf32>
    %466 = vector.extract_strided_slice %464 {offsets = [1, 0], sizes = [1, 32], strides = [1, 1]} : vector<2x32xf32> to vector<1x32xf32>
    %cst_141 = arith.constant dense<0.000000e+00> : vector<16xf32>
    %467 = vector.multi_reduction <add>, %463, %cst_141 [1] : vector<16x32xf32> to vector<16xf32>
    %468 = vector.shape_cast %467 : vector<16xf32> to vector<16x1xf32>
    %cst_142 = arith.constant 3.200000e+01 : f32
    %469 = vector.broadcast %cst_142 : f32 to vector<16x1xf32>
    %470 = arith.divf %468, %469 : vector<16x1xf32>
    %471 = vector.broadcast %470 : vector<16x1xf32> to vector<16x32xf32>
    %472 = arith.subf %463, %471 : vector<16x32xf32>
    %473 = arith.mulf %472, %472 : vector<16x32xf32>
    %cst_143 = arith.constant dense<0.000000e+00> : vector<16xf32>
    %474 = vector.multi_reduction <add>, %473, %cst_143 [1] : vector<16x32xf32> to vector<16xf32>
    %475 = vector.shape_cast %474 : vector<16xf32> to vector<16x1xf32>
    %cst_144 = arith.constant 3.200000e+01 : f32
    %476 = vector.broadcast %cst_144 : f32 to vector<16x1xf32>
    %477 = arith.divf %475, %476 : vector<16x1xf32>
    %478 = vector.broadcast %470 : vector<16x1xf32> to vector<16x32xf32>
    %479 = arith.subf %463, %478 : vector<16x32xf32>
    %cst_145 = arith.constant 9.99999974E-6 : f32
    %480 = vector.broadcast %cst_145 : f32 to vector<16x1xf32>
    %481 = arith.addf %477, %480 : vector<16x1xf32>
    %482 = math.rsqrt %481 : vector<16x1xf32>
    %483 = vector.broadcast %482 : vector<16x1xf32> to vector<16x32xf32>
    %484 = arith.mulf %479, %483 : vector<16x32xf32>
    %485 = vector.broadcast %465 : vector<1x32xf32> to vector<16x32xf32>
    %486 = arith.mulf %484, %485 : vector<16x32xf32>
    %487 = vector.broadcast %466 : vector<1x32xf32> to vector<16x32xf32>
    %488 = arith.addf %486, %487 : vector<16x32xf32>
    %c1328 = arith.constant 1328 : index
    %c0_146 = arith.constant 0 : index
    %489 = vector.load %arg2[%c1328, %c0_146] : memref<1832x128xf32, #tpu.memory_space<vmem>>, vector<32x32xf32>
    %490 = arith.truncf %488 : vector<16x32xf32> to vector<16x32xbf16>
    %491 = arith.truncf %489 : vector<32x32xf32> to vector<32x32xbf16>
    %cst_147 = arith.constant dense<0.000000e+00> : vector<16x32xf32>
    %492 = tpu.matmul %490, %491, %cst_147 {dimension_numbers = #tpu.dot_dimension_numbers<[1], [0], [0], [1], [0, 0, 1, 1], [], []>} : vector<16x32xbf16>, vector<32x32xbf16>, vector<16x32xf32> -> vector<16x32xf32>
    %c1360 = arith.constant 1360 : index
    %c0_148 = arith.constant 0 : index
    %493 = vector.load %arg2[%c1360, %c0_148] : memref<1832x128xf32, #tpu.memory_space<vmem>>, vector<1x32xf32>
    %494 = vector.broadcast %493 : vector<1x32xf32> to vector<16x32xf32>
    %495 = arith.addf %492, %494 : vector<16x32xf32>
    %c1368 = arith.constant 1368 : index
    %c0_149 = arith.constant 0 : index
    %496 = vector.load %arg2[%c1368, %c0_149] : memref<1832x128xf32, #tpu.memory_space<vmem>>, vector<32x64xf32>
    %497 = arith.truncf %228 : vector<16x32xf32> to vector<16x32xbf16>
    %498 = arith.truncf %496 : vector<32x64xf32> to vector<32x64xbf16>
    %cst_150 = arith.constant dense<0.000000e+00> : vector<16x64xf32>
    %499 = tpu.matmul %497, %498, %cst_150 {dimension_numbers = #tpu.dot_dimension_numbers<[1], [0], [0], [1], [0, 0, 1, 1], [], []>} : vector<16x32xbf16>, vector<32x64xbf16>, vector<16x64xf32> -> vector<16x64xf32>
    %c1400 = arith.constant 1400 : index
    %c0_151 = arith.constant 0 : index
    %500 = vector.load %arg2[%c1400, %c0_151] : memref<1832x128xf32, #tpu.memory_space<vmem>>, vector<1x64xf32>
    %501 = vector.broadcast %500 : vector<1x64xf32> to vector<16x64xf32>
    %502 = arith.addf %499, %501 : vector<16x64xf32>
    %503 = vector.extract_strided_slice %502 {offsets = [0, 0], sizes = [16, 32], strides = [1, 1]} : vector<16x64xf32> to vector<16x32xf32>
    %504 = vector.extract_strided_slice %502 {offsets = [0, 32], sizes = [16, 32], strides = [1, 1]} : vector<16x64xf32> to vector<16x32xf32>
    %c1408 = arith.constant 1408 : index
    %c0_152 = arith.constant 0 : index
    %505 = vector.load %arg2[%c1408, %c0_152] : memref<1832x128xf32, #tpu.memory_space<vmem>>, vector<32x32xf32>
    %c1440 = arith.constant 1440 : index
    %c0_153 = arith.constant 0 : index
    %506 = vector.load %arg2[%c1440, %c0_153] : memref<1832x128xf32, #tpu.memory_space<vmem>>, vector<1x32xf32>
    %507 = tpu.concatenate %503, %503, %503, %503 in 0 : vector<16x32xf32>, vector<16x32xf32>, vector<16x32xf32>, vector<16x32xf32> -> vector<64x32xf32>
    %508 = arith.mulf %507, %0 : vector<64x32xf32>
    %509 = tpu.concatenate %504, %504, %504, %504 in 0 : vector<16x32xf32>, vector<16x32xf32>, vector<16x32xf32>, vector<16x32xf32> -> vector<64x32xf32>
    %510 = arith.mulf %509, %0 : vector<64x32xf32>
    %511 = arith.truncf %495 : vector<16x32xf32> to vector<16x32xbf16>
    %512 = arith.truncf %508 : vector<64x32xf32> to vector<64x32xbf16>
    %cst_154 = arith.constant dense<0.000000e+00> : vector<16x64xf32>
    %513 = tpu.matmul %511, %512, %cst_154 {dimension_numbers = #tpu.dot_dimension_numbers<[1], [1], [0], [0], [0, 0, 1, 0], [], []>} : vector<16x32xbf16>, vector<64x32xbf16>, vector<16x64xf32> -> vector<16x64xf32>
    %cst_155 = arith.constant 0.353553385 : f32
    %514 = vector.broadcast %cst_155 : f32 to vector<16x64xf32>
    %515 = arith.mulf %513, %514 : vector<16x64xf32>
    %516 = arith.addf %515, %1 : vector<16x64xf32>
    %cst_156 = arith.constant dense<0xFF800000> : vector<16xf32>
    %517 = vector.multi_reduction <maximumf>, %516, %cst_156 [1] : vector<16x64xf32> to vector<16xf32>
    %518 = vector.shape_cast %517 : vector<16xf32> to vector<16x1xf32>
    %519 = vector.broadcast %518 : vector<16x1xf32> to vector<16x64xf32>
    %520 = arith.subf %516, %519 : vector<16x64xf32>
    %521 = math.exp %520 : vector<16x64xf32>
    %522 = arith.truncf %521 : vector<16x64xf32> to vector<16x64xbf16>
    %cst_157 = arith.constant dense<0.000000e+00> : vector<16x64xf32>
    %523 = tpu.matmul %522, %3, %cst_157 {dimension_numbers = #tpu.dot_dimension_numbers<[1], [0], [0], [1], [0, 0, 1, 1], [], []>} : vector<16x64xbf16>, vector<64x64xbf16>, vector<16x64xf32> -> vector<16x64xf32>
    %cst_158 = arith.constant 1.000000e-30 : f32
    %524 = vector.broadcast %cst_158 : f32 to vector<16x64xf32>
    %525 = arith.maximumf %523, %524 : vector<16x64xf32>
    %526 = tpu.reciprocal %525 {approx = true} : vector<16x64xf32> -> vector<16x64xf32>
    %527 = arith.mulf %521, %526 : vector<16x64xf32>
    %528 = arith.truncf %527 : vector<16x64xf32> to vector<16x64xbf16>
    %529 = arith.truncf %510 : vector<64x32xf32> to vector<64x32xbf16>
    %cst_159 = arith.constant dense<0.000000e+00> : vector<16x32xf32>
    %530 = tpu.matmul %528, %529, %cst_159 {dimension_numbers = #tpu.dot_dimension_numbers<[1], [0], [0], [1], [0, 0, 1, 1], [], []>} : vector<16x64xbf16>, vector<64x32xbf16>, vector<16x32xf32> -> vector<16x32xf32>
    %531 = arith.truncf %530 : vector<16x32xf32> to vector<16x32xbf16>
    %532 = arith.truncf %505 : vector<32x32xf32> to vector<32x32xbf16>
    %cst_160 = arith.constant dense<0.000000e+00> : vector<16x32xf32>
    %533 = tpu.matmul %531, %532, %cst_160 {dimension_numbers = #tpu.dot_dimension_numbers<[1], [0], [0], [1], [0, 0, 1, 1], [], []>} : vector<16x32xbf16>, vector<32x32xbf16>, vector<16x32xf32> -> vector<16x32xf32>
    %534 = vector.broadcast %506 : vector<1x32xf32> to vector<16x32xf32>
    %535 = arith.addf %533, %534 : vector<16x32xf32>
    %536 = arith.addf %488, %535 : vector<16x32xf32>
    %c1456 = arith.constant 1456 : index
    %c0_161 = arith.constant 0 : index
    %537 = vector.load %arg2[%c1456, %c0_161] : memref<1832x128xf32, #tpu.memory_space<vmem>>, vector<2x32xf32>
    %538 = vector.extract_strided_slice %537 {offsets = [0, 0], sizes = [1, 32], strides = [1, 1]} : vector<2x32xf32> to vector<1x32xf32>
    %539 = vector.extract_strided_slice %537 {offsets = [1, 0], sizes = [1, 32], strides = [1, 1]} : vector<2x32xf32> to vector<1x32xf32>
    %cst_162 = arith.constant dense<0.000000e+00> : vector<16xf32>
    %540 = vector.multi_reduction <add>, %536, %cst_162 [1] : vector<16x32xf32> to vector<16xf32>
    %541 = vector.shape_cast %540 : vector<16xf32> to vector<16x1xf32>
    %cst_163 = arith.constant 3.200000e+01 : f32
    %542 = vector.broadcast %cst_163 : f32 to vector<16x1xf32>
    %543 = arith.divf %541, %542 : vector<16x1xf32>
    %544 = vector.broadcast %543 : vector<16x1xf32> to vector<16x32xf32>
    %545 = arith.subf %536, %544 : vector<16x32xf32>
    %546 = arith.mulf %545, %545 : vector<16x32xf32>
    %cst_164 = arith.constant dense<0.000000e+00> : vector<16xf32>
    %547 = vector.multi_reduction <add>, %546, %cst_164 [1] : vector<16x32xf32> to vector<16xf32>
    %548 = vector.shape_cast %547 : vector<16xf32> to vector<16x1xf32>
    %cst_165 = arith.constant 3.200000e+01 : f32
    %549 = vector.broadcast %cst_165 : f32 to vector<16x1xf32>
    %550 = arith.divf %548, %549 : vector<16x1xf32>
    %551 = vector.broadcast %543 : vector<16x1xf32> to vector<16x32xf32>
    %552 = arith.subf %536, %551 : vector<16x32xf32>
    %cst_166 = arith.constant 9.99999974E-6 : f32
    %553 = vector.broadcast %cst_166 : f32 to vector<16x1xf32>
    %554 = arith.addf %550, %553 : vector<16x1xf32>
    %555 = math.rsqrt %554 : vector<16x1xf32>
    %556 = vector.broadcast %555 : vector<16x1xf32> to vector<16x32xf32>
    %557 = arith.mulf %552, %556 : vector<16x32xf32>
    %558 = vector.broadcast %538 : vector<1x32xf32> to vector<16x32xf32>
    %559 = arith.mulf %557, %558 : vector<16x32xf32>
    %560 = vector.broadcast %539 : vector<1x32xf32> to vector<16x32xf32>
    %561 = arith.addf %559, %560 : vector<16x32xf32>
    %c1472 = arith.constant 1472 : index
    %c0_167 = arith.constant 0 : index
    %562 = vector.load %arg2[%c1472, %c0_167] : memref<1832x128xf32, #tpu.memory_space<vmem>>, vector<32x128xf32>
    %563 = arith.truncf %561 : vector<16x32xf32> to vector<16x32xbf16>
    %564 = arith.truncf %562 : vector<32x128xf32> to vector<32x128xbf16>
    %cst_168 = arith.constant dense<0.000000e+00> : vector<16x128xf32>
    %565 = tpu.matmul %563, %564, %cst_168 {dimension_numbers = #tpu.dot_dimension_numbers<[1], [0], [0], [1], [0, 0, 1, 1], [], []>} : vector<16x32xbf16>, vector<32x128xbf16>, vector<16x128xf32> -> vector<16x128xf32>
    %c1504 = arith.constant 1504 : index
    %c0_169 = arith.constant 0 : index
    %566 = vector.load %arg2[%c1504, %c0_169] : memref<1832x128xf32, #tpu.memory_space<vmem>>, vector<1x128xf32>
    %567 = vector.broadcast %566 : vector<1x128xf32> to vector<16x128xf32>
    %568 = arith.addf %565, %567 : vector<16x128xf32>
    %cst_170 = arith.constant 0.000000e+00 : f32
    %569 = vector.broadcast %cst_170 : f32 to vector<16x128xf32>
    %570 = arith.maximumf %568, %569 : vector<16x128xf32>
    %c1512 = arith.constant 1512 : index
    %c0_171 = arith.constant 0 : index
    %571 = vector.load %arg2[%c1512, %c0_171] : memref<1832x128xf32, #tpu.memory_space<vmem>>, vector<128x32xf32>
    %572 = arith.truncf %570 : vector<16x128xf32> to vector<16x128xbf16>
    %573 = arith.truncf %571 : vector<128x32xf32> to vector<128x32xbf16>
    %cst_172 = arith.constant dense<0.000000e+00> : vector<16x32xf32>
    %574 = tpu.matmul %572, %573, %cst_172 {dimension_numbers = #tpu.dot_dimension_numbers<[1], [0], [0], [1], [0, 0, 1, 1], [], []>} : vector<16x128xbf16>, vector<128x32xbf16>, vector<16x32xf32> -> vector<16x32xf32>
    %c1640 = arith.constant 1640 : index
    %c0_173 = arith.constant 0 : index
    %575 = vector.load %arg2[%c1640, %c0_173] : memref<1832x128xf32, #tpu.memory_space<vmem>>, vector<1x32xf32>
    %576 = vector.broadcast %575 : vector<1x32xf32> to vector<16x32xf32>
    %577 = arith.addf %574, %576 : vector<16x32xf32>
    %578 = arith.addf %561, %577 : vector<16x32xf32>
    %c1464 = arith.constant 1464 : index
    %c0_174 = arith.constant 0 : index
    %579 = vector.load %arg2[%c1464, %c0_174] : memref<1832x128xf32, #tpu.memory_space<vmem>>, vector<2x32xf32>
    %580 = vector.extract_strided_slice %579 {offsets = [0, 0], sizes = [1, 32], strides = [1, 1]} : vector<2x32xf32> to vector<1x32xf32>
    %581 = vector.extract_strided_slice %579 {offsets = [1, 0], sizes = [1, 32], strides = [1, 1]} : vector<2x32xf32> to vector<1x32xf32>
    %cst_175 = arith.constant dense<0.000000e+00> : vector<16xf32>
    %582 = vector.multi_reduction <add>, %578, %cst_175 [1] : vector<16x32xf32> to vector<16xf32>
    %583 = vector.shape_cast %582 : vector<16xf32> to vector<16x1xf32>
    %cst_176 = arith.constant 3.200000e+01 : f32
    %584 = vector.broadcast %cst_176 : f32 to vector<16x1xf32>
    %585 = arith.divf %583, %584 : vector<16x1xf32>
    %586 = vector.broadcast %585 : vector<16x1xf32> to vector<16x32xf32>
    %587 = arith.subf %578, %586 : vector<16x32xf32>
    %588 = arith.mulf %587, %587 : vector<16x32xf32>
    %cst_177 = arith.constant dense<0.000000e+00> : vector<16xf32>
    %589 = vector.multi_reduction <add>, %588, %cst_177 [1] : vector<16x32xf32> to vector<16xf32>
    %590 = vector.shape_cast %589 : vector<16xf32> to vector<16x1xf32>
    %cst_178 = arith.constant 3.200000e+01 : f32
    %591 = vector.broadcast %cst_178 : f32 to vector<16x1xf32>
    %592 = arith.divf %590, %591 : vector<16x1xf32>
    %593 = vector.broadcast %585 : vector<16x1xf32> to vector<16x32xf32>
    %594 = arith.subf %578, %593 : vector<16x32xf32>
    %cst_179 = arith.constant 9.99999974E-6 : f32
    %595 = vector.broadcast %cst_179 : f32 to vector<16x1xf32>
    %596 = arith.addf %592, %595 : vector<16x1xf32>
    %597 = math.rsqrt %596 : vector<16x1xf32>
    %598 = vector.broadcast %597 : vector<16x1xf32> to vector<16x32xf32>
    %599 = arith.mulf %594, %598 : vector<16x32xf32>
    %600 = vector.broadcast %580 : vector<1x32xf32> to vector<16x32xf32>
    %601 = arith.mulf %599, %600 : vector<16x32xf32>
    %602 = vector.broadcast %581 : vector<1x32xf32> to vector<16x32xf32>
    %603 = arith.addf %601, %602 : vector<16x32xf32>
    %c1648 = arith.constant 1648 : index
    %c0_180 = arith.constant 0 : index
    %604 = vector.load %arg2[%c1648, %c0_180] : memref<1832x128xf32, #tpu.memory_space<vmem>>, vector<32x128xf32>
    %605 = arith.truncf %603 : vector<16x32xf32> to vector<16x32xbf16>
    %606 = arith.truncf %604 : vector<32x128xf32> to vector<32x128xbf16>
    %cst_181 = arith.constant dense<0.000000e+00> : vector<16x128xf32>
    %607 = tpu.matmul %605, %606, %cst_181 {dimension_numbers = #tpu.dot_dimension_numbers<[1], [0], [0], [1], [0, 0, 1, 1], [], []>} : vector<16x32xbf16>, vector<32x128xbf16>, vector<16x128xf32> -> vector<16x128xf32>
    %c1680 = arith.constant 1680 : index
    %c0_182 = arith.constant 0 : index
    %608 = vector.load %arg2[%c1680, %c0_182] : memref<1832x128xf32, #tpu.memory_space<vmem>>, vector<1x128xf32>
    %609 = vector.broadcast %608 : vector<1x128xf32> to vector<16x128xf32>
    %610 = arith.addf %607, %609 : vector<16x128xf32>
    %c0_183 = arith.constant 0 : index
    %c0_184 = arith.constant 0 : index
    %611 = vector.load %arg3[%c0_183, %c0_184] : memref<16x128xf32, #tpu.memory_space<vmem>>, vector<16x128xf32>
    tpu.vector_store %arg3[%c0_183, %c0_184], %610 {strides = array<i32>} : memref<16x128xf32, #tpu.memory_space<vmem>>, vector<16x128xf32>,
    return
  }
}

</mosaic_0001>

<llo_original>
// kernel: intentformer_forward.1
$region0: #{intentformer_forward.1}
  #allocation0 [shape = 'u32[]', space=smem, size = 0x4, offset = 0x4, fixed_abs, tag = 'smem constant byte address 0x4 - core index']
  #allocation1 [shape = 'u32[144,128]{1,0:T(1,128)}', space=vmem, size = 0x12000, scoped, tag = 'internal scratch']
  %s0 = inlined_call_operand.vmem [shape: f32[16,128], index: 0, kind: input, shape index: {}]
  %s1 = inlined_call_operand.vmem [shape: f32[8,128], index: 1, kind: input, shape index: {}]
  %s2 = inlined_call_operand.vmem [shape: f32[1832,128], index: 2, kind: input, shape index: {}]
  %s3 = inlined_call_operand.vmem [shape: f32[16,128], index: 3, kind: output, shape index: {}]
  %s4 = sld [smem:[#allocation0]]
  $region22: #{intentformer_forward.1} parent=0
    _
  %s6 = ssub.s32 1, %s4
  %s7 = scalar_select 0, %s6, %s4
  // Predicated region
  $region2: #{intentformer_forward.1} parent=0 // pred_check
    _
  $region3: #{intentformer_forward.1} parent=0 // pred_check_branch
    %9 = sbr.rel (0) target = $region5
  $region4: #{intentformer_forward.1} parent=0 // pred_region
    _
  $region5: #{intentformer_forward.1} parent=0 // pred_fallthru
    _
  // Predicated region
  $region6: #{intentformer_forward.1} parent=0 // pred_check
    _
  $region7: #{intentformer_forward.1} parent=0 // pred_check_branch
    %11 = sbr.rel (0) target = $region9
  $region8: #{intentformer_forward.1} parent=0 // pred_region
    _
  $region9: #{intentformer_forward.1} parent=0 // pred_fallthru
    _
  // Predicated region
  $region10: #{intentformer_forward.1} parent=0 // pred_check
    _
  $region11: #{intentformer_forward.1} parent=0 // pred_check_branch
    %13 = sbr.rel (0) target = $region13
  $region12: #{intentformer_forward.1} parent=0 // pred_region
    _
  $region13: #{intentformer_forward.1} parent=0 // pred_fallthru
    _
  %v15 = vld [vmem:[%s2 + $0x698] sm:$0xff]
  %v16 = vld [vmem:[%s2 + $0x6a0] sm:$0xff]
  %v17 = vld [vmem:[%s2 + $0x6a8] sm:$0xff]
  %v18 = vld [vmem:[%s2 + $0x6b0] sm:$0xff]
  %v19 = vld [vmem:[%s2 + $0x6b8] sm:$0xff]
  %v20 = vld [vmem:[%s2 + $0x6c0] sm:$0xff]
  %v21 = vld [vmem:[%s2 + $0x6c8] sm:$0xff]
  %v22 = vld [vmem:[%s2 + $0x6d0] sm:$0xff]
  %v23 = vld [vmem:[%s2 + $0x6d8] sm:$0xff]
  %v24 = vld [vmem:[%s2 + $0x6e0] sm:$0xff]
  %v25 = vld [vmem:[%s2 + $0x6e8] sm:$0xff]
  %v26 = vld [vmem:[%s2 + $0x6f0] sm:$0xff]
  %v27 = vld [vmem:[%s2 + $0x6f8] sm:$0xff]
  %v28 = vld [vmem:[%s2 + $0x700] sm:$0xff]
  %v29 = vld [vmem:[%s2 + $0x708] sm:$0xff]
  %v30 = vld [vmem:[%s2 + $0x710] sm:$0xff]
  %v31 = vld [vmem:[%s2 + $0x718] sm:$0xff]
  %v32 = vld [vmem:[%s2 + $0x720] sm:$0xff]
  %v33 = vpack.c.bf16 %v26, %v25
  %v34 = vpack.c.bf16 %v28, %v27
  %v35 = vpack.c.bf16 %v30, %v29
  %v36 = vpack.c.bf16 %v32, %v31
  %v37 = vld [vmem:[%s0] sm:$0xff]
  %v38 = vld [vmem:[%s0 + $0x8] sm:$0xff]
  %v39 = vld [vmem:[%s2] sm:$0xff]
  %v40 = vld [vmem:[%s2 + $0x8] sm:$0xff]
  %v41 = vld [vmem:[%s2 + $0x10] sm:$0xff]
  %v42 = vld [vmem:[%s2 + $0x18] sm:$0xff]
  %v43 = vld [vmem:[%s2 + $0x20] sm:$0xff]
  %v44 = vld [vmem:[%s2 + $0x28] sm:$0xff]
  %v45 = vld [vmem:[%s2 + $0x30] sm:$0xff]
  %v46 = vld [vmem:[%s2 + $0x38] sm:$0xff]
  %v47 = vld [vmem:[%s2 + $0x40] sm:$0xff]
  %v48 = vld [vmem:[%s2 + $0x48] sm:$0xff]
  %v49 = vld [vmem:[%s2 + $0x50] sm:$0xff]
  %v50 = vld [vmem:[%s2 + $0x58] sm:$0xff]
  %v51 = vld [vmem:[%s2 + $0x60] sm:$0xff]
  %v52 = vld [vmem:[%s2 + $0x68] sm:$0xff]
  %v53 = vld [vmem:[%s2 + $0x70] sm:$0xff]
  %v54 = vld [vmem:[%s2 + $0x78] sm:$0xff]
  %v55 = vpack.c.bf16 %v38, %v37
  %v56 = vpack.c.bf16 %v40, %v39
  %v57 = vpack.c.bf16 %v42, %v41
  %v58 = vpack.c.bf16 %v44, %v43
  %v59 = vpack.c.bf16 %v46, %v45
  %v60 = vpack.c.bf16 %v48, %v47
  %v61 = vpack.c.bf16 %v50, %v49
  %v62 = vpack.c.bf16 %v52, %v51
  %v63 = vpack.c.bf16 %v54, %v53
  %v64 = vld [vmem:[%s2 + $0x80] sm:$0xff]
  %v65 = vld [vmem:[%s2 + $0x88] sm:$0xff]
  %66 = vmatprep.subr.bf16.mxu0 0
  %67 = vmatpush1.bf16.msra.mxu0 %v56
  %68 = vmatprep.subr.bf16.mxu0 0
  %69 = vmatpush1.bf16.msra.mxu0 %v57
  %70 = vmatprep.subr.bf16.mxu0 0
  %71 = vmatpush1.bf16.msra.mxu0 %v58
  %72 = vmatprep.subr.bf16.mxu0 0
  %73 = vmatpush1.bf16.msra.mxu0 %v59
  %74 = vmatprep.subr.bf16.mxu0 0
  %75 = vmatpush1.bf16.msra.mxu0 %v60
  %76 = vmatprep.subr.bf16.mxu0 0
  %77 = vmatpush1.bf16.msra.mxu0 %v61
  %78 = vmatprep.subr.bf16.mxu0 0
  %79 = vmatpush1.bf16.msra.mxu0 %v62
  %80 = vmatprep.subr.bf16.mxu0 0
  %81 = vmatpush1.bf16.msra.mxu0 %v63
  %82 = vmatprep.subr.bf16.mxu0 0
  %83 = vmatpush1.bf16.msra.mxu0 0
  %84 = vmatprep.subr.bf16.mxu0 0
  %85 = vmatpush1.bf16.msra.mxu0 0
  %86 = vmatprep.subr.bf16.mxu0 0
  %87 = vmatpush1.bf16.msra.mxu0 0
  %88 = vmatprep.subr.bf16.mxu0 0
  %89 = vmatpush1.bf16.msra.mxu0 0
  %90 = vmatprep.subr.bf16.mxu0 0
  %91 = vmatpush1.bf16.msra.mxu0 0
  %92 = vmatprep.subr.bf16.mxu0 0
  %93 = vmatpush1.bf16.msra.mxu0 0
  %94 = vmatprep.subr.bf16.mxu0 0
  %95 = vmatpush1.bf16.msra.mxu0 0
  %96 = vmatprep.subr.bf16.mxu0 0
  %97 = vmatpush1.bf16.msra.mxu0 0
  %98 = vmatprep.mubr.bf16.mxu0 0
  %99 = vmatmul.mubr.bf16.gmra.mrb[0].mxu0 %v55
  %v100 = vpop.f32.mrb[0].mxu0
  %v101 = vadd.f32 %v64, %v100
  %v102 = vpop.f32.mrb[0].mxu0
  %v103 = vpop.f32.mrb[0].mxu0
  %v104 = vadd.f32 %v65, %v103
  %v105 = vpop.f32.mrb[0].mxu0
  %106 = vdwg.mxu0
  %v107 = vld [vmem:[%s2 + $0x90] sm:$0xff]
  %v108 = vld [vmem:[%s2 + $0x98] sm:$0xff]
  %v109 = vld [vmem:[%s2 + $0xa0] sm:$0xff]
  %v110 = vld [vmem:[%s2 + $0xa8] sm:$0xff]
  %v111 = vpack.c.bf16 %v104, %v101
  %v112 = vpack.c.bf16 %v108, %v107
  %v113 = vpack.c.bf16 %v110, %v109
  %v114 = vld [vmem:[%s2 + $0xb0] sm:$0x1]
  %v115 = vlaneseq
  %v116 = vshrl.u32 %v115, 7
  %v117 = vsub.s32 0, %v116
  %v118 = vrot.slane %v114, %v117
  %vm119 = vcmask 261120
  %v121 = vsel %vm119, %v111, 0
  %123 = vmatprep.subr.bf16.mxu0 0
  %124 = vmatpush1.bf16.msra.mxu0 %v112
  %125 = vmatprep.subr.bf16.mxu0 0
  %126 = vmatpush1.bf16.msra.mxu0 %v113
  %127 = vmatprep.subr.bf16.mxu0 0
  %128 = vmatpush1.bf16.msra.mxu0 0
  %129 = vmatprep.subr.bf16.mxu0 0
  %130 = vmatpush1.bf16.msra.mxu0 0
  %131 = vmatprep.subr.bf16.mxu0 0
  %132 = vmatpush1.bf16.msra.mxu0 0
  %133 = vmatprep.subr.bf16.mxu0 0
  %134 = vmatpush1.bf16.msra.mxu0 0
  %135 = vmatprep.subr.bf16.mxu0 0
  %136 = vmatpush1.bf16.msra.mxu0 0
  %137 = vmatprep.subr.bf16.mxu0 0
  %138 = vmatpush1.bf16.msra.mxu0 0
  %139 = vmatprep.subr.bf16.mxu0 0
  %140 = vmatpush1.bf16.msra.mxu0 0
  %141 = vmatprep.subr.bf16.mxu0 0
  %142 = vmatpush1.bf16.msra.mxu0 0
  %143 = vmatprep.subr.bf16.mxu0 0
  %144 = vmatpush1.bf16.msra.mxu0 0
  %145 = vmatprep.subr.bf16.mxu0 0
  %146 = vmatpush1.bf16.msra.mxu0 0
  %147 = vmatprep.subr.bf16.mxu0 0
  %148 = vmatpush1.bf16.msra.mxu0 0
  %149 = vmatprep.subr.bf16.mxu0 0
  %150 = vmatpush1.bf16.msra.mxu0 0
  %151 = vmatprep.subr.bf16.mxu0 0
  %152 = vmatpush1.bf16.msra.mxu0 0
  %153 = vmatprep.subr.bf16.mxu0 0
  %154 = vmatpush1.bf16.msra.mxu0 0
  %155 = vmatprep.mubr.bf16.mxu0 0
  %156 = vmatmul.mubr.bf16.gmra.mrb[0].mxu0 %v121
  %v157 = vpop.f32.mrb[0].mxu0
  %v158 = vadd.f32 %v118, %v157
  %v159 = vpop.f32.mrb[0].mxu0
  %v160 = vpop.f32.mrb[0].mxu0
  %v161 = vadd.f32 %v118, %v160
  %v162 = vpop.f32.mrb[0].mxu0
  %163 = vdwg.mxu0
  %v164 = vld [vmem:[%s2 + $0xb8] sm:$0xff]
  %v165 = vld [vmem:[%s2 + $0xc0] sm:$0xff]
  %v166 = vld [vmem:[%s2 + $0xc8] sm:$0xff]
  %v167 = vld [vmem:[%s2 + $0xd0] sm:$0xff]
  %v168 = vld [vmem:[%s2 + $0xd8] sm:$0x1]
  %177 = vrot.lane.b32.xlu0 %v15, 32
  %v178 = vpop.permute.xlu0 %177
  %179 = vrot.lane.b32.xlu0 %v16, 32
  %v180 = vpop.permute.xlu0 %179
  %181 = vrot.lane.b32.xlu0 %v17, 32
  %v182 = vpop.permute.xlu0 %181
  %183 = vrot.lane.b32.xlu0 %v18, 32
  %v184 = vpop.permute.xlu0 %183
  %185 = vrot.lane.b32.xlu0 %v19, 32
  %v186 = vpop.permute.xlu0 %185
  %187 = vrot.lane.b32.xlu0 %v20, 32
  %v188 = vpop.permute.xlu0 %187
  %189 = vrot.lane.b32.xlu0 %v21, 32
  %v190 = vpop.permute.xlu0 %189
  %191 = vrot.lane.b32.xlu0 %v22, 32
  %v192 = vpop.permute.xlu0 %191
  %v201 = vmul.f32 %v158, %v178
  %v202 = vmul.f32 %v161, %v180
  %v203 = vmul.f32 %v158, %v182
  %v204 = vmul.f32 %v161, %v184
  %v205 = vmul.f32 %v158, %v186
  %v206 = vmul.f32 %v161, %v188
  %v207 = vmul.f32 %v158, %v190
  %v208 = vmul.f32 %v161, %v192
  %209 = vrot.lane.b32.xlu0 %v15, 64
  %v210 = vpop.permute.xlu0 %209
  %211 = vrot.lane.b32.xlu0 %v16, 64
  %v212 = vpop.permute.xlu0 %211
  %213 = vrot.lane.b32.xlu0 %v17, 64
  %v214 = vpop.permute.xlu0 %213
  %215 = vrot.lane.b32.xlu0 %v18, 64
  %v216 = vpop.permute.xlu0 %215
  %217 = vrot.lane.b32.xlu0 %v19, 64
  %v218 = vpop.permute.xlu0 %217
  %219 = vrot.lane.b32.xlu0 %v20, 64
  %v220 = vpop.permute.xlu0 %219
  %221 = vrot.lane.b32.xlu0 %v21, 64
  %v222 = vpop.permute.xlu0 %221
  %223 = vrot.lane.b32.xlu0 %v22, 64
  %v224 = vpop.permute.xlu0 %223
  %v233 = vmul.f32 %v158, %v210
  %v234 = vmul.f32 %v161, %v212
  %v235 = vmul.f32 %v158, %v214
  %v236 = vmul.f32 %v161, %v216
  %v237 = vmul.f32 %v158, %v218
  %v238 = vmul.f32 %v161, %v220
  %v239 = vmul.f32 %v158, %v222
  %v240 = vmul.f32 %v161, %v224
  %v241 = vpack.c.bf16 %v161, %v158
  %v242 = vpack.c.bf16 %v202, %v201
  %v243 = vpack.c.bf16 %v204, %v203
  %v244 = vpack.c.bf16 %v206, %v205
  %v245 = vpack.c.bf16 %v208, %v207
  %250 = vrot.lane.b32.xlu0 %v242, 96
  %v251 = vpop.permute.xlu0 %250
  %252 = vrot.lane.b32.xlu0 %v243, 96
  %v253 = vpop.permute.xlu0 %252
  %254 = vrot.lane.b32.xlu0 %v244, 96
  %v255 = vpop.permute.xlu0 %254
  %256 = vrot.lane.b32.xlu0 %v245, 96
  %v257 = vpop.permute.xlu0 %256
  %v259 = vsel %vm119, %v241, 0
  %v262 = vsel %vm119, %v251, 0
  %v265 = vsel %vm119, %v253, 0
  %v268 = vsel %vm119, %v255, 0
  %v271 = vsel %vm119, %v257, 0
  %273 = vmatprep.subr.bf16.mxu0 0
  %274 = vmatpush1.bf16.xpose.msra.mxu0 %v262
  %275 = vmatprep.subr.bf16.mxu0 0
  %276 = vmatpush1.bf16.xpose.msra.mxu0 %v265
  %277 = vmatprep.subr.bf16.mxu0 0
  %278 = vmatpush1.bf16.xpose.msra.mxu0 %v268
  %279 = vmatprep.subr.bf16.mxu0 0
  %280 = vmatpush1.bf16.xpose.msra.mxu0 %v271
  %281 = vmatprep.subr.bf16.mxu0 0
  %282 = vmatpush1.bf16.xpose.msra.mxu0 0
  %283 = vmatprep.subr.bf16.mxu0 0
  %284 = vmatpush1.bf16.xpose.msra.mxu0 0
  %285 = vmatprep.subr.bf16.mxu0 0
  %286 = vmatpush1.bf16.xpose.msra.mxu0 0
  %287 = vmatprep.subr.bf16.mxu0 0
  %288 = vmatpush1.bf16.xpose.msra.mxu0 0
  %289 = vmatprep.subr.bf16.mxu0 0
  %290 = vmatpush1.bf16.xpose.msra.mxu0 0
  %291 = vmatprep.subr.bf16.mxu0 0
  %292 = vmatpush1.bf16.xpose.msra.mxu0 0
  %293 = vmatprep.subr.bf16.mxu0 0
  %294 = vmatpush1.bf16.xpose.msra.mxu0 0
  %295 = vmatprep.subr.bf16.mxu0 0
  %296 = vmatpush1.bf16.xpose.msra.mxu0 0
  %297 = vmatprep.subr.bf16.mxu0 0
  %298 = vmatpush1.bf16.xpose.msra.mxu0 0
  %299 = vmatprep.subr.bf16.mxu0 0
  %300 = vmatpush1.bf16.xpose.msra.mxu0 0
  %301 = vmatprep.subr.bf16.mxu0 0
  %302 = vmatpush1.bf16.xpose.msra.mxu0 0
  %303 = vmatprep.subr.bf16.mxu0 0
  %304 = vmatpush1.bf16.xpose.msra.mxu0 0
  %305 = vmatprep.mubr.bf16.mxu0 0
  %306 = vmatmul.mubr.bf16.gmra.mrb[0].mxu0 %v259
  %v307 = vpop.f32.mrb[0].mxu0
  %v308 = vadd.f32 0.0, %v307
  %v309 = vpop.f32.mrb[0].mxu0
  %v310 = vpop.f32.mrb[0].mxu0
  %v311 = vadd.f32 0.0, %v310
  %v312 = vpop.f32.mrb[0].mxu0
  %313 = vdwg.mxu0
  %v314 = vmul.f32 %v308, 0.35355338
  %v315 = vmul.f32 %v311, 0.35355338
  %v316 = vadd.f32 %v314, %v23
  %v317 = vadd.f32 %v315, %v24
  %vm318 = vcmask 523264
  %v319 = vsel %vm318, %v316, -inf
  %320 = vmax.xlane.f32.xlu0 %v319
  %v321 = vpop.xlane.xlu0 %320
  %v322 = vsel %vm318, %v317, -inf
  %323 = vmax.xlane.f32.xlu0 %v322
  %v324 = vpop.xlane.xlu0 %323
  %v325 = vsub.f32 %v316, %v321
  %v326 = vsub.f32 %v317, %v324
  %v327 = vmul.f32 %v325, 1.442695
  %v328 = vpow.pop %v327
  %v329 = vmul.f32 %v326, 1.442695
  %v330 = vpow.pop %v329
  %v331 = vpack.c.bf16 %v330, %v328
  %v333 = vsel %vm318, %v331, 0
  %335 = vmatprep.subr.bf16.mxu0 0
  %336 = vmatpush1.bf16.msra.mxu0 %v33
  %337 = vmatprep.subr.bf16.mxu0 0
  %338 = vmatpush1.bf16.msra.mxu0 %v34
  %339 = vmatprep.subr.bf16.mxu0 0
  %340 = vmatpush1.bf16.msra.mxu0 %v35
  %341 = vmatprep.subr.bf16.mxu0 0
  %342 = vmatpush1.bf16.msra.mxu0 %v36
  %343 = vmatprep.subr.bf16.mxu0 0
  %344 = vmatpush1.bf16.msra.mxu0 0
  %345 = vmatprep.subr.bf16.mxu0 0
  %346 = vmatpush1.bf16.msra.mxu0 0
  %347 = vmatprep.subr.bf16.mxu0 0
  %348 = vmatpush1.bf16.msra.mxu0 0
  %349 = vmatprep.subr.bf16.mxu0 0
  %350 = vmatpush1.bf16.msra.mxu0 0
  %351 = vmatprep.subr.bf16.mxu0 0
  %352 = vmatpush1.bf16.msra.mxu0 0
  %353 = vmatprep.subr.bf16.mxu0 0
  %354 = vmatpush1.bf16.msra.mxu0 0
  %355 = vmatprep.subr.bf16.mxu0 0
  %356 = vmatpush1.bf16.msra.mxu0 0
  %357 = vmatprep.subr.bf16.mxu0 0
  %358 = vmatpush1.bf16.msra.mxu0 0
  %359 = vmatprep.subr.bf16.mxu0 0
  %360 = vmatpush1.bf16.msra.mxu0 0
  %361 = vmatprep.subr.bf16.mxu0 0
  %362 = vmatpush1.bf16.msra.mxu0 0
  %363 = vmatprep.subr.bf16.mxu0 0
  %364 = vmatpush1.bf16.msra.mxu0 0
  %365 = vmatprep.subr.bf16.mxu0 0
  %366 = vmatpush1.bf16.msra.mxu0 0
  %367 = vmatprep.mubr.bf16.mxu0 0
  %368 = vmatmul.mubr.bf16.gmra.mrb[0].mxu0 %v333
  %v369 = vpop.f32.mrb[0].mxu0
  %v370 = vadd.f32 0.0, %v369
  %v371 = vpop.f32.mrb[0].mxu0
  %v372 = vpop.f32.mrb[0].mxu0
  %v373 = vadd.f32 0.0, %v372
  %v374 = vpop.f32.mrb[0].mxu0
  %375 = vdwg.mxu0
  %v376 = vmax.f32 %v370, 1e-30
  %v377 = vmax.f32 %v373, 1e-30
  %v378 = vrcp.pop %v376
  %v379 = vrcp.pop %v377
  %v380 = vmul.f32 %v328, %v378
  %v381 = vmul.f32 %v330, %v379
  %v382 = vpack.c.bf16 %v381, %v380
  %v383 = vpack.c.bf16 %v234, %v233
  %v384 = vpack.c.bf16 %v236, %v235
  %v385 = vpack.c.bf16 %v238, %v237
  %v386 = vpack.c.bf16 %v240, %v239
  %391 = vrot.lane.b32.xlu0 %v383, 64
  %v392 = vpop.permute.xlu0 %391
  %393 = vrot.lane.b32.xlu0 %v384, 64
  %v394 = vpop.permute.xlu0 %393
  %395 = vrot.lane.b32.xlu0 %v385, 64
  %v396 = vpop.permute.xlu0 %395
  %397 = vrot.lane.b32.xlu0 %v386, 64
  %v398 = vpop.permute.xlu0 %397
  %v404 = vsel %vm318, %v382, 0
  %406 = vmatprep.subr.bf16.mxu0 0
  %407 = vmatpush1.bf16.msra.mxu0 %v392
  %408 = vmatprep.subr.bf16.mxu0 0
  %409 = vmatpush1.bf16.msra.mxu0 %v394
  %410 = vmatprep.subr.bf16.mxu0 0
  %411 = vmatpush1.bf16.msra.mxu0 %v396
  %412 = vmatprep.subr.bf16.mxu0 0
  %413 = vmatpush1.bf16.msra.mxu0 %v398
  %414 = vmatprep.subr.bf16.mxu0 0
  %415 = vmatpush1.bf16.msra.mxu0 0
  %416 = vmatprep.subr.bf16.mxu0 0
  %417 = vmatpush1.bf16.msra.mxu0 0
  %418 = vmatprep.subr.bf16.mxu0 0
  %419 = vmatpush1.bf16.msra.mxu0 0
  %420 = vmatprep.subr.bf16.mxu0 0
  %421 = vmatpush1.bf16.msra.mxu0 0
  %422 = vmatprep.subr.bf16.mxu0 0
  %423 = vmatpush1.bf16.msra.mxu0 0
  %424 = vmatprep.subr.bf16.mxu0 0
  %425 = vmatpush1.bf16.msra.mxu0 0
  %426 = vmatprep.subr.bf16.mxu0 0
  %427 = vmatpush1.bf16.msra.mxu0 0
  %428 = vmatprep.subr.bf16.mxu0 0
  %429 = vmatpush1.bf16.msra.mxu0 0
  %430 = vmatprep.subr.bf16.mxu0 0
  %431 = vmatpush1.bf16.msra.mxu0 0
  %432 = vmatprep.subr.bf16.mxu0 0
  %433 = vmatpush1.bf16.msra.mxu0 0
  %434 = vmatprep.subr.bf16.mxu0 0
  %435 = vmatpush1.bf16.msra.mxu0 0
  %436 = vmatprep.subr.bf16.mxu0 0
  %437 = vmatpush1.bf16.msra.mxu0 0
  %438 = vmatprep.mubr.bf16.mxu0 0
  %439 = vmatmul.mubr.bf16.gmra.mrb[0].mxu0 %v404
  %v440 = vpop.f32.mrb[0].mxu0
  %v441 = vadd.f32 0.0, %v440
  %v442 = vpop.f32.mrb[0].mxu0
  %v443 = vpop.f32.mrb[0].mxu0
  %v444 = vadd.f32 0.0, %v443
  %v445 = vpop.f32.mrb[0].mxu0
  %446 = vdwg.mxu0
  %v447 = vpack.c.bf16 %v444, %v441
  %v448 = vpack.c.bf16 %v165, %v164
  %v449 = vpack.c.bf16 %v167, %v166
  %v450 = vlaneseq
  %v451 = vshrl.u32 %v450, 7
  %v452 = vsub.s32 0, %v451
  %v453 = vrot.slane %v168, %v452
  %v455 = vsel %vm119, %v447, 0
  %457 = vmatprep.subr.bf16.mxu0 0
  %458 = vmatpush1.bf16.msra.mxu0 %v448
  %459 = vmatprep.subr.bf16.mxu0 0
  %460 = vmatpush1.bf16.msra.mxu0 %v449
  %461 = vmatprep.subr.bf16.mxu0 0
  %462 = vmatpush1.bf16.msra.mxu0 0
  %463 = vmatprep.subr.bf16.mxu0 0
  %464 = vmatpush1.bf16.msra.mxu0 0
  %465 = vmatprep.subr.bf16.mxu0 0
  %466 = vmatpush1.bf16.msra.mxu0 0
  %467 = vmatprep.subr.bf16.mxu0 0
  %468 = vmatpush1.bf16.msra.mxu0 0
  %469 = vmatprep.subr.bf16.mxu0 0
  %470 = vmatpush1.bf16.msra.mxu0 0
  %471 = vmatprep.subr.bf16.mxu0 0
  %472 = vmatpush1.bf16.msra.mxu0 0
  %473 = vmatprep.subr.bf16.mxu0 0
  %474 = vmatpush1.bf16.msra.mxu0 0
  %475 = vmatprep.subr.bf16.mxu0 0
  %476 = vmatpush1.bf16.msra.mxu0 0
  %477 = vmatprep.subr.bf16.mxu0 0
  %478 = vmatpush1.bf16.msra.mxu0 0
  %479 = vmatprep.subr.bf16.mxu0 0
  %480 = vmatpush1.bf16.msra.mxu0 0
  %481 = vmatprep.subr.bf16.mxu0 0
  %482 = vmatpush1.bf16.msra.mxu0 0
  %483 = vmatprep.subr.bf16.mxu0 0
  %484 = vmatpush1.bf16.msra.mxu0 0
  %485 = vmatprep.subr.bf16.mxu0 0
  %486 = vmatpush1.bf16.msra.mxu0 0
  %487 = vmatprep.subr.bf16.mxu0 0
  %488 = vmatpush1.bf16.msra.mxu0 0
  %489 = vmatprep.mubr.bf16.mxu0 0
  %490 = vmatmul.mubr.bf16.gmra.mrb[0].mxu0 %v455
  %v491 = vpop.f32.mrb[0].mxu0
  %v492 = vadd.f32 %v453, %v491
  %v493 = vpop.f32.mrb[0].mxu0
  %v494 = vpop.f32.mrb[0].mxu0
  %v495 = vadd.f32 %v453, %v494
  %v496 = vpop.f32.mrb[0].mxu0
  %497 = vdwg.mxu0
  %v498 = vadd.f32 %v101, %v492
  %v499 = vadd.f32 %v104, %v495
  %v500 = vld [vmem:[%s2 + $0xe0] sm:$0x3]
  %v501 = vsel %vm119, %v498, 0.0
  %502 = vadd.xlane.f32.xlu0 %v501
  %v503 = vpop.xlane.xlu0 %502
  %v504 = vsel %vm119, %v499, 0.0
  %505 = vadd.xlane.f32.xlu0 %v504
  %v506 = vpop.xlane.xlu0 %505
  %v507 = vrcp.pop 32.0
  %v508 = vmul.f32 %v503, %v507
  %v509 = vmul.f32 %v506, %v507
  %v510 = vsub.f32 %v498, %v508
  %v511 = vsub.f32 %v499, %v509
  %v512 = vmul.f32 %v510, %v510
  %v513 = vmul.f32 %v511, %v511
  %v514 = vsel %vm119, %v512, 0.0
  %515 = vadd.xlane.f32.xlu0 %v514
  %v516 = vpop.xlane.xlu0 %515
  %v517 = vsel %vm119, %v513, 0.0
  %518 = vadd.xlane.f32.xlu0 %v517
  %v519 = vpop.xlane.xlu0 %518
  %v520 = vmul.f32 %v516, %v507
  %v521 = vmul.f32 %v519, %v507
  %v522 = vadd.f32 %v520, 1e-05
  %v523 = vadd.f32 %v521, 1e-05
  %v524 = vrsqrt.pop %v522
  %v525 = vrsqrt.pop %v523
  %v526 = vmul.f32 %v510, %v524
  %v527 = vmul.f32 %v511, %v525
  %v528 = vlaneseq
  %v529 = vshrl.u32 %v528, 7
  %v530 = vsub.s32 0, %v529
  %v531 = vrot.slane %v500, %v530
  %v532 = vmul.f32 %v526, %v531
  %v533 = vmul.f32 %v527, %v531
  %v534 = vlaneseq
  %v535 = vshrl.u32 %v534, 7
  %v536 = vsub.s32 1, %v535
  %v537 = vrot.slane %v500, %v536
  %v538 = vadd.f32 %v532, %v537
  %v539 = vadd.f32 %v533, %v537
  %v540 = vld [vmem:[%s2 + $0xf0] sm:$0xff]
  %v541 = vld [vmem:[%s2 + $0xf8] sm:$0xff]
  %v542 = vld [vmem:[%s2 + $0x100] sm:$0xff]
  %v543 = vld [vmem:[%s2 + $0x108] sm:$0xff]
  %v544 = vpack.c.bf16 %v539, %v538
  %v545 = vpack.c.bf16 %v541, %v540
  %v546 = vpack.c.bf16 %v543, %v542
  %v547 = vld [vmem:[%s2 + $0x110] sm:$0x1]
  %v548 = vlaneseq
  %v549 = vshrl.u32 %v548, 7
  %v550 = vsub.s32 0, %v549
  %v551 = vrot.slane %v547, %v550
  %v553 = vsel %vm119, %v544, 0
  %555 = vmatprep.subr.bf16.mxu0 0
  %556 = vmatpush1.bf16.msra.mxu0 %v545
  %557 = vmatprep.subr.bf16.mxu0 0
  %558 = vmatpush1.bf16.msra.mxu0 %v546
  %559 = vmatprep.subr.bf16.mxu0 0
  %560 = vmatpush1.bf16.msra.mxu0 0
  %561 = vmatprep.subr.bf16.mxu0 0
  %562 = vmatpush1.bf16.msra.mxu0 0
  %563 = vmatprep.subr.bf16.mxu0 0
  %564 = vmatpush1.bf16.msra.mxu0 0
  %565 = vmatprep.subr.bf16.mxu0 0
  %566 = vmatpush1.bf16.msra.mxu0 0
  %567 = vmatprep.subr.bf16.mxu0 0
  %568 = vmatpush1.bf16.msra.mxu0 0
  %569 = vmatprep.subr.bf16.mxu0 0
  %570 = vmatpush1.bf16.msra.mxu0 0
  %571 = vmatprep.subr.bf16.mxu0 0
  %572 = vmatpush1.bf16.msra.mxu0 0
  %573 = vmatprep.subr.bf16.mxu0 0
  %574 = vmatpush1.bf16.msra.mxu0 0
  %575 = vmatprep.subr.bf16.mxu0 0
  %576 = vmatpush1.bf16.msra.mxu0 0
  %577 = vmatprep.subr.bf16.mxu0 0
  %578 = vmatpush1.bf16.msra.mxu0 0
  %579 = vmatprep.subr.bf16.mxu0 0
  %580 = vmatpush1.bf16.msra.mxu0 0
  %581 = vmatprep.subr.bf16.mxu0 0
  %582 = vmatpush1.bf16.msra.mxu0 0
  %583 = vmatprep.subr.bf16.mxu0 0
  %584 = vmatpush1.bf16.msra.mxu0 0
  %585 = vmatprep.subr.bf16.mxu0 0
  %586 = vmatpush1.bf16.msra.mxu0 0
  %587 = vmatprep.mubr.bf16.mxu0 0
  %588 = vmatmul.mubr.bf16.gmra.mrb[0].mxu0 %v553
  %v589 = vpop.f32.mrb[0].mxu0
  %v590 = vadd.f32 %v551, %v589
  %v591 = vpop.f32.mrb[0].mxu0
  %v592 = vpop.f32.mrb[0].mxu0
  %v593 = vadd.f32 %v551, %v592
  %v594 = vpop.f32.mrb[0].mxu0
  %595 = vdwg.mxu0
  %v596 = vmax.f32 %v590, 0.0
  %v597 = vmax.f32 %v593, 0.0
  %v598 = vld [vmem:[%s2 + $0x118] sm:$0xff]
  %v599 = vld [vmem:[%s2 + $0x120] sm:$0xff]
  %v600 = vld [vmem:[%s2 + $0x128] sm:$0xff]
  %v601 = vld [vmem:[%s2 + $0x130] sm:$0xff]
  %v602 = vld [vmem:[%s2 + $0x138] sm:$0xff]
  %v603 = vld [vmem:[%s2 + $0x140] sm:$0xff]
  %v604 = vld [vmem:[%s2 + $0x148] sm:$0xff]
  %v605 = vld [vmem:[%s2 + $0x150] sm:$0xff]
  %v606 = vld [vmem:[%s2 + $0x158] sm:$0xff]
  %v607 = vld [vmem:[%s2 + $0x160] sm:$0xff]
  %v608 = vld [vmem:[%s2 + $0x168] sm:$0xff]
  %v609 = vld [vmem:[%s2 + $0x170] sm:$0xff]
  %v610 = vld [vmem:[%s2 + $0x178] sm:$0xff]
  %v611 = vld [vmem:[%s2 + $0x180] sm:$0xff]
  %v612 = vld [vmem:[%s2 + $0x188] sm:$0xff]
  %v613 = vld [vmem:[%s2 + $0x190] sm:$0xff]
  %v614 = vpack.c.bf16 %v597, %v596
  %v615 = vpack.c.bf16 %v599, %v598
  %v616 = vpack.c.bf16 %v601, %v600
  %v617 = vpack.c.bf16 %v603, %v602
  %v618 = vpack.c.bf16 %v605, %v604
  %v619 = vpack.c.bf16 %v607, %v606
  %v620 = vpack.c.bf16 %v609, %v608
  %v621 = vpack.c.bf16 %v611, %v610
  %v622 = vpack.c.bf16 %v613, %v612
  %v623 = vld [vmem:[%s2 + $0x198] sm:$0x1]
  %v624 = vlaneseq
  %v625 = vshrl.u32 %v624, 7
  %v626 = vsub.s32 0, %v625
  %v627 = vrot.slane %v623, %v626
  %628 = vmatprep.subr.bf16.mxu0 0
  %629 = vmatpush1.bf16.msra.mxu0 %v615
  %630 = vmatprep.subr.bf16.mxu0 0
  %631 = vmatpush1.bf16.msra.mxu0 %v616
  %632 = vmatprep.subr.bf16.mxu0 0
  %633 = vmatpush1.bf16.msra.mxu0 %v617
  %634 = vmatprep.subr.bf16.mxu0 0
  %635 = vmatpush1.bf16.msra.mxu0 %v618
  %636 = vmatprep.subr.bf16.mxu0 0
  %637 = vmatpush1.bf16.msra.mxu0 %v619
  %638 = vmatprep.subr.bf16.mxu0 0
  %639 = vmatpush1.bf16.msra.mxu0 %v620
  %640 = vmatprep.subr.bf16.mxu0 0
  %641 = vmatpush1.bf16.msra.mxu0 %v621
  %642 = vmatprep.subr.bf16.mxu0 0
  %643 = vmatpush1.bf16.msra.mxu0 %v622
  %644 = vmatprep.subr.bf16.mxu0 0
  %645 = vmatpush1.bf16.msra.mxu0 0
  %646 = vmatprep.subr.bf16.mxu0 0
  %647 = vmatpush1.bf16.msra.mxu0 0
  %648 = vmatprep.subr.bf16.mxu0 0
  %649 = vmatpush1.bf16.msra.mxu0 0
  %650 = vmatprep.subr.bf16.mxu0 0
  %651 = vmatpush1.bf16.msra.mxu0 0
  %652 = vmatprep.subr.bf16.mxu0 0
  %653 = vmatpush1.bf16.msra.mxu0 0
  %654 = vmatprep.subr.bf16.mxu0 0
  %655 = vmatpush1.bf16.msra.mxu0 0
  %656 = vmatprep.subr.bf16.mxu0 0
  %657 = vmatpush1.bf16.msra.mxu0 0
  %658 = vmatprep.subr.bf16.mxu0 0
  %659 = vmatpush1.bf16.msra.mxu0 0
  %660 = vmatprep.mubr.bf16.mxu0 0
  %661 = vmatmul.mubr.bf16.gmra.mrb[0].mxu0 %v614
  %v662 = vpop.f32.mrb[0].mxu0
  %v663 = vadd.f32 %v627, %v662
  %v664 = vpop.f32.mrb[0].mxu0
  %v665 = vpop.f32.mrb[0].mxu0
  %v666 = vadd.f32 %v627, %v665
  %v667 = vpop.f32.mrb[0].mxu0
  %668 = vdwg.mxu0
  %v669 = vadd.f32 %v538, %v663
  %v670 = vadd.f32 %v539, %v666
  %v671 = vld [vmem:[%s2 + $0xe8] sm:$0x3]
  %v672 = vsel %vm119, %v669, 0.0
  %673 = vadd.xlane.f32.xlu0 %v672
  %v674 = vpop.xlane.xlu0 %673
  %v675 = vsel %vm119, %v670, 0.0
  %676 = vadd.xlane.f32.xlu0 %v675
  %v677 = vpop.xlane.xlu0 %676
  %v678 = vmul.f32 %v674, %v507
  %v679 = vmul.f32 %v677, %v507
  %v680 = vsub.f32 %v669, %v678
  %v681 = vsub.f32 %v670, %v679
  %v682 = vmul.f32 %v680, %v680
  %v683 = vmul.f32 %v681, %v681
  %v684 = vsel %vm119, %v682, 0.0
  %685 = vadd.xlane.f32.xlu0 %v684
  %v686 = vpop.xlane.xlu0 %685
  %v687 = vsel %vm119, %v683, 0.0
  %688 = vadd.xlane.f32.xlu0 %v687
  %v689 = vpop.xlane.xlu0 %688
  %v690 = vmul.f32 %v686, %v507
  %v691 = vmul.f32 %v689, %v507
  %v692 = vadd.f32 %v690, 1e-05
  %v693 = vadd.f32 %v691, 1e-05
  %v694 = vrsqrt.pop %v692
  %v695 = vrsqrt.pop %v693
  %v696 = vmul.f32 %v680, %v694
  %v697 = vmul.f32 %v681, %v695
  %v698 = vlaneseq
  %v699 = vshrl.u32 %v698, 7
  %v700 = vsub.s32 0, %v699
  %v701 = vrot.slane %v671, %v700
  %v702 = vmul.f32 %v696, %v701
  %v703 = vmul.f32 %v697, %v701
  %v704 = vlaneseq
  %v705 = vshrl.u32 %v704, 7
  %v706 = vsub.s32 1, %v705
  %v707 = vrot.slane %v671, %v706
  %v708 = vadd.f32 %v702, %v707
  %v709 = vadd.f32 %v703, %v707
  %v710 = vld [vmem:[%s2 + $0x1a0] sm:$0xff]
  %v711 = vld [vmem:[%s2 + $0x1a8] sm:$0xff]
  %v712 = vld [vmem:[%s2 + $0x1b0] sm:$0xff]
  %v713 = vld [vmem:[%s2 + $0x1b8] sm:$0xff]
  %v714 = vpack.c.bf16 %v709, %v708
  %v715 = vpack.c.bf16 %v711, %v710
  %v716 = vpack.c.bf16 %v713, %v712
  %v717 = vld [vmem:[%s2 + $0x1c0] sm:$0x1]
  %v718 = vlaneseq
  %v719 = vshrl.u32 %v718, 7
  %v720 = vsub.s32 0, %v719
  %v721 = vrot.slane %v717, %v720
  %v723 = vsel %vm119, %v714, 0
  %725 = vmatprep.subr.bf16.mxu0 0
  %726 = vmatpush1.bf16.msra.mxu0 %v715
  %727 = vmatprep.subr.bf16.mxu0 0
  %728 = vmatpush1.bf16.msra.mxu0 %v716
  %729 = vmatprep.subr.bf16.mxu0 0
  %730 = vmatpush1.bf16.msra.mxu0 0
  %731 = vmatprep.subr.bf16.mxu0 0
  %732 = vmatpush1.bf16.msra.mxu0 0
  %733 = vmatprep.subr.bf16.mxu0 0
  %734 = vmatpush1.bf16.msra.mxu0 0
  %735 = vmatprep.subr.bf16.mxu0 0
  %736 = vmatpush1.bf16.msra.mxu0 0
  %737 = vmatprep.subr.bf16.mxu0 0
  %738 = vmatpush1.bf16.msra.mxu0 0
  %739 = vmatprep.subr.bf16.mxu0 0
  %740 = vmatpush1.bf16.msra.mxu0 0
  %741 = vmatprep.subr.bf16.mxu0 0
  %742 = vmatpush1.bf16.msra.mxu0 0
  %743 = vmatprep.subr.bf16.mxu0 0
  %744 = vmatpush1.bf16.msra.mxu0 0
  %745 = vmatprep.subr.bf16.mxu0 0
  %746 = vmatpush1.bf16.msra.mxu0 0
  %747 = vmatprep.subr.bf16.mxu0 0
  %748 = vmatpush1.bf16.msra.mxu0 0
  %749 = vmatprep.subr.bf16.mxu0 0
  %750 = vmatpush1.bf16.msra.mxu0 0
  %751 = vmatprep.subr.bf16.mxu0 0
  %752 = vmatpush1.bf16.msra.mxu0 0
  %753 = vmatprep.subr.bf16.mxu0 0
  %754 = vmatpush1.bf16.msra.mxu0 0
  %755 = vmatprep.subr.bf16.mxu0 0
  %756 = vmatpush1.bf16.msra.mxu0 0
  %757 = vmatprep.mubr.bf16.mxu0 0
  %758 = vmatmul.mubr.bf16.gmra.mrb[0].mxu0 %v723
  %v759 = vpop.f32.mrb[0].mxu0
  %v760 = vadd.f32 %v721, %v759
  %v761 = vpop.f32.mrb[0].mxu0
  %v762 = vpop.f32.mrb[0].mxu0
  %v763 = vadd.f32 %v721, %v762
  %v764 = vpop.f32.mrb[0].mxu0
  %765 = vdwg.mxu0
  %v766 = vld [vmem:[%s2 + $0x1c8] sm:$0xff]
  %v767 = vld [vmem:[%s2 + $0x1d0] sm:$0xff]
  %v768 = vld [vmem:[%s2 + $0x1d8] sm:$0xff]
  %v769 = vld [vmem:[%s2 + $0x1e0] sm:$0xff]
  %v770 = vld [vmem:[%s2 + $0x1e8] sm:$0x1]
  %v771 = vmul.f32 %v760, %v178
  %v772 = vmul.f32 %v763, %v180
  %v773 = vmul.f32 %v760, %v182
  %v774 = vmul.f32 %v763, %v184
  %v775 = vmul.f32 %v760, %v186
  %v776 = vmul.f32 %v763, %v188
  %v777 = vmul.f32 %v760, %v190
  %v778 = vmul.f32 %v763, %v192
  %v779 = vmul.f32 %v760, %v210
  %v780 = vmul.f32 %v763, %v212
  %v781 = vmul.f32 %v760, %v214
  %v782 = vmul.f32 %v763, %v216
  %v783 = vmul.f32 %v760, %v218
  %v784 = vmul.f32 %v763, %v220
  %v785 = vmul.f32 %v760, %v222
  %v786 = vmul.f32 %v763, %v224
  %v787 = vpack.c.bf16 %v763, %v760
  %v788 = vpack.c.bf16 %v772, %v771
  %v789 = vpack.c.bf16 %v774, %v773
  %v790 = vpack.c.bf16 %v776, %v775
  %v791 = vpack.c.bf16 %v778, %v777
  %796 = vrot.lane.b32.xlu0 %v788, 96
  %v797 = vpop.permute.xlu0 %796
  %798 = vrot.lane.b32.xlu0 %v789, 96
  %v799 = vpop.permute.xlu0 %798
  %800 = vrot.lane.b32.xlu0 %v790, 96
  %v801 = vpop.permute.xlu0 %800
  %802 = vrot.lane.b32.xlu0 %v791, 96
  %v803 = vpop.permute.xlu0 %802
  %v805 = vsel %vm119, %v787, 0
  %v808 = vsel %vm119, %v797, 0
  %v811 = vsel %vm119, %v799, 0
  %v814 = vsel %vm119, %v801, 0
  %v817 = vsel %vm119, %v803, 0
  %819 = vmatprep.subr.bf16.mxu0 0
  %820 = vmatpush1.bf16.xpose.msra.mxu0 %v808
  %821 = vmatprep.subr.bf16.mxu0 0
  %822 = vmatpush1.bf16.xpose.msra.mxu0 %v811
  %823 = vmatprep.subr.bf16.mxu0 0
  %824 = vmatpush1.bf16.xpose.msra.mxu0 %v814
  %825 = vmatprep.subr.bf16.mxu0 0
  %826 = vmatpush1.bf16.xpose.msra.mxu0 %v817
  %827 = vmatprep.subr.bf16.mxu0 0
  %828 = vmatpush1.bf16.xpose.msra.mxu0 0
  %829 = vmatprep.subr.bf16.mxu0 0
  %830 = vmatpush1.bf16.xpose.msra.mxu0 0
  %831 = vmatprep.subr.bf16.mxu0 0
  %832 = vmatpush1.bf16.xpose.msra.mxu0 0
  %833 = vmatprep.subr.bf16.mxu0 0
  %834 = vmatpush1.bf16.xpose.msra.mxu0 0
  %835 = vmatprep.subr.bf16.mxu0 0
  %836 = vmatpush1.bf16.xpose.msra.mxu0 0
  %837 = vmatprep.subr.bf16.mxu0 0
  %838 = vmatpush1.bf16.xpose.msra.mxu0 0
  %839 = vmatprep.subr.bf16.mxu0 0
  %840 = vmatpush1.bf16.xpose.msra.mxu0 0
  %841 = vmatprep.subr.bf16.mxu0 0
  %842 = vmatpush1.bf16.xpose.msra.mxu0 0
  %843 = vmatprep.subr.bf16.mxu0 0
  %844 = vmatpush1.bf16.xpose.msra.mxu0 0
  %845 = vmatprep.subr.bf16.mxu0 0
  %846 = vmatpush1.bf16.xpose.msra.mxu0 0
  %847 = vmatprep.subr.bf16.mxu0 0
  %848 = vmatpush1.bf16.xpose.msra.mxu0 0
  %849 = vmatprep.subr.bf16.mxu0 0
  %850 = vmatpush1.bf16.xpose.msra.mxu0 0
  %851 = vmatprep.mubr.bf16.mxu0 0
  %852 = vmatmul.mubr.bf16.gmra.mrb[0].mxu0 %v805
  %v853 = vpop.f32.mrb[0].mxu0
  %v854 = vadd.f32 0.0, %v853
  %v855 = vpop.f32.mrb[0].mxu0
  %v856 = vpop.f32.mrb[0].mxu0
  %v857 = vadd.f32 0.0, %v856
  %v858 = vpop.f32.mrb[0].mxu0
  %859 = vdwg.mxu0
  %v860 = vmul.f32 %v854, 0.35355338
  %v861 = vmul.f32 %v857, 0.35355338
  %v862 = vadd.f32 %v860, %v23
  %v863 = vadd.f32 %v861, %v24
  %v864 = vsel %vm318, %v862, -inf
  %865 = vmax.xlane.f32.xlu0 %v864
  %v866 = vpop.xlane.xlu0 %865
  %v867 = vsel %vm318, %v863, -inf
  %868 = vmax.xlane.f32.xlu0 %v867
  %v869 = vpop.xlane.xlu0 %868
  %v870 = vsub.f32 %v862, %v866
  %v871 = vsub.f32 %v863, %v869
  %v872 = vmul.f32 %v870, 1.442695
  %v873 = vpow.pop %v872
  %v874 = vmul.f32 %v871, 1.442695
  %v875 = vpow.pop %v874
  %v876 = vpack.c.bf16 %v875, %v873
  %v878 = vsel %vm318, %v876, 0
  %880 = vmatprep.subr.bf16.mxu0 0
  %881 = vmatpush1.bf16.msra.mxu0 %v33
  %882 = vmatprep.subr.bf16.mxu0 0
  %883 = vmatpush1.bf16.msra.mxu0 %v34
  %884 = vmatprep.subr.bf16.mxu0 0
  %885 = vmatpush1.bf16.msra.mxu0 %v35
  %886 = vmatprep.subr.bf16.mxu0 0
  %887 = vmatpush1.bf16.msra.mxu0 %v36
  %888 = vmatprep.subr.bf16.mxu0 0
  %889 = vmatpush1.bf16.msra.mxu0 0
  %890 = vmatprep.subr.bf16.mxu0 0
  %891 = vmatpush1.bf16.msra.mxu0 0
  %892 = vmatprep.subr.bf16.mxu0 0
  %893 = vmatpush1.bf16.msra.mxu0 0
  %894 = vmatprep.subr.bf16.mxu0 0
  %895 = vmatpush1.bf16.msra.mxu0 0
  %896 = vmatprep.subr.bf16.mxu0 0
  %897 = vmatpush1.bf16.msra.mxu0 0
  %898 = vmatprep.subr.bf16.mxu0 0
  %899 = vmatpush1.bf16.msra.mxu0 0
  %900 = vmatprep.subr.bf16.mxu0 0
  %901 = vmatpush1.bf16.msra.mxu0 0
  %902 = vmatprep.subr.bf16.mxu0 0
  %903 = vmatpush1.bf16.msra.mxu0 0
  %904 = vmatprep.subr.bf16.mxu0 0
  %905 = vmatpush1.bf16.msra.mxu0 0
  %906 = vmatprep.subr.bf16.mxu0 0
  %907 = vmatpush1.bf16.msra.mxu0 0
  %908 = vmatprep.subr.bf16.mxu0 0
  %909 = vmatpush1.bf16.msra.mxu0 0
  %910 = vmatprep.subr.bf16.mxu0 0
  %911 = vmatpush1.bf16.msra.mxu0 0
  %912 = vmatprep.mubr.bf16.mxu0 0
  %913 = vmatmul.mubr.bf16.gmra.mrb[0].mxu0 %v878
  %v914 = vpop.f32.mrb[0].mxu0
  %v915 = vadd.f32 0.0, %v914
  %v916 = vpop.f32.mrb[0].mxu0
  %v917 = vpop.f32.mrb[0].mxu0
  %v918 = vadd.f32 0.0, %v917
  %v919 = vpop.f32.mrb[0].mxu0
  %920 = vdwg.mxu0
  %v921 = vmax.f32 %v915, 1e-30
  %v922 = vmax.f32 %v918, 1e-30
  %v923 = vrcp.pop %v921
  %v924 = vrcp.pop %v922
  %v925 = vmul.f32 %v873, %v923
  %v926 = vmul.f32 %v875, %v924
  %v927 = vpack.c.bf16 %v926, %v925
  %v928 = vpack.c.bf16 %v780, %v779
  %v929 = vpack.c.bf16 %v782, %v781
  %v930 = vpack.c.bf16 %v784, %v783
  %v931 = vpack.c.bf16 %v786, %v785
  %936 = vrot.lane.b32.xlu0 %v928, 64
  %v937 = vpop.permute.xlu0 %936
  %938 = vrot.lane.b32.xlu0 %v929, 64
  %v939 = vpop.permute.xlu0 %938
  %940 = vrot.lane.b32.xlu0 %v930, 64
  %v941 = vpop.permute.xlu0 %940
  %942 = vrot.lane.b32.xlu0 %v931, 64
  %v943 = vpop.permute.xlu0 %942
  %v949 = vsel %vm318, %v927, 0
  %951 = vmatprep.subr.bf16.mxu0 0
  %952 = vmatpush1.bf16.msra.mxu0 %v937
  %953 = vmatprep.subr.bf16.mxu0 0
  %954 = vmatpush1.bf16.msra.mxu0 %v939
  %955 = vmatprep.subr.bf16.mxu0 0
  %956 = vmatpush1.bf16.msra.mxu0 %v941
  %957 = vmatprep.subr.bf16.mxu0 0
  %958 = vmatpush1.bf16.msra.mxu0 %v943
  %959 = vmatprep.subr.bf16.mxu0 0
  %960 = vmatpush1.bf16.msra.mxu0 0
  %961 = vmatprep.subr.bf16.mxu0 0
  %962 = vmatpush1.bf16.msra.mxu0 0
  %963 = vmatprep.subr.bf16.mxu0 0
  %964 = vmatpush1.bf16.msra.mxu0 0
  %965 = vmatprep.subr.bf16.mxu0 0
  %966 = vmatpush1.bf16.msra.mxu0 0
  %967 = vmatprep.subr.bf16.mxu0 0
  %968 = vmatpush1.bf16.msra.mxu0 0
  %969 = vmatprep.subr.bf16.mxu0 0
  %970 = vmatpush1.bf16.msra.mxu0 0
  %971 = vmatprep.subr.bf16.mxu0 0
  %972 = vmatpush1.bf16.msra.mxu0 0
  %973 = vmatprep.subr.bf16.mxu0 0
  %974 = vmatpush1.bf16.msra.mxu0 0
  %975 = vmatprep.subr.bf16.mxu0 0
  %976 = vmatpush1.bf16.msra.mxu0 0
  %977 = vmatprep.subr.bf16.mxu0 0
  %978 = vmatpush1.bf16.msra.mxu0 0
  %979 = vmatprep.subr.bf16.mxu0 0
  %980 = vmatpush1.bf16.msra.mxu0 0
  %981 = vmatprep.subr.bf16.mxu0 0
  %982 = vmatpush1.bf16.msra.mxu0 0
  %983 = vmatprep.mubr.bf16.mxu0 0
  %984 = vmatmul.mubr.bf16.gmra.mrb[0].mxu0 %v949
  %v985 = vpop.f32.mrb[0].mxu0
  %v986 = vadd.f32 0.0, %v985
  %v987 = vpop.f32.mrb[0].mxu0
  %v988 = vpop.f32.mrb[0].mxu0
  %v989 = vadd.f32 0.0, %v988
  %v990 = vpop.f32.mrb[0].mxu0
  %991 = vdwg.mxu0
  %v992 = vpack.c.bf16 %v989, %v986
  %v993 = vpack.c.bf16 %v767, %v766
  %v994 = vpack.c.bf16 %v769, %v768
  %v995 = vlaneseq
  %v996 = vshrl.u32 %v995, 7
  %v997 = vsub.s32 0, %v996
  %v998 = vrot.slane %v770, %v997
  %v1000 = vsel %vm119, %v992, 0
  %1002 = vmatprep.subr.bf16.mxu0 0
  %1003 = vmatpush1.bf16.msra.mxu0 %v993
  %1004 = vmatprep.subr.bf16.mxu0 0
  %1005 = vmatpush1.bf16.msra.mxu0 %v994
  %1006 = vmatprep.subr.bf16.mxu0 0
  %1007 = vmatpush1.bf16.msra.mxu0 0
  %1008 = vmatprep.subr.bf16.mxu0 0
  %1009 = vmatpush1.bf16.msra.mxu0 0
  %1010 = vmatprep.subr.bf16.mxu0 0
  %1011 = vmatpush1.bf16.msra.mxu0 0
  %1012 = vmatprep.subr.bf16.mxu0 0
  %1013 = vmatpush1.bf16.msra.mxu0 0
  %1014 = vmatprep.subr.bf16.mxu0 0
  %1015 = vmatpush1.bf16.msra.mxu0 0
  %1016 = vmatprep.subr.bf16.mxu0 0
  %1017 = vmatpush1.bf16.msra.mxu0 0
  %1018 = vmatprep.subr.bf16.mxu0 0
  %1019 = vmatpush1.bf16.msra.mxu0 0
  %1020 = vmatprep.subr.bf16.mxu0 0
  %1021 = vmatpush1.bf16.msra.mxu0 0
  %1022 = vmatprep.subr.bf16.mxu0 0
  %1023 = vmatpush1.bf16.msra.mxu0 0
  %1024 = vmatprep.subr.bf16.mxu0 0
  %1025 = vmatpush1.bf16.msra.mxu0 0
  %1026 = vmatprep.subr.bf16.mxu0 0
  %1027 = vmatpush1.bf16.msra.mxu0 0
  %1028 = vmatprep.subr.bf16.mxu0 0
  %1029 = vmatpush1.bf16.msra.mxu0 0
  %1030 = vmatprep.subr.bf16.mxu0 0
  %1031 = vmatpush1.bf16.msra.mxu0 0
  %1032 = vmatprep.subr.bf16.mxu0 0
  %1033 = vmatpush1.bf16.msra.mxu0 0
  %1034 = vmatprep.mubr.bf16.mxu0 0
  %1035 = vmatmul.mubr.bf16.gmra.mrb[0].mxu0 %v1000
  %v1036 = vpop.f32.mrb[0].mxu0
  %v1037 = vadd.f32 %v998, %v1036
  %v1038 = vpop.f32.mrb[0].mxu0
  %v1039 = vpop.f32.mrb[0].mxu0
  %v1040 = vadd.f32 %v998, %v1039
  %v1041 = vpop.f32.mrb[0].mxu0
  %1042 = vdwg.mxu0
  %v1043 = vadd.f32 %v708, %v1037
  %v1044 = vadd.f32 %v709, %v1040
  %v1045 = vld [vmem:[%s2 + $0x1f0] sm:$0x3]
  %v1046 = vsel %vm119, %v1043, 0.0
  %1047 = vadd.xlane.f32.xlu0 %v1046
  %v1048 = vpop.xlane.xlu0 %1047
  %v1049 = vsel %vm119, %v1044, 0.0
  %1050 = vadd.xlane.f32.xlu0 %v1049
  %v1051 = vpop.xlane.xlu0 %1050
  %v1052 = vmul.f32 %v1048, %v507
  %v1053 = vmul.f32 %v1051, %v507
  %v1054 = vsub.f32 %v1043, %v1052
  %v1055 = vsub.f32 %v1044, %v1053
  %v1056 = vmul.f32 %v1054, %v1054
  %v1057 = vmul.f32 %v1055, %v1055
  %v1058 = vsel %vm119, %v1056, 0.0
  %1059 = vadd.xlane.f32.xlu0 %v1058
  %v1060 = vpop.xlane.xlu0 %1059
  %v1061 = vsel %vm119, %v1057, 0.0
  %1062 = vadd.xlane.f32.xlu0 %v1061
  %v1063 = vpop.xlane.xlu0 %1062
  %v1064 = vmul.f32 %v1060, %v507
  %v1065 = vmul.f32 %v1063, %v507
  %v1066 = vadd.f32 %v1064, 1e-05
  %v1067 = vadd.f32 %v1065, 1e-05
  %v1068 = vrsqrt.pop %v1066
  %v1069 = vrsqrt.pop %v1067
  %v1070 = vmul.f32 %v1054, %v1068
  %v1071 = vmul.f32 %v1055, %v1069
  %v1072 = vlaneseq
  %v1073 = vshrl.u32 %v1072, 7
  %v1074 = vsub.s32 0, %v1073
  %v1075 = vrot.slane %v1045, %v1074
  %v1076 = vmul.f32 %v1070, %v1075
  %v1077 = vmul.f32 %v1071, %v1075
  %v1078 = vlaneseq
  %v1079 = vshrl.u32 %v1078, 7
  %v1080 = vsub.s32 1, %v1079
  %v1081 = vrot.slane %v1045, %v1080
  %v1082 = vadd.f32 %v1076, %v1081
  %v1083 = vadd.f32 %v1077, %v1081
  %v1084 = vld [vmem:[%s2 + $0x200] sm:$0xff]
  %v1085 = vld [vmem:[%s2 + $0x208] sm:$0xff]
  %v1086 = vld [vmem:[%s2 + $0x210] sm:$0xff]
  %v1087 = vld [vmem:[%s2 + $0x218] sm:$0xff]
  %v1088 = vpack.c.bf16 %v1083, %v1082
  %v1089 = vpack.c.bf16 %v1085, %v1084
  %v1090 = vpack.c.bf16 %v1087, %v1086
  %v1091 = vld [vmem:[%s2 + $0x220] sm:$0x1]
  %v1092 = vlaneseq
  %v1093 = vshrl.u32 %v1092, 7
  %v1094 = vsub.s32 0, %v1093
  %v1095 = vrot.slane %v1091, %v1094
  %v1097 = vsel %vm119, %v1088, 0
  %1099 = vmatprep.subr.bf16.mxu0 0
  %1100 = vmatpush1.bf16.msra.mxu0 %v1089
  %1101 = vmatprep.subr.bf16.mxu0 0
  %1102 = vmatpush1.bf16.msra.mxu0 %v1090
  %1103 = vmatprep.subr.bf16.mxu0 0
  %1104 = vmatpush1.bf16.msra.mxu0 0
  %1105 = vmatprep.subr.bf16.mxu0 0
  %1106 = vmatpush1.bf16.msra.mxu0 0
  %1107 = vmatprep.subr.bf16.mxu0 0
  %1108 = vmatpush1.bf16.msra.mxu0 0
  %1109 = vmatprep.subr.bf16.mxu0 0
  %1110 = vmatpush1.bf16.msra.mxu0 0
  %1111 = vmatprep.subr.bf16.mxu0 0
  %1112 = vmatpush1.bf16.msra.mxu0 0
  %1113 = vmatprep.subr.bf16.mxu0 0
  %1114 = vmatpush1.bf16.msra.mxu0 0
  %1115 = vmatprep.subr.bf16.mxu0 0
  %1116 = vmatpush1.bf16.msra.mxu0 0
  %1117 = vmatprep.subr.bf16.mxu0 0
  %1118 = vmatpush1.bf16.msra.mxu0 0
  %1119 = vmatprep.subr.bf16.mxu0 0
  %1120 = vmatpush1.bf16.msra.mxu0 0
  %1121 = vmatprep.subr.bf16.mxu0 0
  %1122 = vmatpush1.bf16.msra.mxu0 0
  %1123 = vmatprep.subr.bf16.mxu0 0
  %1124 = vmatpush1.bf16.msra.mxu0 0
  %1125 = vmatprep.subr.bf16.mxu0 0
  %1126 = vmatpush1.bf16.msra.mxu0 0
  %1127 = vmatprep.subr.bf16.mxu0 0
  %1128 = vmatpush1.bf16.msra.mxu0 0
  %1129 = vmatprep.subr.bf16.mxu0 0
  %1130 = vmatpush1.bf16.msra.mxu0 0
  %1131 = vmatprep.mubr.bf16.mxu0 0
  %1132 = vmatmul.mubr.bf16.gmra.mrb[0].mxu0 %v1097
  %v1133 = vpop.f32.mrb[0].mxu0
  %v1134 = vadd.f32 %v1095, %v1133
  %v1135 = vpop.f32.mrb[0].mxu0
  %v1136 = vpop.f32.mrb[0].mxu0
  %v1137 = vadd.f32 %v1095, %v1136
  %v1138 = vpop.f32.mrb[0].mxu0
  %1139 = vdwg.mxu0
  %v1140 = vmax.f32 %v1134, 0.0
  %v1141 = vmax.f32 %v1137, 0.0
  %v1142 = vld [vmem:[%s2 + $0x228] sm:$0xff]
  %v1143 = vld [vmem:[%s2 + $0x230] sm:$0xff]
  %v1144 = vld [vmem:[%s2 + $0x238] sm:$0xff]
  %v1145 = vld [vmem:[%s2 + $0x240] sm:$0xff]
  %v1146 = vld [vmem:[%s2 + $0x248] sm:$0xff]
  %v1147 = vld [vmem:[%s2 + $0x250] sm:$0xff]
  %v1148 = vld [vmem:[%s2 + $0x258] sm:$0xff]
  %v1149 = vld [vmem:[%s2 + $0x260] sm:$0xff]
  %v1150 = vld [vmem:[%s2 + $0x268] sm:$0xff]
  %v1151 = vld [vmem:[%s2 + $0x270] sm:$0xff]
  %v1152 = vld [vmem:[%s2 + $0x278] sm:$0xff]
  %v1153 = vld [vmem:[%s2 + $0x280] sm:$0xff]
  %v1154 = vld [vmem:[%s2 + $0x288] sm:$0xff]
  %v1155 = vld [vmem:[%s2 + $0x290] sm:$0xff]
  %v1156 = vld [vmem:[%s2 + $0x298] sm:$0xff]
  %v1157 = vld [vmem:[%s2 + $0x2a0] sm:$0xff]
  %v1158 = vpack.c.bf16 %v1141, %v1140
  %v1159 = vpack.c.bf16 %v1143, %v1142
  %v1160 = vpack.c.bf16 %v1145, %v1144
  %v1161 = vpack.c.bf16 %v1147, %v1146
  %v1162 = vpack.c.bf16 %v1149, %v1148
  %v1163 = vpack.c.bf16 %v1151, %v1150
  %v1164 = vpack.c.bf16 %v1153, %v1152
  %v1165 = vpack.c.bf16 %v1155, %v1154
  %v1166 = vpack.c.bf16 %v1157, %v1156
  %v1167 = vld [vmem:[%s2 + $0x2a8] sm:$0x1]
  %v1168 = vlaneseq
  %v1169 = vshrl.u32 %v1168, 7
  %v1170 = vsub.s32 0, %v1169
  %v1171 = vrot.slane %v1167, %v1170
  %1172 = vmatprep.subr.bf16.mxu0 0
  %1173 = vmatpush1.bf16.msra.mxu0 %v1159
  %1174 = vmatprep.subr.bf16.mxu0 0
  %1175 = vmatpush1.bf16.msra.mxu0 %v1160
  %1176 = vmatprep.subr.bf16.mxu0 0
  %1177 = vmatpush1.bf16.msra.mxu0 %v1161
  %1178 = vmatprep.subr.bf16.mxu0 0
  %1179 = vmatpush1.bf16.msra.mxu0 %v1162
  %1180 = vmatprep.subr.bf16.mxu0 0
  %1181 = vmatpush1.bf16.msra.mxu0 %v1163
  %1182 = vmatprep.subr.bf16.mxu0 0
  %1183 = vmatpush1.bf16.msra.mxu0 %v1164
  %1184 = vmatprep.subr.bf16.mxu0 0
  %1185 = vmatpush1.bf16.msra.mxu0 %v1165
  %1186 = vmatprep.subr.bf16.mxu0 0
  %1187 = vmatpush1.bf16.msra.mxu0 %v1166
  %1188 = vmatprep.subr.bf16.mxu0 0
  %1189 = vmatpush1.bf16.msra.mxu0 0
  %1190 = vmatprep.subr.bf16.mxu0 0
  %1191 = vmatpush1.bf16.msra.mxu0 0
  %1192 = vmatprep.subr.bf16.mxu0 0
  %1193 = vmatpush1.bf16.msra.mxu0 0
  %1194 = vmatprep.subr.bf16.mxu0 0
  %1195 = vmatpush1.bf16.msra.mxu0 0
  %1196 = vmatprep.subr.bf16.mxu0 0
  %1197 = vmatpush1.bf16.msra.mxu0 0
  %1198 = vmatprep.subr.bf16.mxu0 0
  %1199 = vmatpush1.bf16.msra.mxu0 0
  %1200 = vmatprep.subr.bf16.mxu0 0
  %1201 = vmatpush1.bf16.msra.mxu0 0
  %1202 = vmatprep.subr.bf16.mxu0 0
  %1203 = vmatpush1.bf16.msra.mxu0 0
  %1204 = vmatprep.mubr.bf16.mxu0 0
  %1205 = vmatmul.mubr.bf16.gmra.mrb[0].mxu0 %v1158
  %v1206 = vpop.f32.mrb[0].mxu0
  %v1207 = vadd.f32 %v1171, %v1206
  %v1208 = vpop.f32.mrb[0].mxu0
  %v1209 = vpop.f32.mrb[0].mxu0
  %v1210 = vadd.f32 %v1171, %v1209
  %v1211 = vpop.f32.mrb[0].mxu0
  %1212 = vdwg.mxu0
  %v1213 = vadd.f32 %v1082, %v1207
  %v1214 = vadd.f32 %v1083, %v1210
  %v1215 = vld [vmem:[%s2 + $0x1f8] sm:$0x3]
  %v1216 = vsel %vm119, %v1213, 0.0
  %1217 = vadd.xlane.f32.xlu0 %v1216
  %v1218 = vpop.xlane.xlu0 %1217
  %v1219 = vsel %vm119, %v1214, 0.0
  %1220 = vadd.xlane.f32.xlu0 %v1219
  %v1221 = vpop.xlane.xlu0 %1220
  %v1222 = vmul.f32 %v1218, %v507
  %v1223 = vmul.f32 %v1221, %v507
  %v1224 = vsub.f32 %v1213, %v1222
  %v1225 = vsub.f32 %v1214, %v1223
  %v1226 = vmul.f32 %v1224, %v1224
  %v1227 = vmul.f32 %v1225, %v1225
  %v1228 = vsel %vm119, %v1226, 0.0
  %1229 = vadd.xlane.f32.xlu0 %v1228
  %v1230 = vpop.xlane.xlu0 %1229
  %v1231 = vsel %vm119, %v1227, 0.0
  %1232 = vadd.xlane.f32.xlu0 %v1231
  %v1233 = vpop.xlane.xlu0 %1232
  %v1234 = vmul.f32 %v1230, %v507
  %v1235 = vmul.f32 %v1233, %v507
  %v1236 = vadd.f32 %v1234, 1e-05
  %v1237 = vadd.f32 %v1235, 1e-05
  %v1238 = vrsqrt.pop %v1236
  %v1239 = vrsqrt.pop %v1237
  %v1240 = vmul.f32 %v1224, %v1238
  %v1241 = vmul.f32 %v1225, %v1239
  %v1242 = vlaneseq
  %v1243 = vshrl.u32 %v1242, 7
  %v1244 = vsub.s32 0, %v1243
  %v1245 = vrot.slane %v1215, %v1244
  %v1246 = vmul.f32 %v1240, %v1245
  %v1247 = vmul.f32 %v1241, %v1245
  %v1248 = vlaneseq
  %v1249 = vshrl.u32 %v1248, 7
  %v1250 = vsub.s32 1, %v1249
  %v1251 = vrot.slane %v1215, %v1250
  %v1252 = vadd.f32 %v1246, %v1251
  %v1253 = vadd.f32 %v1247, %v1251
  %v1254 = vld [vmem:[%s1] sm:$0xff]
  %v1255 = vld [vmem:[%s2 + $0x2b0] sm:$0xff]
  %v1256 = vld [vmem:[%s2 + $0x2b8] sm:$0xff]
  %v1257 = vld [vmem:[%s2 + $0x2c0] sm:$0xff]
  %v1258 = vld [vmem:[%s2 + $0x2c8] sm:$0xff]
  %v1259 = vld [vmem:[%s2 + $0x2d0] sm:$0xff]
  %v1260 = vld [vmem:[%s2 + $0x2d8] sm:$0xff]
  %v1261 = vld [vmem:[%s2 + $0x2e0] sm:$0xff]
  %v1262 = vld [vmem:[%s2 + $0x2e8] sm:$0xff]
  %v1263 = vld [vmem:[%s2 + $0x2f0] sm:$0xff]
  %v1264 = vld [vmem:[%s2 + $0x2f8] sm:$0xff]
  %v1265 = vld [vmem:[%s2 + $0x300] sm:$0xff]
  %v1266 = vld [vmem:[%s2 + $0x308] sm:$0xff]
  %v1267 = vld [vmem:[%s2 + $0x310] sm:$0xff]
  %v1268 = vld [vmem:[%s2 + $0x318] sm:$0xff]
  %v1269 = vld [vmem:[%s2 + $0x320] sm:$0xff]
  %v1270 = vld [vmem:[%s2 + $0x328] sm:$0xff]
  %v1271 = vpack.c.bf16 %v1254, %v1254
  %v1272 = vpack.c.bf16 %v1256, %v1255
  %v1273 = vpack.c.bf16 %v1258, %v1257
  %v1274 = vpack.c.bf16 %v1260, %v1259
  %v1275 = vpack.c.bf16 %v1262, %v1261
  %v1276 = vpack.c.bf16 %v1264, %v1263
  %v1277 = vpack.c.bf16 %v1266, %v1265
  %v1278 = vpack.c.bf16 %v1268, %v1267
  %v1279 = vpack.c.bf16 %v1270, %v1269
  %1280 = vmatprep.subr.bf16.mxu0 0
  %1281 = vmatpush1.bf16.msra.mxu0 %v1272
  %1282 = vmatprep.subr.bf16.mxu0 0
  %1283 = vmatpush1.bf16.msra.mxu0 %v1273
  %1284 = vmatprep.subr.bf16.mxu0 0
  %1285 = vmatpush1.bf16.msra.mxu0 %v1274
  %1286 = vmatprep.subr.bf16.mxu0 0
  %1287 = vmatpush1.bf16.msra.mxu0 %v1275
  %1288 = vmatprep.subr.bf16.mxu0 0
  %1289 = vmatpush1.bf16.msra.mxu0 %v1276
  %1290 = vmatprep.subr.bf16.mxu0 0
  %1291 = vmatpush1.bf16.msra.mxu0 %v1277
  %1292 = vmatprep.subr.bf16.mxu0 0
  %1293 = vmatpush1.bf16.msra.mxu0 %v1278
  %1294 = vmatprep.subr.bf16.mxu0 0
  %1295 = vmatpush1.bf16.msra.mxu0 %v1279
  %1296 = vmatprep.subr.bf16.mxu0 0
  %1297 = vmatpush1.bf16.msra.mxu0 0
  %1298 = vmatprep.subr.bf16.mxu0 0
  %1299 = vmatpush1.bf16.msra.mxu0 0
  %1300 = vmatprep.subr.bf16.mxu0 0
  %1301 = vmatpush1.bf16.msra.mxu0 0
  %1302 = vmatprep.subr.bf16.mxu0 0
  %1303 = vmatpush1.bf16.msra.mxu0 0
  %1304 = vmatprep.subr.bf16.mxu0 0
  %1305 = vmatpush1.bf16.msra.mxu0 0
  %1306 = vmatprep.subr.bf16.mxu0 0
  %1307 = vmatpush1.bf16.msra.mxu0 0
  %1308 = vmatprep.subr.bf16.mxu0 0
  %1309 = vmatpush1.bf16.msra.mxu0 0
  %1310 = vmatprep.subr.bf16.mxu0 0
  %1311 = vmatpush1.bf16.msra.mxu0 0
  %1312 = vmatprep.mubr.bf16.mxu0 0
  %1313 = vmatmul.mubr.bf16.gmra.mrb[0].mxu0 %v1271
  %v1314 = vpop.f32.mrb[0].mxu0
  %v1315 = vadd.f32 0.0, %v1314
  %v1316 = vpop.f32.mrb[0].mxu0
  %v1317 = vpop.f32.mrb[0].mxu0
  %v1318 = vpop.f32.mrb[0].mxu0
  %1319 = vdwg.mxu0
  %v1320 = vld [vmem:[%s2 + $0x340] sm:$0xff]
  %v1321 = vld [vmem:[%s2 + $0x348] sm:$0xff]
  %v1322 = vpack.c.bf16 %v1321, %v1320
  %v1323 = vpack.c.bf16 %v1315, %v1315
  %vm1324 = vcmask 64512
  %v1326 = vsel %vm1324, %v1322, 0
  %vm1328 = vcmask 1043456
  %v1330 = vsel %vm1328, %v1323, 0
  %1332 = vmatprep.subr.bf16.mxu0 0
  %1333 = vmatpush1.bf16.msra.mxu0 %v1330
  %1334 = vmatprep.subr.bf16.mxu0 0
  %1335 = vmatpush1.bf16.msra.mxu0 0
  %1336 = vmatprep.subr.bf16.mxu0 0
  %1337 = vmatpush1.bf16.msra.mxu0 0
  %1338 = vmatprep.subr.bf16.mxu0 0
  %1339 = vmatpush1.bf16.msra.mxu0 0
  %1340 = vmatprep.subr.bf16.mxu0 0
  %1341 = vmatpush1.bf16.msra.mxu0 0
  %1342 = vmatprep.subr.bf16.mxu0 0
  %1343 = vmatpush1.bf16.msra.mxu0 0
  %1344 = vmatprep.subr.bf16.mxu0 0
  %1345 = vmatpush1.bf16.msra.mxu0 0
  %1346 = vmatprep.subr.bf16.mxu0 0
  %1347 = vmatpush1.bf16.msra.mxu0 0
  %1348 = vmatprep.subr.bf16.mxu0 0
  %1349 = vmatpush1.bf16.msra.mxu0 0
  %1350 = vmatprep.subr.bf16.mxu0 0
  %1351 = vmatpush1.bf16.msra.mxu0 0
  %1352 = vmatprep.subr.bf16.mxu0 0
  %1353 = vmatpush1.bf16.msra.mxu0 0
  %1354 = vmatprep.subr.bf16.mxu0 0
  %1355 = vmatpush1.bf16.msra.mxu0 0
  %1356 = vmatprep.subr.bf16.mxu0 0
  %1357 = vmatpush1.bf16.msra.mxu0 0
  %1358 = vmatprep.subr.bf16.mxu0 0
  %1359 = vmatpush1.bf16.msra.mxu0 0
  %1360 = vmatprep.subr.bf16.mxu0 0
  %1361 = vmatpush1.bf16.msra.mxu0 0
  %1362 = vmatprep.subr.bf16.mxu0 0
  %1363 = vmatpush1.bf16.msra.mxu0 0
  %1364 = vmatprep.mubr.bf16.mxu0 0
  %1365 = vmatmul.mubr.bf16.gmra.mrb[0].mxu0 %v1326
  %v1366 = vpop.f32.mrb[0].mxu0
  %v1367 = vadd.f32 0.0, %v1366
  %v1368 = vpop.f32.mrb[0].mxu0
  %v1369 = vpop.f32.mrb[0].mxu0
  %v1370 = vadd.f32 0.0, %v1369
  %v1371 = vpop.f32.mrb[0].mxu0
  %1372 = vdwg.mxu0
  %v1373 = vld [vmem:[%s2 + $0x330] sm:$0xff]
  %v1374 = vld [vmem:[%s2 + $0x338] sm:$0xff]
  %v1375 = vadd.f32 %v1373, %v1367
  %v1376 = vadd.f32 %v1374, %v1370
  %v1377 = vld [vmem:[%s2 + $0x350] sm:$0xff]
  %v1378 = vld [vmem:[%s2 + $0x358] sm:$0xff]
  %v1379 = vld [vmem:[%s2 + $0x360] sm:$0xff]
  %v1380 = vld [vmem:[%s2 + $0x368] sm:$0xff]
  %v1381 = vpack.c.bf16 %v1376, %v1375
  %v1382 = vpack.c.bf16 %v1378, %v1377
  %v1383 = vpack.c.bf16 %v1380, %v1379
  %v1384 = vld [vmem:[%s2 + $0x370] sm:$0x1]
  %v1385 = vlaneseq
  %v1386 = vshrl.u32 %v1385, 7
  %v1387 = vsub.s32 0, %v1386
  %v1388 = vrot.slane %v1384, %v1387
  %v1390 = vsel %vm119, %v1381, 0
  %1392 = vmatprep.subr.bf16.mxu0 0
  %1393 = vmatpush1.bf16.msra.mxu0 %v1382
  %1394 = vmatprep.subr.bf16.mxu0 0
  %1395 = vmatpush1.bf16.msra.mxu0 %v1383
  %1396 = vmatprep.subr.bf16.mxu0 0
  %1397 = vmatpush1.bf16.msra.mxu0 0
  %1398 = vmatprep.subr.bf16.mxu0 0
  %1399 = vmatpush1.bf16.msra.mxu0 0
  %1400 = vmatprep.subr.bf16.mxu0 0
  %1401 = vmatpush1.bf16.msra.mxu0 0
  %1402 = vmatprep.subr.bf16.mxu0 0
  %1403 = vmatpush1.bf16.msra.mxu0 0
  %1404 = vmatprep.subr.bf16.mxu0 0
  %1405 = vmatpush1.bf16.msra.mxu0 0
  %1406 = vmatprep.subr.bf16.mxu0 0
  %1407 = vmatpush1.bf16.msra.mxu0 0
  %1408 = vmatprep.subr.bf16.mxu0 0
  %1409 = vmatpush1.bf16.msra.mxu0 0
  %1410 = vmatprep.subr.bf16.mxu0 0
  %1411 = vmatpush1.bf16.msra.mxu0 0
  %1412 = vmatprep.subr.bf16.mxu0 0
  %1413 = vmatpush1.bf16.msra.mxu0 0
  %1414 = vmatprep.subr.bf16.mxu0 0
  %1415 = vmatpush1.bf16.msra.mxu0 0
  %1416 = vmatprep.subr.bf16.mxu0 0
  %1417 = vmatpush1.bf16.msra.mxu0 0
  %1418 = vmatprep.subr.bf16.mxu0 0
  %1419 = vmatpush1.bf16.msra.mxu0 0
  %1420 = vmatprep.subr.bf16.mxu0 0
  %1421 = vmatpush1.bf16.msra.mxu0 0
  %1422 = vmatprep.subr.bf16.mxu0 0
  %1423 = vmatpush1.bf16.msra.mxu0 0
  %1424 = vmatprep.mubr.bf16.mxu0 0
  %1425 = vmatmul.mubr.bf16.gmra.mrb[0].mxu0 %v1390
  %v1426 = vpop.f32.mrb[0].mxu0
  %v1427 = vadd.f32 %v1388, %v1426
  %v1428 = vpop.f32.mrb[0].mxu0
  %v1429 = vpop.f32.mrb[0].mxu0
  %v1430 = vadd.f32 %v1388, %v1429
  %v1431 = vpop.f32.mrb[0].mxu0
  %1432 = vdwg.mxu0
  %v1433 = vld [vmem:[%s2 + $0x378] sm:$0xff]
  %v1434 = vld [vmem:[%s2 + $0x380] sm:$0xff]
  %v1435 = vld [vmem:[%s2 + $0x388] sm:$0xff]
  %v1436 = vld [vmem:[%s2 + $0x390] sm:$0xff]
  %v1437 = vld [vmem:[%s2 + $0x398] sm:$0x1]
  %v1438 = vmul.f32 %v1427, %v178
  %v1439 = vmul.f32 %v1430, %v180
  %v1440 = vmul.f32 %v1427, %v182
  %v1441 = vmul.f32 %v1430, %v184
  %v1442 = vmul.f32 %v1427, %v186
  %v1443 = vmul.f32 %v1430, %v188
  %v1444 = vmul.f32 %v1427, %v190
  %v1445 = vmul.f32 %v1430, %v192
  %v1446 = vmul.f32 %v1427, %v210
  %v1447 = vmul.f32 %v1430, %v212
  %v1448 = vmul.f32 %v1427, %v214
  %v1449 = vmul.f32 %v1430, %v216
  %v1450 = vmul.f32 %v1427, %v218
  %v1451 = vmul.f32 %v1430, %v220
  %v1452 = vmul.f32 %v1427, %v222
  %v1453 = vmul.f32 %v1430, %v224
  %v1454 = vpack.c.bf16 %v1430, %v1427
  %v1455 = vpack.c.bf16 %v1439, %v1438
  %v1456 = vpack.c.bf16 %v1441, %v1440
  %v1457 = vpack.c.bf16 %v1443, %v1442
  %v1458 = vpack.c.bf16 %v1445, %v1444
  %1463 = vrot.lane.b32.xlu0 %v1455, 96
  %v1464 = vpop.permute.xlu0 %1463
  %1465 = vrot.lane.b32.xlu0 %v1456, 96
  %v1466 = vpop.permute.xlu0 %1465
  %1467 = vrot.lane.b32.xlu0 %v1457, 96
  %v1468 = vpop.permute.xlu0 %1467
  %1469 = vrot.lane.b32.xlu0 %v1458, 96
  %v1470 = vpop.permute.xlu0 %1469
  %v1472 = vsel %vm119, %v1454, 0
  %v1475 = vsel %vm119, %v1464, 0
  %v1478 = vsel %vm119, %v1466, 0
  %v1481 = vsel %vm119, %v1468, 0
  %v1484 = vsel %vm119, %v1470, 0
  %1486 = vmatprep.subr.bf16.mxu0 0
  %1487 = vmatpush1.bf16.xpose.msra.mxu0 %v1475
  %1488 = vmatprep.subr.bf16.mxu0 0
  %1489 = vmatpush1.bf16.xpose.msra.mxu0 %v1478
  %1490 = vmatprep.subr.bf16.mxu0 0
  %1491 = vmatpush1.bf16.xpose.msra.mxu0 %v1481
  %1492 = vmatprep.subr.bf16.mxu0 0
  %1493 = vmatpush1.bf16.xpose.msra.mxu0 %v1484
  %1494 = vmatprep.subr.bf16.mxu0 0
  %1495 = vmatpush1.bf16.xpose.msra.mxu0 0
  %1496 = vmatprep.subr.bf16.mxu0 0
  %1497 = vmatpush1.bf16.xpose.msra.mxu0 0
  %1498 = vmatprep.subr.bf16.mxu0 0
  %1499 = vmatpush1.bf16.xpose.msra.mxu0 0
  %1500 = vmatprep.subr.bf16.mxu0 0
  %1501 = vmatpush1.bf16.xpose.msra.mxu0 0
  %1502 = vmatprep.subr.bf16.mxu0 0
  %1503 = vmatpush1.bf16.xpose.msra.mxu0 0
  %1504 = vmatprep.subr.bf16.mxu0 0
  %1505 = vmatpush1.bf16.xpose.msra.mxu0 0
  %1506 = vmatprep.subr.bf16.mxu0 0
  %1507 = vmatpush1.bf16.xpose.msra.mxu0 0
  %1508 = vmatprep.subr.bf16.mxu0 0
  %1509 = vmatpush1.bf16.xpose.msra.mxu0 0
  %1510 = vmatprep.subr.bf16.mxu0 0
  %1511 = vmatpush1.bf16.xpose.msra.mxu0 0
  %1512 = vmatprep.subr.bf16.mxu0 0
  %1513 = vmatpush1.bf16.xpose.msra.mxu0 0
  %1514 = vmatprep.subr.bf16.mxu0 0
  %1515 = vmatpush1.bf16.xpose.msra.mxu0 0
  %1516 = vmatprep.subr.bf16.mxu0 0
  %1517 = vmatpush1.bf16.xpose.msra.mxu0 0
  %1518 = vmatprep.mubr.bf16.mxu0 0
  %1519 = vmatmul.mubr.bf16.gmra.mrb[0].mxu0 %v1472
  %v1520 = vpop.f32.mrb[0].mxu0
  %v1521 = vadd.f32 0.0, %v1520
  %v1522 = vpop.f32.mrb[0].mxu0
  %v1523 = vpop.f32.mrb[0].mxu0
  %v1524 = vadd.f32 0.0, %v1523
  %v1525 = vpop.f32.mrb[0].mxu0
  %1526 = vdwg.mxu0
  %v1527 = vmul.f32 %v1521, 0.35355338
  %v1528 = vmul.f32 %v1524, 0.35355338
  %v1529 = vadd.f32 %v1527, %v23
  %v1530 = vadd.f32 %v1528, %v24
  %v1531 = vsel %vm318, %v1529, -inf
  %1532 = vmax.xlane.f32.xlu0 %v1531
  %v1533 = vpop.xlane.xlu0 %1532
  %v1534 = vsel %vm318, %v1530, -inf
  %1535 = vmax.xlane.f32.xlu0 %v1534
  %v1536 = vpop.xlane.xlu0 %1535
  %v1537 = vsub.f32 %v1529, %v1533
  %v1538 = vsub.f32 %v1530, %v1536
  %v1539 = vmul.f32 %v1537, 1.442695
  %v1540 = vpow.pop %v1539
  %v1541 = vmul.f32 %v1538, 1.442695
  %v1542 = vpow.pop %v1541
  %v1543 = vpack.c.bf16 %v1542, %v1540
  %v1545 = vsel %vm318, %v1543, 0
  %1547 = vmatprep.subr.bf16.mxu0 0
  %1548 = vmatpush1.bf16.msra.mxu0 %v33
  %1549 = vmatprep.subr.bf16.mxu0 0
  %1550 = vmatpush1.bf16.msra.mxu0 %v34
  %1551 = vmatprep.subr.bf16.mxu0 0
  %1552 = vmatpush1.bf16.msra.mxu0 %v35
  %1553 = vmatprep.subr.bf16.mxu0 0
  %1554 = vmatpush1.bf16.msra.mxu0 %v36
  %1555 = vmatprep.subr.bf16.mxu0 0
  %1556 = vmatpush1.bf16.msra.mxu0 0
  %1557 = vmatprep.subr.bf16.mxu0 0
  %1558 = vmatpush1.bf16.msra.mxu0 0
  %1559 = vmatprep.subr.bf16.mxu0 0
  %1560 = vmatpush1.bf16.msra.mxu0 0
  %1561 = vmatprep.subr.bf16.mxu0 0
  %1562 = vmatpush1.bf16.msra.mxu0 0
  %1563 = vmatprep.subr.bf16.mxu0 0
  %1564 = vmatpush1.bf16.msra.mxu0 0
  %1565 = vmatprep.subr.bf16.mxu0 0
  %1566 = vmatpush1.bf16.msra.mxu0 0
  %1567 = vmatprep.subr.bf16.mxu0 0
  %1568 = vmatpush1.bf16.msra.mxu0 0
  %1569 = vmatprep.subr.bf16.mxu0 0
  %1570 = vmatpush1.bf16.msra.mxu0 0
  %1571 = vmatprep.subr.bf16.mxu0 0
  %1572 = vmatpush1.bf16.msra.mxu0 0
  %1573 = vmatprep.subr.bf16.mxu0 0
  %1574 = vmatpush1.bf16.msra.mxu0 0
  %1575 = vmatprep.subr.bf16.mxu0 0
  %1576 = vmatpush1.bf16.msra.mxu0 0
  %1577 = vmatprep.subr.bf16.mxu0 0
  %1578 = vmatpush1.bf16.msra.mxu0 0
  %1579 = vmatprep.mubr.bf16.mxu0 0
  %1580 = vmatmul.mubr.bf16.gmra.mrb[0].mxu0 %v1545
  %v1581 = vpop.f32.mrb[0].mxu0
  %v1582 = vadd.f32 0.0, %v1581
  %v1583 = vpop.f32.mrb[0].mxu0
  %v1584 = vpop.f32.mrb[0].mxu0
  %v1585 = vadd.f32 0.0, %v1584
  %v1586 = vpop.f32.mrb[0].mxu0
  %1587 = vdwg.mxu0
  %v1588 = vmax.f32 %v1582, 1e-30
  %v1589 = vmax.f32 %v1585, 1e-30
  %v1590 = vrcp.pop %v1588
  %v1591 = vrcp.pop %v1589
  %v1592 = vmul.f32 %v1540, %v1590
  %v1593 = vmul.f32 %v1542, %v1591
  %v1594 = vpack.c.bf16 %v1593, %v1592
  %v1595 = vpack.c.bf16 %v1447, %v1446
  %v1596 = vpack.c.bf16 %v1449, %v1448
  %v1597 = vpack.c.bf16 %v1451, %v1450
  %v1598 = vpack.c.bf16 %v1453, %v1452
  %1603 = vrot.lane.b32.xlu0 %v1595, 64
  %v1604 = vpop.permute.xlu0 %1603
  %1605 = vrot.lane.b32.xlu0 %v1596, 64
  %v1606 = vpop.permute.xlu0 %1605
  %1607 = vrot.lane.b32.xlu0 %v1597, 64
  %v1608 = vpop.permute.xlu0 %1607
  %1609 = vrot.lane.b32.xlu0 %v1598, 64
  %v1610 = vpop.permute.xlu0 %1609
  %v1616 = vsel %vm318, %v1594, 0
  %1618 = vmatprep.subr.bf16.mxu0 0
  %1619 = vmatpush1.bf16.msra.mxu0 %v1604
  %1620 = vmatprep.subr.bf16.mxu0 0
  %1621 = vmatpush1.bf16.msra.mxu0 %v1606
  %1622 = vmatprep.subr.bf16.mxu0 0
  %1623 = vmatpush1.bf16.msra.mxu0 %v1608
  %1624 = vmatprep.subr.bf16.mxu0 0
  %1625 = vmatpush1.bf16.msra.mxu0 %v1610
  %1626 = vmatprep.subr.bf16.mxu0 0
  %1627 = vmatpush1.bf16.msra.mxu0 0
  %1628 = vmatprep.subr.bf16.mxu0 0
  %1629 = vmatpush1.bf16.msra.mxu0 0
  %1630 = vmatprep.subr.bf16.mxu0 0
  %1631 = vmatpush1.bf16.msra.mxu0 0
  %1632 = vmatprep.subr.bf16.mxu0 0
  %1633 = vmatpush1.bf16.msra.mxu0 0
  %1634 = vmatprep.subr.bf16.mxu0 0
  %1635 = vmatpush1.bf16.msra.mxu0 0
  %1636 = vmatprep.subr.bf16.mxu0 0
  %1637 = vmatpush1.bf16.msra.mxu0 0
  %1638 = vmatprep.subr.bf16.mxu0 0
  %1639 = vmatpush1.bf16.msra.mxu0 0
  %1640 = vmatprep.subr.bf16.mxu0 0
  %1641 = vmatpush1.bf16.msra.mxu0 0
  %1642 = vmatprep.subr.bf16.mxu0 0
  %1643 = vmatpush1.bf16.msra.mxu0 0
  %1644 = vmatprep.subr.bf16.mxu0 0
  %1645 = vmatpush1.bf16.msra.mxu0 0
  %1646 = vmatprep.subr.bf16.mxu0 0
  %1647 = vmatpush1.bf16.msra.mxu0 0
  %1648 = vmatprep.subr.bf16.mxu0 0
  %1649 = vmatpush1.bf16.msra.mxu0 0
  %1650 = vmatprep.mubr.bf16.mxu0 0
  %1651 = vmatmul.mubr.bf16.gmra.mrb[0].mxu0 %v1616
  %v1652 = vpop.f32.mrb[0].mxu0
  %v1653 = vadd.f32 0.0, %v1652
  %v1654 = vpop.f32.mrb[0].mxu0
  %v1655 = vpop.f32.mrb[0].mxu0
  %v1656 = vadd.f32 0.0, %v1655
  %v1657 = vpop.f32.mrb[0].mxu0
  %1658 = vdwg.mxu0
  %v1659 = vpack.c.bf16 %v1656, %v1653
  %v1660 = vpack.c.bf16 %v1434, %v1433
  %v1661 = vpack.c.bf16 %v1436, %v1435
  %v1662 = vlaneseq
  %v1663 = vshrl.u32 %v1662, 7
  %v1664 = vsub.s32 0, %v1663
  %v1665 = vrot.slane %v1437, %v1664
  %v1667 = vsel %vm119, %v1659, 0
  %1669 = vmatprep.subr.bf16.mxu0 0
  %1670 = vmatpush1.bf16.msra.mxu0 %v1660
  %1671 = vmatprep.subr.bf16.mxu0 0
  %1672 = vmatpush1.bf16.msra.mxu0 %v1661
  %1673 = vmatprep.subr.bf16.mxu0 0
  %1674 = vmatpush1.bf16.msra.mxu0 0
  %1675 = vmatprep.subr.bf16.mxu0 0
  %1676 = vmatpush1.bf16.msra.mxu0 0
  %1677 = vmatprep.subr.bf16.mxu0 0
  %1678 = vmatpush1.bf16.msra.mxu0 0
  %1679 = vmatprep.subr.bf16.mxu0 0
  %1680 = vmatpush1.bf16.msra.mxu0 0
  %1681 = vmatprep.subr.bf16.mxu0 0
  %1682 = vmatpush1.bf16.msra.mxu0 0
  %1683 = vmatprep.subr.bf16.mxu0 0
  %1684 = vmatpush1.bf16.msra.mxu0 0
  %1685 = vmatprep.subr.bf16.mxu0 0
  %1686 = vmatpush1.bf16.msra.mxu0 0
  %1687 = vmatprep.subr.bf16.mxu0 0
  %1688 = vmatpush1.bf16.msra.mxu0 0
  %1689 = vmatprep.subr.bf16.mxu0 0
  %1690 = vmatpush1.bf16.msra.mxu0 0
  %1691 = vmatprep.subr.bf16.mxu0 0
  %1692 = vmatpush1.bf16.msra.mxu0 0
  %1693 = vmatprep.subr.bf16.mxu0 0
  %1694 = vmatpush1.bf16.msra.mxu0 0
  %1695 = vmatprep.subr.bf16.mxu0 0
  %1696 = vmatpush1.bf16.msra.mxu0 0
  %1697 = vmatprep.subr.bf16.mxu0 0
  %1698 = vmatpush1.bf16.msra.mxu0 0
  %1699 = vmatprep.subr.bf16.mxu0 0
  %1700 = vmatpush1.bf16.msra.mxu0 0
  %1701 = vmatprep.mubr.bf16.mxu0 0
  %1702 = vmatmul.mubr.bf16.gmra.mrb[0].mxu0 %v1667
  %v1703 = vpop.f32.mrb[0].mxu0
  %v1704 = vadd.f32 %v1665, %v1703
  %v1705 = vpop.f32.mrb[0].mxu0
  %v1706 = vpop.f32.mrb[0].mxu0
  %v1707 = vadd.f32 %v1665, %v1706
  %v1708 = vpop.f32.mrb[0].mxu0
  %1709 = vdwg.mxu0
  %v1710 = vadd.f32 %v1375, %v1704
  %v1711 = vadd.f32 %v1376, %v1707
  %v1712 = vld [vmem:[%s2 + $0x418] sm:$0x3]
  %v1713 = vsel %vm119, %v1710, 0.0
  %1714 = vadd.xlane.f32.xlu0 %v1713
  %v1715 = vpop.xlane.xlu0 %1714
  %v1716 = vsel %vm119, %v1711, 0.0
  %1717 = vadd.xlane.f32.xlu0 %v1716
  %v1718 = vpop.xlane.xlu0 %1717
  %v1719 = vmul.f32 %v1715, %v507
  %v1720 = vmul.f32 %v1718, %v507
  %v1721 = vsub.f32 %v1710, %v1719
  %v1722 = vsub.f32 %v1711, %v1720
  %v1723 = vmul.f32 %v1721, %v1721
  %v1724 = vmul.f32 %v1722, %v1722
  %v1725 = vsel %vm119, %v1723, 0.0
  %1726 = vadd.xlane.f32.xlu0 %v1725
  %v1727 = vpop.xlane.xlu0 %1726
  %v1728 = vsel %vm119, %v1724, 0.0
  %1729 = vadd.xlane.f32.xlu0 %v1728
  %v1730 = vpop.xlane.xlu0 %1729
  %v1731 = vmul.f32 %v1727, %v507
  %v1732 = vmul.f32 %v1730, %v507
  %v1733 = vadd.f32 %v1731, 1e-05
  %v1734 = vadd.f32 %v1732, 1e-05
  %v1735 = vrsqrt.pop %v1733
  %v1736 = vrsqrt.pop %v1734
  %v1737 = vmul.f32 %v1721, %v1735
  %v1738 = vmul.f32 %v1722, %v1736
  %v1739 = vlaneseq
  %v1740 = vshrl.u32 %v1739, 7
  %v1741 = vsub.s32 0, %v1740
  %v1742 = vrot.slane %v1712, %v1741
  %v1743 = vmul.f32 %v1737, %v1742
  %v1744 = vmul.f32 %v1738, %v1742
  %v1745 = vlaneseq
  %v1746 = vshrl.u32 %v1745, 7
  %v1747 = vsub.s32 1, %v1746
  %v1748 = vrot.slane %v1712, %v1747
  %v1749 = vadd.f32 %v1743, %v1748
  %v1750 = vadd.f32 %v1744, %v1748
  %v1751 = vld [vmem:[%s2 + $0x3a0] sm:$0xff]
  %v1752 = vld [vmem:[%s2 + $0x3a8] sm:$0xff]
  %v1753 = vld [vmem:[%s2 + $0x3b0] sm:$0xff]
  %v1754 = vld [vmem:[%s2 + $0x3b8] sm:$0xff]
  %v1755 = vpack.c.bf16 %v1750, %v1749
  %v1756 = vpack.c.bf16 %v1752, %v1751
  %v1757 = vpack.c.bf16 %v1754, %v1753
  %v1758 = vld [vmem:[%s2 + $0x3c0] sm:$0x1]
  %v1759 = vlaneseq
  %v1760 = vshrl.u32 %v1759, 7
  %v1761 = vsub.s32 0, %v1760
  %v1762 = vrot.slane %v1758, %v1761
  %v1764 = vsel %vm119, %v1755, 0
  %1766 = vmatprep.subr.bf16.mxu0 0
  %1767 = vmatpush1.bf16.msra.mxu0 %v1756
  %1768 = vmatprep.subr.bf16.mxu0 0
  %1769 = vmatpush1.bf16.msra.mxu0 %v1757
  %1770 = vmatprep.subr.bf16.mxu0 0
  %1771 = vmatpush1.bf16.msra.mxu0 0
  %1772 = vmatprep.subr.bf16.mxu0 0
  %1773 = vmatpush1.bf16.msra.mxu0 0
  %1774 = vmatprep.subr.bf16.mxu0 0
  %1775 = vmatpush1.bf16.msra.mxu0 0
  %1776 = vmatprep.subr.bf16.mxu0 0
  %1777 = vmatpush1.bf16.msra.mxu0 0
  %1778 = vmatprep.subr.bf16.mxu0 0
  %1779 = vmatpush1.bf16.msra.mxu0 0
  %1780 = vmatprep.subr.bf16.mxu0 0
  %1781 = vmatpush1.bf16.msra.mxu0 0
  %1782 = vmatprep.subr.bf16.mxu0 0
  %1783 = vmatpush1.bf16.msra.mxu0 0
  %1784 = vmatprep.subr.bf16.mxu0 0
  %1785 = vmatpush1.bf16.msra.mxu0 0
  %1786 = vmatprep.subr.bf16.mxu0 0
  %1787 = vmatpush1.bf16.msra.mxu0 0
  %1788 = vmatprep.subr.bf16.mxu0 0
  %1789 = vmatpush1.bf16.msra.mxu0 0
  %1790 = vmatprep.subr.bf16.mxu0 0
  %1791 = vmatpush1.bf16.msra.mxu0 0
  %1792 = vmatprep.subr.bf16.mxu0 0
  %1793 = vmatpush1.bf16.msra.mxu0 0
  %1794 = vmatprep.subr.bf16.mxu0 0
  %1795 = vmatpush1.bf16.msra.mxu0 0
  %1796 = vmatprep.subr.bf16.mxu0 0
  %1797 = vmatpush1.bf16.msra.mxu0 0
  %1798 = vmatprep.mubr.bf16.mxu0 0
  %1799 = vmatmul.mubr.bf16.gmra.mrb[0].mxu0 %v1764
  %v1800 = vpop.f32.mrb[0].mxu0
  %v1801 = vadd.f32 %v1762, %v1800
  %v1802 = vpop.f32.mrb[0].mxu0
  %v1803 = vpop.f32.mrb[0].mxu0
  %v1804 = vadd.f32 %v1762, %v1803
  %v1805 = vpop.f32.mrb[0].mxu0
  %1806 = vdwg.mxu0
  %v1807 = vld [vmem:[%s2 + $0x3c8] sm:$0xff]
  %v1808 = vld [vmem:[%s2 + $0x3d0] sm:$0xff]
  %v1809 = vld [vmem:[%s2 + $0x3d8] sm:$0xff]
  %v1810 = vld [vmem:[%s2 + $0x3e0] sm:$0xff]
  %v1811 = vpack.c.bf16 %v1253, %v1252
  %v1812 = vpack.c.bf16 %v1808, %v1807
  %v1813 = vpack.c.bf16 %v1810, %v1809
  %v1814 = vld [vmem:[%s2 + $0x3e8] sm:$0x1]
  %v1815 = vlaneseq
  %v1816 = vshrl.u32 %v1815, 7
  %v1817 = vsub.s32 0, %v1816
  %v1818 = vrot.slane %v1814, %v1817
  %v1820 = vsel %vm119, %v1811, 0
  %1822 = vmatprep.subr.bf16.mxu0 0
  %1823 = vmatpush1.bf16.msra.mxu0 %v1812
  %1824 = vmatprep.subr.bf16.mxu0 0
  %1825 = vmatpush1.bf16.msra.mxu0 %v1813
  %1826 = vmatprep.subr.bf16.mxu0 0
  %1827 = vmatpush1.bf16.msra.mxu0 0
  %1828 = vmatprep.subr.bf16.mxu0 0
  %1829 = vmatpush1.bf16.msra.mxu0 0
  %1830 = vmatprep.subr.bf16.mxu0 0
  %1831 = vmatpush1.bf16.msra.mxu0 0
  %1832 = vmatprep.subr.bf16.mxu0 0
  %1833 = vmatpush1.bf16.msra.mxu0 0
  %1834 = vmatprep.subr.bf16.mxu0 0
  %1835 = vmatpush1.bf16.msra.mxu0 0
  %1836 = vmatprep.subr.bf16.mxu0 0
  %1837 = vmatpush1.bf16.msra.mxu0 0
  %1838 = vmatprep.subr.bf16.mxu0 0
  %1839 = vmatpush1.bf16.msra.mxu0 0
  %1840 = vmatprep.subr.bf16.mxu0 0
  %1841 = vmatpush1.bf16.msra.mxu0 0
  %1842 = vmatprep.subr.bf16.mxu0 0
  %1843 = vmatpush1.bf16.msra.mxu0 0
  %1844 = vmatprep.subr.bf16.mxu0 0
  %1845 = vmatpush1.bf16.msra.mxu0 0
  %1846 = vmatprep.subr.bf16.mxu0 0
  %1847 = vmatpush1.bf16.msra.mxu0 0
  %1848 = vmatprep.subr.bf16.mxu0 0
  %1849 = vmatpush1.bf16.msra.mxu0 0
  %1850 = vmatprep.subr.bf16.mxu0 0
  %1851 = vmatpush1.bf16.msra.mxu0 0
  %1852 = vmatprep.subr.bf16.mxu0 0
  %1853 = vmatpush1.bf16.msra.mxu0 0
  %1854 = vmatprep.mubr.bf16.mxu0 0
  %1855 = vmatmul.mubr.bf16.gmra.mrb[0].mxu0 %v1820
  %v1856 = vpop.f32.mrb[0].mxu0
  %v1857 = vadd.f32 %v1818, %v1856
  %v1858 = vpop.f32.mrb[0].mxu0
  %v1859 = vpop.f32.mrb[0].mxu0
  %v1860 = vadd.f32 %v1818, %v1859
  %v1861 = vpop.f32.mrb[0].mxu0
  %1862 = vdwg.mxu0
  %v1863 = vld [vmem:[%s2 + $0x3f0] sm:$0xff]
  %v1864 = vld [vmem:[%s2 + $0x3f8] sm:$0xff]
  %v1865 = vld [vmem:[%s2 + $0x400] sm:$0xff]
  %v1866 = vld [vmem:[%s2 + $0x408] sm:$0xff]
  %v1867 = vld [vmem:[%s2 + $0x410] sm:$0x1]
  %v1868 = vmul.f32 %v1857, %v15
  %v1869 = vmul.f32 %v1860, %v16
  %v1870 = vmul.f32 %v1857, %v17
  %v1871 = vmul.f32 %v1860, %v18
  %v1872 = vmul.f32 %v1857, %v19
  %v1873 = vmul.f32 %v1860, %v20
  %v1874 = vmul.f32 %v1857, %v21
  %v1875 = vmul.f32 %v1860, %v22
  %v1876 = vmul.f32 %v1857, %v178
  %v1877 = vmul.f32 %v1860, %v180
  %v1878 = vmul.f32 %v1857, %v182
  %v1879 = vmul.f32 %v1860, %v184
  %v1880 = vmul.f32 %v1857, %v186
  %v1881 = vmul.f32 %v1860, %v188
  %v1882 = vmul.f32 %v1857, %v190
  %v1883 = vmul.f32 %v1860, %v192
  %v1884 = vpack.c.bf16 %v1804, %v1801
  %v1885 = vpack.c.bf16 %v1869, %v1868
  %v1886 = vpack.c.bf16 %v1871, %v1870
  %v1887 = vpack.c.bf16 %v1873, %v1872
  %v1888 = vpack.c.bf16 %v1875, %v1874
  %v1890 = vsel %vm119, %v1884, 0
  %v1893 = vsel %vm119, %v1885, 0
  %v1896 = vsel %vm119, %v1886, 0
  %v1899 = vsel %vm119, %v1887, 0
  %v1902 = vsel %vm119, %v1888, 0
  %1904 = vmatprep.subr.bf16.mxu0 0
  %1905 = vmatpush1.bf16.xpose.msra.mxu0 %v1893
  %1906 = vmatprep.subr.bf16.mxu0 0
  %1907 = vmatpush1.bf16.xpose.msra.mxu0 %v1896
  %1908 = vmatprep.subr.bf16.mxu0 0
  %1909 = vmatpush1.bf16.xpose.msra.mxu0 %v1899
  %1910 = vmatprep.subr.bf16.mxu0 0
  %1911 = vmatpush1.bf16.xpose.msra.mxu0 %v1902
  %1912 = vmatprep.subr.bf16.mxu0 0
  %1913 = vmatpush1.bf16.xpose.msra.mxu0 0
  %1914 = vmatprep.subr.bf16.mxu0 0
  %1915 = vmatpush1.bf16.xpose.msra.mxu0 0
  %1916 = vmatprep.subr.bf16.mxu0 0
  %1917 = vmatpush1.bf16.xpose.msra.mxu0 0
  %1918 = vmatprep.subr.bf16.mxu0 0
  %1919 = vmatpush1.bf16.xpose.msra.mxu0 0
  %1920 = vmatprep.subr.bf16.mxu0 0
  %1921 = vmatpush1.bf16.xpose.msra.mxu0 0
  %1922 = vmatprep.subr.bf16.mxu0 0
  %1923 = vmatpush1.bf16.xpose.msra.mxu0 0
  %1924 = vmatprep.subr.bf16.mxu0 0
  %1925 = vmatpush1.bf16.xpose.msra.mxu0 0
  %1926 = vmatprep.subr.bf16.mxu0 0
  %1927 = vmatpush1.bf16.xpose.msra.mxu0 0
  %1928 = vmatprep.subr.bf16.mxu0 0
  %1929 = vmatpush1.bf16.xpose.msra.mxu0 0
  %1930 = vmatprep.subr.bf16.mxu0 0
  %1931 = vmatpush1.bf16.xpose.msra.mxu0 0
  %1932 = vmatprep.subr.bf16.mxu0 0
  %1933 = vmatpush1.bf16.xpose.msra.mxu0 0
  %1934 = vmatprep.subr.bf16.mxu0 0
  %1935 = vmatpush1.bf16.xpose.msra.mxu0 0
  %1936 = vmatprep.mubr.bf16.mxu0 0
  %1937 = vmatmul.mubr.bf16.gmra.mrb[0].mxu0 %v1890
  %v1938 = vpop.f32.mrb[0].mxu0
  %v1939 = vadd.f32 0.0, %v1938
  %v1940 = vpop.f32.mrb[0].mxu0
  %v1941 = vpop.f32.mrb[0].mxu0
  %v1942 = vadd.f32 0.0, %v1941
  %v1943 = vpop.f32.mrb[0].mxu0
  %1944 = vdwg.mxu0
  %v1945 = vmul.f32 %v1939, 0.35355338
  %v1946 = vmul.f32 %v1942, 0.35355338
  %v1947 = vadd.f32 %v1945, %v23
  %v1948 = vadd.f32 %v1946, %v24
  %v1949 = vsel %vm318, %v1947, -inf
  %1950 = vmax.xlane.f32.xlu0 %v1949
  %v1951 = vpop.xlane.xlu0 %1950
  %v1952 = vsel %vm318, %v1948, -inf
  %1953 = vmax.xlane.f32.xlu0 %v1952
  %v1954 = vpop.xlane.xlu0 %1953
  %v1955 = vsub.f32 %v1947, %v1951
  %v1956 = vsub.f32 %v1948, %v1954
  %v1957 = vmul.f32 %v1955, 1.442695
  %v1958 = vpow.pop %v1957
  %v1959 = vmul.f32 %v1956, 1.442695
  %v1960 = vpow.pop %v1959
  %v1961 = vpack.c.bf16 %v1960, %v1958
  %v1963 = vsel %vm318, %v1961, 0
  %1965 = vmatprep.subr.bf16.mxu0 0
  %1966 = vmatpush1.bf16.msra.mxu0 %v33
  %1967 = vmatprep.subr.bf16.mxu0 0
  %1968 = vmatpush1.bf16.msra.mxu0 %v34
  %1969 = vmatprep.subr.bf16.mxu0 0
  %1970 = vmatpush1.bf16.msra.mxu0 %v35
  %1971 = vmatprep.subr.bf16.mxu0 0
  %1972 = vmatpush1.bf16.msra.mxu0 %v36
  %1973 = vmatprep.subr.bf16.mxu0 0
  %1974 = vmatpush1.bf16.msra.mxu0 0
  %1975 = vmatprep.subr.bf16.mxu0 0
  %1976 = vmatpush1.bf16.msra.mxu0 0
  %1977 = vmatprep.subr.bf16.mxu0 0
  %1978 = vmatpush1.bf16.msra.mxu0 0
  %1979 = vmatprep.subr.bf16.mxu0 0
  %1980 = vmatpush1.bf16.msra.mxu0 0
  %1981 = vmatprep.subr.bf16.mxu0 0
  %1982 = vmatpush1.bf16.msra.mxu0 0
  %1983 = vmatprep.subr.bf16.mxu0 0
  %1984 = vmatpush1.bf16.msra.mxu0 0
  %1985 = vmatprep.subr.bf16.mxu0 0
  %1986 = vmatpush1.bf16.msra.mxu0 0
  %1987 = vmatprep.subr.bf16.mxu0 0
  %1988 = vmatpush1.bf16.msra.mxu0 0
  %1989 = vmatprep.subr.bf16.mxu0 0
  %1990 = vmatpush1.bf16.msra.mxu0 0
  %1991 = vmatprep.subr.bf16.mxu0 0
  %1992 = vmatpush1.bf16.msra.mxu0 0
  %1993 = vmatprep.subr.bf16.mxu0 0
  %1994 = vmatpush1.bf16.msra.mxu0 0
  %1995 = vmatprep.subr.bf16.mxu0 0
  %1996 = vmatpush1.bf16.msra.mxu0 0
  %1997 = vmatprep.mubr.bf16.mxu0 0
  %1998 = vmatmul.mubr.bf16.gmra.mrb[0].mxu0 %v1963
  %v1999 = vpop.f32.mrb[0].mxu0
  %v2000 = vadd.f32 0.0, %v1999
  %v2001 = vpop.f32.mrb[0].mxu0
  %v2002 = vpop.f32.mrb[0].mxu0
  %v2003 = vadd.f32 0.0, %v2002
  %v2004 = vpop.f32.mrb[0].mxu0
  %2005 = vdwg.mxu0
  %v2006 = vmax.f32 %v2000, 1e-30
  %v2007 = vmax.f32 %v2003, 1e-30
  %v2008 = vrcp.pop %v2006
  %v2009 = vrcp.pop %v2007
  %v2010 = vmul.f32 %v1958, %v2008
  %v2011 = vmul.f32 %v1960, %v2009
  %v2012 = vpack.c.bf16 %v2011, %v2010
  %v2013 = vpack.c.bf16 %v1877, %v1876
  %v2014 = vpack.c.bf16 %v1879, %v1878
  %v2015 = vpack.c.bf16 %v1881, %v1880
  %v2016 = vpack.c.bf16 %v1883, %v1882
  %2021 = vrot.lane.b32.xlu0 %v2013, 96
  %v2022 = vpop.permute.xlu0 %2021
  %2023 = vrot.lane.b32.xlu0 %v2014, 96
  %v2024 = vpop.permute.xlu0 %2023
  %2025 = vrot.lane.b32.xlu0 %v2015, 96
  %v2026 = vpop.permute.xlu0 %2025
  %2027 = vrot.lane.b32.xlu0 %v2016, 96
  %v2028 = vpop.permute.xlu0 %2027
  %v2034 = vsel %vm318, %v2012, 0
  %2036 = vmatprep.subr.bf16.mxu0 0
  %2037 = vmatpush1.bf16.msra.mxu0 %v2022
  %2038 = vmatprep.subr.bf16.mxu0 0
  %2039 = vmatpush1.bf16.msra.mxu0 %v2024
  %2040 = vmatprep.subr.bf16.mxu0 0
  %2041 = vmatpush1.bf16.msra.mxu0 %v2026
  %2042 = vmatprep.subr.bf16.mxu0 0
  %2043 = vmatpush1.bf16.msra.mxu0 %v2028
  %2044 = vmatprep.subr.bf16.mxu0 0
  %2045 = vmatpush1.bf16.msra.mxu0 0
  %2046 = vmatprep.subr.bf16.mxu0 0
  %2047 = vmatpush1.bf16.msra.mxu0 0
  %2048 = vmatprep.subr.bf16.mxu0 0
  %2049 = vmatpush1.bf16.msra.mxu0 0
  %2050 = vmatprep.subr.bf16.mxu0 0
  %2051 = vmatpush1.bf16.msra.mxu0 0
  %2052 = vmatprep.subr.bf16.mxu0 0
  %2053 = vmatpush1.bf16.msra.mxu0 0
  %2054 = vmatprep.subr.bf16.mxu0 0
  %2055 = vmatpush1.bf16.msra.mxu0 0
  %2056 = vmatprep.subr.bf16.mxu0 0
  %2057 = vmatpush1.bf16.msra.mxu0 0
  %2058 = vmatprep.subr.bf16.mxu0 0
  %2059 = vmatpush1.bf16.msra.mxu0 0
  %2060 = vmatprep.subr.bf16.mxu0 0
  %2061 = vmatpush1.bf16.msra.mxu0 0
  %2062 = vmatprep.subr.bf16.mxu0 0
  %2063 = vmatpush1.bf16.msra.mxu0 0
  %2064 = vmatprep.subr.bf16.mxu0 0
  %2065 = vmatpush1.bf16.msra.mxu0 0
  %2066 = vmatprep.subr.bf16.mxu0 0
  %2067 = vmatpush1.bf16.msra.mxu0 0
  %2068 = vmatprep.mubr.bf16.mxu0 0
  %2069 = vmatmul.mubr.bf16.gmra.mrb[0].mxu0 %v2034
  %v2070 = vpop.f32.mrb[0].mxu0
  %v2071 = vadd.f32 0.0, %v2070
  %v2072 = vpop.f32.mrb[0].mxu0
  %v2073 = vpop.f32.mrb[0].mxu0
  %v2074 = vadd.f32 0.0, %v2073
  %v2075 = vpop.f32.mrb[0].mxu0
  %2076 = vdwg.mxu0
  %v2077 = vpack.c.bf16 %v2074, %v2071
  %v2078 = vpack.c.bf16 %v1864, %v1863
  %v2079 = vpack.c.bf16 %v1866, %v1865
  %v2080 = vlaneseq
  %v2081 = vshrl.u32 %v2080, 7
  %v2082 = vsub.s32 0, %v2081
  %v2083 = vrot.slane %v1867, %v2082
  %v2085 = vsel %vm119, %v2077, 0
  %2087 = vmatprep.subr.bf16.mxu0 0
  %2088 = vmatpush1.bf16.msra.mxu0 %v2078
  %2089 = vmatprep.subr.bf16.mxu0 0
  %2090 = vmatpush1.bf16.msra.mxu0 %v2079
  %2091 = vmatprep.subr.bf16.mxu0 0
  %2092 = vmatpush1.bf16.msra.mxu0 0
  %2093 = vmatprep.subr.bf16.mxu0 0
  %2094 = vmatpush1.bf16.msra.mxu0 0
  %2095 = vmatprep.subr.bf16.mxu0 0
  %2096 = vmatpush1.bf16.msra.mxu0 0
  %2097 = vmatprep.subr.bf16.mxu0 0
  %2098 = vmatpush1.bf16.msra.mxu0 0
  %2099 = vmatprep.subr.bf16.mxu0 0
  %2100 = vmatpush1.bf16.msra.mxu0 0
  %2101 = vmatprep.subr.bf16.mxu0 0
  %2102 = vmatpush1.bf16.msra.mxu0 0
  %2103 = vmatprep.subr.bf16.mxu0 0
  %2104 = vmatpush1.bf16.msra.mxu0 0
  %2105 = vmatprep.subr.bf16.mxu0 0
  %2106 = vmatpush1.bf16.msra.mxu0 0
  %2107 = vmatprep.subr.bf16.mxu0 0
  %2108 = vmatpush1.bf16.msra.mxu0 0
  %2109 = vmatprep.subr.bf16.mxu0 0
  %2110 = vmatpush1.bf16.msra.mxu0 0
  %2111 = vmatprep.subr.bf16.mxu0 0
  %2112 = vmatpush1.bf16.msra.mxu0 0
  %2113 = vmatprep.subr.bf16.mxu0 0
  %2114 = vmatpush1.bf16.msra.mxu0 0
  %2115 = vmatprep.subr.bf16.mxu0 0
  %2116 = vmatpush1.bf16.msra.mxu0 0
  %2117 = vmatprep.subr.bf16.mxu0 0
  %2118 = vmatpush1.bf16.msra.mxu0 0
  %2119 = vmatprep.mubr.bf16.mxu0 0
  %2120 = vmatmul.mubr.bf16.gmra.mrb[0].mxu0 %v2085
  %v2121 = vpop.f32.mrb[0].mxu0
  %v2122 = vadd.f32 %v2083, %v2121
  %v2123 = vpop.f32.mrb[0].mxu0
  %v2124 = vpop.f32.mrb[0].mxu0
  %v2125 = vadd.f32 %v2083, %v2124
  %v2126 = vpop.f32.mrb[0].mxu0
  %2127 = vdwg.mxu0
  %v2128 = vadd.f32 %v1749, %v2122
  %v2129 = vadd.f32 %v1750, %v2125
  %v2130 = vld [vmem:[%s2 + $0x420] sm:$0x3]
  %v2131 = vsel %vm119, %v2128, 0.0
  %2132 = vadd.xlane.f32.xlu0 %v2131
  %v2133 = vpop.xlane.xlu0 %2132
  %v2134 = vsel %vm119, %v2129, 0.0
  %2135 = vadd.xlane.f32.xlu0 %v2134
  %v2136 = vpop.xlane.xlu0 %2135
  %v2137 = vmul.f32 %v2133, %v507
  %v2138 = vmul.f32 %v2136, %v507
  %v2139 = vsub.f32 %v2128, %v2137
  %v2140 = vsub.f32 %v2129, %v2138
  %v2141 = vmul.f32 %v2139, %v2139
  %v2142 = vmul.f32 %v2140, %v2140
  %v2143 = vsel %vm119, %v2141, 0.0
  %2144 = vadd.xlane.f32.xlu0 %v2143
  %v2145 = vpop.xlane.xlu0 %2144
  %v2146 = vsel %vm119, %v2142, 0.0
  %2147 = vadd.xlane.f32.xlu0 %v2146
  %v2148 = vpop.xlane.xlu0 %2147
  %v2149 = vmul.f32 %v2145, %v507
  %v2150 = vmul.f32 %v2148, %v507
  %v2151 = vadd.f32 %v2149, 1e-05
  %v2152 = vadd.f32 %v2150, 1e-05
  %v2153 = vrsqrt.pop %v2151
  %v2154 = vrsqrt.pop %v2152
  %v2155 = vmul.f32 %v2139, %v2153
  %v2156 = vmul.f32 %v2140, %v2154
  %v2157 = vlaneseq
  %v2158 = vshrl.u32 %v2157, 7
  %v2159 = vsub.s32 0, %v2158
  %v2160 = vrot.slane %v2130, %v2159
  %v2161 = vmul.f32 %v2155, %v2160
  %v2162 = vmul.f32 %v2156, %v2160
  %v2163 = vlaneseq
  %v2164 = vshrl.u32 %v2163, 7
  %v2165 = vsub.s32 1, %v2164
  %v2166 = vrot.slane %v2130, %v2165
  %v2167 = vadd.f32 %v2161, %v2166
  %v2168 = vadd.f32 %v2162, %v2166
  %v2169 = vld [vmem:[%s2 + $0x430] sm:$0xff]
  %v2170 = vld [vmem:[%s2 + $0x438] sm:$0xff]
  %v2171 = vld [vmem:[%s2 + $0x440] sm:$0xff]
  %v2172 = vld [vmem:[%s2 + $0x448] sm:$0xff]
  %v2173 = vpack.c.bf16 %v2168, %v2167
  %v2174 = vpack.c.bf16 %v2170, %v2169
  %v2175 = vpack.c.bf16 %v2172, %v2171
  %v2176 = vld [vmem:[%s2 + $0x450] sm:$0x1]
  %v2177 = vlaneseq
  %v2178 = vshrl.u32 %v2177, 7
  %v2179 = vsub.s32 0, %v2178
  %v2180 = vrot.slane %v2176, %v2179
  %v2182 = vsel %vm119, %v2173, 0
  %2184 = vmatprep.subr.bf16.mxu0 0
  %2185 = vmatpush1.bf16.msra.mxu0 %v2174
  %2186 = vmatprep.subr.bf16.mxu0 0
  %2187 = vmatpush1.bf16.msra.mxu0 %v2175
  %2188 = vmatprep.subr.bf16.mxu0 0
  %2189 = vmatpush1.bf16.msra.mxu0 0
  %2190 = vmatprep.subr.bf16.mxu0 0
  %2191 = vmatpush1.bf16.msra.mxu0 0
  %2192 = vmatprep.subr.bf16.mxu0 0
  %2193 = vmatpush1.bf16.msra.mxu0 0
  %2194 = vmatprep.subr.bf16.mxu0 0
  %2195 = vmatpush1.bf16.msra.mxu0 0
  %2196 = vmatprep.subr.bf16.mxu0 0
  %2197 = vmatpush1.bf16.msra.mxu0 0
  %2198 = vmatprep.subr.bf16.mxu0 0
  %2199 = vmatpush1.bf16.msra.mxu0 0
  %2200 = vmatprep.subr.bf16.mxu0 0
  %2201 = vmatpush1.bf16.msra.mxu0 0
  %2202 = vmatprep.subr.bf16.mxu0 0
  %2203 = vmatpush1.bf16.msra.mxu0 0
  %2204 = vmatprep.subr.bf16.mxu0 0
  %2205 = vmatpush1.bf16.msra.mxu0 0
  %2206 = vmatprep.subr.bf16.mxu0 0
  %2207 = vmatpush1.bf16.msra.mxu0 0
  %2208 = vmatprep.subr.bf16.mxu0 0
  %2209 = vmatpush1.bf16.msra.mxu0 0
  %2210 = vmatprep.subr.bf16.mxu0 0
  %2211 = vmatpush1.bf16.msra.mxu0 0
  %2212 = vmatprep.subr.bf16.mxu0 0
  %2213 = vmatpush1.bf16.msra.mxu0 0
  %2214 = vmatprep.subr.bf16.mxu0 0
  %2215 = vmatpush1.bf16.msra.mxu0 0
  %2216 = vmatprep.mubr.bf16.mxu0 0
  %2217 = vmatmul.mubr.bf16.gmra.mrb[0].mxu0 %v2182
  %v2218 = vpop.f32.mrb[0].mxu0
  %v2219 = vadd.f32 %v2180, %v2218
  %v2220 = vpop.f32.mrb[0].mxu0
  %v2221 = vpop.f32.mrb[0].mxu0
  %v2222 = vadd.f32 %v2180, %v2221
  %v2223 = vpop.f32.mrb[0].mxu0
  %2224 = vdwg.mxu0
  %v2225 = vmax.f32 %v2219, 0.0
  %v2226 = vmax.f32 %v2222, 0.0
  %v2227 = vld [vmem:[%s2 + $0x458] sm:$0xff]
  %v2228 = vld [vmem:[%s2 + $0x460] sm:$0xff]
  %v2229 = vld [vmem:[%s2 + $0x468] sm:$0xff]
  %v2230 = vld [vmem:[%s2 + $0x470] sm:$0xff]
  %v2231 = vld [vmem:[%s2 + $0x478] sm:$0xff]
  %v2232 = vld [vmem:[%s2 + $0x480] sm:$0xff]
  %v2233 = vld [vmem:[%s2 + $0x488] sm:$0xff]
  %v2234 = vld [vmem:[%s2 + $0x490] sm:$0xff]
  %v2235 = vld [vmem:[%s2 + $0x498] sm:$0xff]
  %v2236 = vld [vmem:[%s2 + $0x4a0] sm:$0xff]
  %v2237 = vld [vmem:[%s2 + $0x4a8] sm:$0xff]
  %v2238 = vld [vmem:[%s2 + $0x4b0] sm:$0xff]
  %v2239 = vld [vmem:[%s2 + $0x4b8] sm:$0xff]
  %v2240 = vld [vmem:[%s2 + $0x4c0] sm:$0xff]
  %v2241 = vld [vmem:[%s2 + $0x4c8] sm:$0xff]
  %v2242 = vld [vmem:[%s2 + $0x4d0] sm:$0xff]
  %v2243 = vpack.c.bf16 %v2226, %v2225
  %v2244 = vpack.c.bf16 %v2228, %v2227
  %v2245 = vpack.c.bf16 %v2230, %v2229
  %v2246 = vpack.c.bf16 %v2232, %v2231
  %v2247 = vpack.c.bf16 %v2234, %v2233
  %v2248 = vpack.c.bf16 %v2236, %v2235
  %v2249 = vpack.c.bf16 %v2238, %v2237
  %v2250 = vpack.c.bf16 %v2240, %v2239
  %v2251 = vpack.c.bf16 %v2242, %v2241
  %v2252 = vld [vmem:[%s2 + $0x4d8] sm:$0x1]
  %v2253 = vlaneseq
  %v2254 = vshrl.u32 %v2253, 7
  %v2255 = vsub.s32 0, %v2254
  %v2256 = vrot.slane %v2252, %v2255
  %2257 = vmatprep.subr.bf16.mxu0 0
  %2258 = vmatpush1.bf16.msra.mxu0 %v2244
  %2259 = vmatprep.subr.bf16.mxu0 0
  %2260 = vmatpush1.bf16.msra.mxu0 %v2245
  %2261 = vmatprep.subr.bf16.mxu0 0
  %2262 = vmatpush1.bf16.msra.mxu0 %v2246
  %2263 = vmatprep.subr.bf16.mxu0 0
  %2264 = vmatpush1.bf16.msra.mxu0 %v2247
  %2265 = vmatprep.subr.bf16.mxu0 0
  %2266 = vmatpush1.bf16.msra.mxu0 %v2248
  %2267 = vmatprep.subr.bf16.mxu0 0
  %2268 = vmatpush1.bf16.msra.mxu0 %v2249
  %2269 = vmatprep.subr.bf16.mxu0 0
  %2270 = vmatpush1.bf16.msra.mxu0 %v2250
  %2271 = vmatprep.subr.bf16.mxu0 0
  %2272 = vmatpush1.bf16.msra.mxu0 %v2251
  %2273 = vmatprep.subr.bf16.mxu0 0
  %2274 = vmatpush1.bf16.msra.mxu0 0
  %2275 = vmatprep.subr.bf16.mxu0 0
  %2276 = vmatpush1.bf16.msra.mxu0 0
  %2277 = vmatprep.subr.bf16.mxu0 0
  %2278 = vmatpush1.bf16.msra.mxu0 0
  %2279 = vmatprep.subr.bf16.mxu0 0
  %2280 = vmatpush1.bf16.msra.mxu0 0
  %2281 = vmatprep.subr.bf16.mxu0 0
  %2282 = vmatpush1.bf16.msra.mxu0 0
  %2283 = vmatprep.subr.bf16.mxu0 0
  %2284 = vmatpush1.bf16.msra.mxu0 0
  %2285 = vmatprep.subr.bf16.mxu0 0
  %2286 = vmatpush1.bf16.msra.mxu0 0
  %2287 = vmatprep.subr.bf16.mxu0 0
  %2288 = vmatpush1.bf16.msra.mxu0 0
  %2289 = vmatprep.mubr.bf16.mxu0 0
  %2290 = vmatmul.mubr.bf16.gmra.mrb[0].mxu0 %v2243
  %v2291 = vpop.f32.mrb[0].mxu0
  %v2292 = vadd.f32 %v2256, %v2291
  %v2293 = vpop.f32.mrb[0].mxu0
  %v2294 = vpop.f32.mrb[0].mxu0
  %v2295 = vadd.f32 %v2256, %v2294
  %v2296 = vpop.f32.mrb[0].mxu0
  %2297 = vdwg.mxu0
  %v2298 = vadd.f32 %v2167, %v2292
  %v2299 = vadd.f32 %v2168, %v2295
  %v2300 = vld [vmem:[%s2 + $0x428] sm:$0x3]
  %v2301 = vsel %vm119, %v2298, 0.0
  %2302 = vadd.xlane.f32.xlu0 %v2301
  %v2303 = vpop.xlane.xlu0 %2302
  %v2304 = vsel %vm119, %v2299, 0.0
  %2305 = vadd.xlane.f32.xlu0 %v2304
  %v2306 = vpop.xlane.xlu0 %2305
  %v2307 = vmul.f32 %v2303, %v507
  %v2308 = vmul.f32 %v2306, %v507
  %v2309 = vsub.f32 %v2298, %v2307
  %v2310 = vsub.f32 %v2299, %v2308
  %v2311 = vmul.f32 %v2309, %v2309
  %v2312 = vmul.f32 %v2310, %v2310
  %v2313 = vsel %vm119, %v2311, 0.0
  %2314 = vadd.xlane.f32.xlu0 %v2313
  %v2315 = vpop.xlane.xlu0 %2314
  %v2316 = vsel %vm119, %v2312, 0.0
  %2317 = vadd.xlane.f32.xlu0 %v2316
  %v2318 = vpop.xlane.xlu0 %2317
  %v2319 = vmul.f32 %v2315, %v507
  %v2320 = vmul.f32 %v2318, %v507
  %v2321 = vadd.f32 %v2319, 1e-05
  %v2322 = vadd.f32 %v2320, 1e-05
  %v2323 = vrsqrt.pop %v2321
  %v2324 = vrsqrt.pop %v2322
  %v2325 = vmul.f32 %v2309, %v2323
  %v2326 = vmul.f32 %v2310, %v2324
  %v2327 = vlaneseq
  %v2328 = vshrl.u32 %v2327, 7
  %v2329 = vsub.s32 0, %v2328
  %v2330 = vrot.slane %v2300, %v2329
  %v2331 = vmul.f32 %v2325, %v2330
  %v2332 = vmul.f32 %v2326, %v2330
  %v2333 = vlaneseq
  %v2334 = vshrl.u32 %v2333, 7
  %v2335 = vsub.s32 1, %v2334
  %v2336 = vrot.slane %v2300, %v2335
  %v2337 = vadd.f32 %v2331, %v2336
  %v2338 = vadd.f32 %v2332, %v2336
  %v2339 = vld [vmem:[%s2 + $0x4e0] sm:$0xff]
  %v2340 = vld [vmem:[%s2 + $0x4e8] sm:$0xff]
  %v2341 = vld [vmem:[%s2 + $0x4f0] sm:$0xff]
  %v2342 = vld [vmem:[%s2 + $0x4f8] sm:$0xff]
  %v2343 = vpack.c.bf16 %v2338, %v2337
  %v2344 = vpack.c.bf16 %v2340, %v2339
  %v2345 = vpack.c.bf16 %v2342, %v2341
  %v2346 = vld [vmem:[%s2 + $0x500] sm:$0x1]
  %v2347 = vlaneseq
  %v2348 = vshrl.u32 %v2347, 7
  %v2349 = vsub.s32 0, %v2348
  %v2350 = vrot.slane %v2346, %v2349
  %v2352 = vsel %vm119, %v2343, 0
  %2354 = vmatprep.subr.bf16.mxu0 0
  %2355 = vmatpush1.bf16.msra.mxu0 %v2344
  %2356 = vmatprep.subr.bf16.mxu0 0
  %2357 = vmatpush1.bf16.msra.mxu0 %v2345
  %2358 = vmatprep.subr.bf16.mxu0 0
  %2359 = vmatpush1.bf16.msra.mxu0 0
  %2360 = vmatprep.subr.bf16.mxu0 0
  %2361 = vmatpush1.bf16.msra.mxu0 0
  %2362 = vmatprep.subr.bf16.mxu0 0
  %2363 = vmatpush1.bf16.msra.mxu0 0
  %2364 = vmatprep.subr.bf16.mxu0 0
  %2365 = vmatpush1.bf16.msra.mxu0 0
  %2366 = vmatprep.subr.bf16.mxu0 0
  %2367 = vmatpush1.bf16.msra.mxu0 0
  %2368 = vmatprep.subr.bf16.mxu0 0
  %2369 = vmatpush1.bf16.msra.mxu0 0
  %2370 = vmatprep.subr.bf16.mxu0 0
  %2371 = vmatpush1.bf16.msra.mxu0 0
  %2372 = vmatprep.subr.bf16.mxu0 0
  %2373 = vmatpush1.bf16.msra.mxu0 0
  %2374 = vmatprep.subr.bf16.mxu0 0
  %2375 = vmatpush1.bf16.msra.mxu0 0
  %2376 = vmatprep.subr.bf16.mxu0 0
  %2377 = vmatpush1.bf16.msra.mxu0 0
  %2378 = vmatprep.subr.bf16.mxu0 0
  %2379 = vmatpush1.bf16.msra.mxu0 0
  %2380 = vmatprep.subr.bf16.mxu0 0
  %2381 = vmatpush1.bf16.msra.mxu0 0
  %2382 = vmatprep.subr.bf16.mxu0 0
  %2383 = vmatpush1.bf16.msra.mxu0 0
  %2384 = vmatprep.subr.bf16.mxu0 0
  %2385 = vmatpush1.bf16.msra.mxu0 0
  %2386 = vmatprep.mubr.bf16.mxu0 0
  %2387 = vmatmul.mubr.bf16.gmra.mrb[0].mxu0 %v2352
  %v2388 = vpop.f32.mrb[0].mxu0
  %v2389 = vadd.f32 %v2350, %v2388
  %v2390 = vpop.f32.mrb[0].mxu0
  %v2391 = vpop.f32.mrb[0].mxu0
  %v2392 = vadd.f32 %v2350, %v2391
  %v2393 = vpop.f32.mrb[0].mxu0
  %2394 = vdwg.mxu0
  %v2395 = vld [vmem:[%s2 + $0x508] sm:$0xff]
  %v2396 = vld [vmem:[%s2 + $0x510] sm:$0xff]
  %v2397 = vld [vmem:[%s2 + $0x518] sm:$0xff]
  %v2398 = vld [vmem:[%s2 + $0x520] sm:$0xff]
  %v2399 = vld [vmem:[%s2 + $0x528] sm:$0x1]
  %v2400 = vmul.f32 %v2389, %v178
  %v2401 = vmul.f32 %v2392, %v180
  %v2402 = vmul.f32 %v2389, %v182
  %v2403 = vmul.f32 %v2392, %v184
  %v2404 = vmul.f32 %v2389, %v186
  %v2405 = vmul.f32 %v2392, %v188
  %v2406 = vmul.f32 %v2389, %v190
  %v2407 = vmul.f32 %v2392, %v192
  %v2408 = vmul.f32 %v2389, %v210
  %v2409 = vmul.f32 %v2392, %v212
  %v2410 = vmul.f32 %v2389, %v214
  %v2411 = vmul.f32 %v2392, %v216
  %v2412 = vmul.f32 %v2389, %v218
  %v2413 = vmul.f32 %v2392, %v220
  %v2414 = vmul.f32 %v2389, %v222
  %v2415 = vmul.f32 %v2392, %v224
  %v2416 = vpack.c.bf16 %v2392, %v2389
  %v2417 = vpack.c.bf16 %v2401, %v2400
  %v2418 = vpack.c.bf16 %v2403, %v2402
  %v2419 = vpack.c.bf16 %v2405, %v2404
  %v2420 = vpack.c.bf16 %v2407, %v2406
  %2425 = vrot.lane.b32.xlu0 %v2417, 96
  %v2426 = vpop.permute.xlu0 %2425
  %2427 = vrot.lane.b32.xlu0 %v2418, 96
  %v2428 = vpop.permute.xlu0 %2427
  %2429 = vrot.lane.b32.xlu0 %v2419, 96
  %v2430 = vpop.permute.xlu0 %2429
  %2431 = vrot.lane.b32.xlu0 %v2420, 96
  %v2432 = vpop.permute.xlu0 %2431
  %v2434 = vsel %vm119, %v2416, 0
  %v2437 = vsel %vm119, %v2426, 0
  %v2440 = vsel %vm119, %v2428, 0
  %v2443 = vsel %vm119, %v2430, 0
  %v2446 = vsel %vm119, %v2432, 0
  %2448 = vmatprep.subr.bf16.mxu0 0
  %2449 = vmatpush1.bf16.xpose.msra.mxu0 %v2437
  %2450 = vmatprep.subr.bf16.mxu0 0
  %2451 = vmatpush1.bf16.xpose.msra.mxu0 %v2440
  %2452 = vmatprep.subr.bf16.mxu0 0
  %2453 = vmatpush1.bf16.xpose.msra.mxu0 %v2443
  %2454 = vmatprep.subr.bf16.mxu0 0
  %2455 = vmatpush1.bf16.xpose.msra.mxu0 %v2446
  %2456 = vmatprep.subr.bf16.mxu0 0
  %2457 = vmatpush1.bf16.xpose.msra.mxu0 0
  %2458 = vmatprep.subr.bf16.mxu0 0
  %2459 = vmatpush1.bf16.xpose.msra.mxu0 0
  %2460 = vmatprep.subr.bf16.mxu0 0
  %2461 = vmatpush1.bf16.xpose.msra.mxu0 0
  %2462 = vmatprep.subr.bf16.mxu0 0
  %2463 = vmatpush1.bf16.xpose.msra.mxu0 0
  %2464 = vmatprep.subr.bf16.mxu0 0
  %2465 = vmatpush1.bf16.xpose.msra.mxu0 0
  %2466 = vmatprep.subr.bf16.mxu0 0
  %2467 = vmatpush1.bf16.xpose.msra.mxu0 0
  %2468 = vmatprep.subr.bf16.mxu0 0
  %2469 = vmatpush1.bf16.xpose.msra.mxu0 0
  %2470 = vmatprep.subr.bf16.mxu0 0
  %2471 = vmatpush1.bf16.xpose.msra.mxu0 0
  %2472 = vmatprep.subr.bf16.mxu0 0
  %2473 = vmatpush1.bf16.xpose.msra.mxu0 0
  %2474 = vmatprep.subr.bf16.mxu0 0
  %2475 = vmatpush1.bf16.xpose.msra.mxu0 0
  %2476 = vmatprep.subr.bf16.mxu0 0
  %2477 = vmatpush1.bf16.xpose.msra.mxu0 0
  %2478 = vmatprep.subr.bf16.mxu0 0
  %2479 = vmatpush1.bf16.xpose.msra.mxu0 0
  %2480 = vmatprep.mubr.bf16.mxu0 0
  %2481 = vmatmul.mubr.bf16.gmra.mrb[0].mxu0 %v2434
  %v2482 = vpop.f32.mrb[0].mxu0
  %v2483 = vadd.f32 0.0, %v2482
  %v2484 = vpop.f32.mrb[0].mxu0
  %v2485 = vpop.f32.mrb[0].mxu0
  %v2486 = vadd.f32 0.0, %v2485
  %v2487 = vpop.f32.mrb[0].mxu0
  %2488 = vdwg.mxu0
  %v2489 = vmul.f32 %v2483, 0.35355338
  %v2490 = vmul.f32 %v2486, 0.35355338
  %v2491 = vadd.f32 %v2489, %v23
  %v2492 = vadd.f32 %v2490, %v24
  %v2493 = vsel %vm318, %v2491, -inf
  %2494 = vmax.xlane.f32.xlu0 %v2493
  %v2495 = vpop.xlane.xlu0 %2494
  %v2496 = vsel %vm318, %v2492, -inf
  %2497 = vmax.xlane.f32.xlu0 %v2496
  %v2498 = vpop.xlane.xlu0 %2497
  %v2499 = vsub.f32 %v2491, %v2495
  %v2500 = vsub.f32 %v2492, %v2498
  %v2501 = vmul.f32 %v2499, 1.442695
  %v2502 = vpow.pop %v2501
  %v2503 = vmul.f32 %v2500, 1.442695
  %v2504 = vpow.pop %v2503
  %v2505 = vpack.c.bf16 %v2504, %v2502
  %v2507 = vsel %vm318, %v2505, 0
  %2509 = vmatprep.subr.bf16.mxu0 0
  %2510 = vmatpush1.bf16.msra.mxu0 %v33
  %2511 = vmatprep.subr.bf16.mxu0 0
  %2512 = vmatpush1.bf16.msra.mxu0 %v34
  %2513 = vmatprep.subr.bf16.mxu0 0
  %2514 = vmatpush1.bf16.msra.mxu0 %v35
  %2515 = vmatprep.subr.bf16.mxu0 0
  %2516 = vmatpush1.bf16.msra.mxu0 %v36
  %2517 = vmatprep.subr.bf16.mxu0 0
  %2518 = vmatpush1.bf16.msra.mxu0 0
  %2519 = vmatprep.subr.bf16.mxu0 0
  %2520 = vmatpush1.bf16.msra.mxu0 0
  %2521 = vmatprep.subr.bf16.mxu0 0
  %2522 = vmatpush1.bf16.msra.mxu0 0
  %2523 = vmatprep.subr.bf16.mxu0 0
  %2524 = vmatpush1.bf16.msra.mxu0 0
  %2525 = vmatprep.subr.bf16.mxu0 0
  %2526 = vmatpush1.bf16.msra.mxu0 0
  %2527 = vmatprep.subr.bf16.mxu0 0
  %2528 = vmatpush1.bf16.msra.mxu0 0
  %2529 = vmatprep.subr.bf16.mxu0 0
  %2530 = vmatpush1.bf16.msra.mxu0 0
  %2531 = vmatprep.subr.bf16.mxu0 0
  %2532 = vmatpush1.bf16.msra.mxu0 0
  %2533 = vmatprep.subr.bf16.mxu0 0
  %2534 = vmatpush1.bf16.msra.mxu0 0
  %2535 = vmatprep.subr.bf16.mxu0 0
  %2536 = vmatpush1.bf16.msra.mxu0 0
  %2537 = vmatprep.subr.bf16.mxu0 0
  %2538 = vmatpush1.bf16.msra.mxu0 0
  %2539 = vmatprep.subr.bf16.mxu0 0
  %2540 = vmatpush1.bf16.msra.mxu0 0
  %2541 = vmatprep.mubr.bf16.mxu0 0
  %2542 = vmatmul.mubr.bf16.gmra.mrb[0].mxu0 %v2507
  %v2543 = vpop.f32.mrb[0].mxu0
  %v2544 = vadd.f32 0.0, %v2543
  %v2545 = vpop.f32.mrb[0].mxu0
  %v2546 = vpop.f32.mrb[0].mxu0
  %v2547 = vadd.f32 0.0, %v2546
  %v2548 = vpop.f32.mrb[0].mxu0
  %2549 = vdwg.mxu0
  %v2550 = vmax.f32 %v2544, 1e-30
  %v2551 = vmax.f32 %v2547, 1e-30
  %v2552 = vrcp.pop %v2550
  %v2553 = vrcp.pop %v2551
  %v2554 = vmul.f32 %v2502, %v2552
  %v2555 = vmul.f32 %v2504, %v2553
  %v2556 = vpack.c.bf16 %v2555, %v2554
  %v2557 = vpack.c.bf16 %v2409, %v2408
  %v2558 = vpack.c.bf16 %v2411, %v2410
  %v2559 = vpack.c.bf16 %v2413, %v2412
  %v2560 = vpack.c.bf16 %v2415, %v2414
  %2565 = vrot.lane.b32.xlu0 %v2557, 64
  %v2566 = vpop.permute.xlu0 %2565
  %2567 = vrot.lane.b32.xlu0 %v2558, 64
  %v2568 = vpop.permute.xlu0 %2567
  %2569 = vrot.lane.b32.xlu0 %v2559, 64
  %v2570 = vpop.permute.xlu0 %2569
  %2571 = vrot.lane.b32.xlu0 %v2560, 64
  %v2572 = vpop.permute.xlu0 %2571
  %v2578 = vsel %vm318, %v2556, 0
  %2580 = vmatprep.subr.bf16.mxu0 0
  %2581 = vmatpush1.bf16.msra.mxu0 %v2566
  %2582 = vmatprep.subr.bf16.mxu0 0
  %2583 = vmatpush1.bf16.msra.mxu0 %v2568
  %2584 = vmatprep.subr.bf16.mxu0 0
  %2585 = vmatpush1.bf16.msra.mxu0 %v2570
  %2586 = vmatprep.subr.bf16.mxu0 0
  %2587 = vmatpush1.bf16.msra.mxu0 %v2572
  %2588 = vmatprep.subr.bf16.mxu0 0
  %2589 = vmatpush1.bf16.msra.mxu0 0
  %2590 = vmatprep.subr.bf16.mxu0 0
  %2591 = vmatpush1.bf16.msra.mxu0 0
  %2592 = vmatprep.subr.bf16.mxu0 0
  %2593 = vmatpush1.bf16.msra.mxu0 0
  %2594 = vmatprep.subr.bf16.mxu0 0
  %2595 = vmatpush1.bf16.msra.mxu0 0
  %2596 = vmatprep.subr.bf16.mxu0 0
  %2597 = vmatpush1.bf16.msra.mxu0 0
  %2598 = vmatprep.subr.bf16.mxu0 0
  %2599 = vmatpush1.bf16.msra.mxu0 0
  %2600 = vmatprep.subr.bf16.mxu0 0
  %2601 = vmatpush1.bf16.msra.mxu0 0
  %2602 = vmatprep.subr.bf16.mxu0 0
  %2603 = vmatpush1.bf16.msra.mxu0 0
  %2604 = vmatprep.subr.bf16.mxu0 0
  %2605 = vmatpush1.bf16.msra.mxu0 0
  %2606 = vmatprep.subr.bf16.mxu0 0
  %2607 = vmatpush1.bf16.msra.mxu0 0
  %2608 = vmatprep.subr.bf16.mxu0 0
  %2609 = vmatpush1.bf16.msra.mxu0 0
  %2610 = vmatprep.subr.bf16.mxu0 0
  %2611 = vmatpush1.bf16.msra.mxu0 0
  %2612 = vmatprep.mubr.bf16.mxu0 0
  %2613 = vmatmul.mubr.bf16.gmra.mrb[0].mxu0 %v2578
  %v2614 = vpop.f32.mrb[0].mxu0
  %v2615 = vadd.f32 0.0, %v2614
  %v2616 = vpop.f32.mrb[0].mxu0
  %v2617 = vpop.f32.mrb[0].mxu0
  %v2618 = vadd.f32 0.0, %v2617
  %v2619 = vpop.f32.mrb[0].mxu0
  %2620 = vdwg.mxu0
  %v2621 = vpack.c.bf16 %v2618, %v2615
  %v2622 = vpack.c.bf16 %v2396, %v2395
  %v2623 = vpack.c.bf16 %v2398, %v2397
  %v2624 = vlaneseq
  %v2625 = vshrl.u32 %v2624, 7
  %v2626 = vsub.s32 0, %v2625
  %v2627 = vrot.slane %v2399, %v2626
  %v2629 = vsel %vm119, %v2621, 0
  %2631 = vmatprep.subr.bf16.mxu0 0
  %2632 = vmatpush1.bf16.msra.mxu0 %v2622
  %2633 = vmatprep.subr.bf16.mxu0 0
  %2634 = vmatpush1.bf16.msra.mxu0 %v2623
  %2635 = vmatprep.subr.bf16.mxu0 0
  %2636 = vmatpush1.bf16.msra.mxu0 0
  %2637 = vmatprep.subr.bf16.mxu0 0
  %2638 = vmatpush1.bf16.msra.mxu0 0
  %2639 = vmatprep.subr.bf16.mxu0 0
  %2640 = vmatpush1.bf16.msra.mxu0 0
  %2641 = vmatprep.subr.bf16.mxu0 0
  %2642 = vmatpush1.bf16.msra.mxu0 0
  %2643 = vmatprep.subr.bf16.mxu0 0
  %2644 = vmatpush1.bf16.msra.mxu0 0
  %2645 = vmatprep.subr.bf16.mxu0 0
  %2646 = vmatpush1.bf16.msra.mxu0 0
  %2647 = vmatprep.subr.bf16.mxu0 0
  %2648 = vmatpush1.bf16.msra.mxu0 0
  %2649 = vmatprep.subr.bf16.mxu0 0
  %2650 = vmatpush1.bf16.msra.mxu0 0
  %2651 = vmatprep.subr.bf16.mxu0 0
  %2652 = vmatpush1.bf16.msra.mxu0 0
  %2653 = vmatprep.subr.bf16.mxu0 0
  %2654 = vmatpush1.bf16.msra.mxu0 0
  %2655 = vmatprep.subr.bf16.mxu0 0
  %2656 = vmatpush1.bf16.msra.mxu0 0
  %2657 = vmatprep.subr.bf16.mxu0 0
  %2658 = vmatpush1.bf16.msra.mxu0 0
  %2659 = vmatprep.subr.bf16.mxu0 0
  %2660 = vmatpush1.bf16.msra.mxu0 0
  %2661 = vmatprep.subr.bf16.mxu0 0
  %2662 = vmatpush1.bf16.msra.mxu0 0
  %2663 = vmatprep.mubr.bf16.mxu0 0
  %2664 = vmatmul.mubr.bf16.gmra.mrb[0].mxu0 %v2629
  %v2665 = vpop.f32.mrb[0].mxu0
  %v2666 = vadd.f32 %v2627, %v2665
  %v2667 = vpop.f32.mrb[0].mxu0
  %v2668 = vpop.f32.mrb[0].mxu0
  %v2669 = vadd.f32 %v2627, %v2668
  %v2670 = vpop.f32.mrb[0].mxu0
  %2671 = vdwg.mxu0
  %v2672 = vadd.f32 %v2337, %v2666
  %v2673 = vadd.f32 %v2338, %v2669
  %v2674 = vld [vmem:[%s2 + $0x5a8] sm:$0x3]
  %v2675 = vsel %vm119, %v2672, 0.0
  %2676 = vadd.xlane.f32.xlu0 %v2675
  %v2677 = vpop.xlane.xlu0 %2676
  %v2678 = vsel %vm119, %v2673, 0.0
  %2679 = vadd.xlane.f32.xlu0 %v2678
  %v2680 = vpop.xlane.xlu0 %2679
  %v2681 = vmul.f32 %v2677, %v507
  %v2682 = vmul.f32 %v2680, %v507
  %v2683 = vsub.f32 %v2672, %v2681
  %v2684 = vsub.f32 %v2673, %v2682
  %v2685 = vmul.f32 %v2683, %v2683
  %v2686 = vmul.f32 %v2684, %v2684
  %v2687 = vsel %vm119, %v2685, 0.0
  %2688 = vadd.xlane.f32.xlu0 %v2687
  %v2689 = vpop.xlane.xlu0 %2688
  %v2690 = vsel %vm119, %v2686, 0.0
  %2691 = vadd.xlane.f32.xlu0 %v2690
  %v2692 = vpop.xlane.xlu0 %2691
  %v2693 = vmul.f32 %v2689, %v507
  %v2694 = vmul.f32 %v2692, %v507
  %v2695 = vadd.f32 %v2693, 1e-05
  %v2696 = vadd.f32 %v2694, 1e-05
  %v2697 = vrsqrt.pop %v2695
  %v2698 = vrsqrt.pop %v2696
  %v2699 = vmul.f32 %v2683, %v2697
  %v2700 = vmul.f32 %v2684, %v2698
  %v2701 = vlaneseq
  %v2702 = vshrl.u32 %v2701, 7
  %v2703 = vsub.s32 0, %v2702
  %v2704 = vrot.slane %v2674, %v2703
  %v2705 = vmul.f32 %v2699, %v2704
  %v2706 = vmul.f32 %v2700, %v2704
  %v2707 = vlaneseq
  %v2708 = vshrl.u32 %v2707, 7
  %v2709 = vsub.s32 1, %v2708
  %v2710 = vrot.slane %v2674, %v2709
  %v2711 = vadd.f32 %v2705, %v2710
  %v2712 = vadd.f32 %v2706, %v2710
  %v2713 = vld [vmem:[%s2 + $0x530] sm:$0xff]
  %v2714 = vld [vmem:[%s2 + $0x538] sm:$0xff]
  %v2715 = vld [vmem:[%s2 + $0x540] sm:$0xff]
  %v2716 = vld [vmem:[%s2 + $0x548] sm:$0xff]
  %v2717 = vpack.c.bf16 %v2712, %v2711
  %v2718 = vpack.c.bf16 %v2714, %v2713
  %v2719 = vpack.c.bf16 %v2716, %v2715
  %v2720 = vld [vmem:[%s2 + $0x550] sm:$0x1]
  %v2721 = vlaneseq
  %v2722 = vshrl.u32 %v2721, 7
  %v2723 = vsub.s32 0, %v2722
  %v2724 = vrot.slane %v2720, %v2723
  %v2726 = vsel %vm119, %v2717, 0
  %2728 = vmatprep.subr.bf16.mxu0 0
  %2729 = vmatpush1.bf16.msra.mxu0 %v2718
  %2730 = vmatprep.subr.bf16.mxu0 0
  %2731 = vmatpush1.bf16.msra.mxu0 %v2719
  %2732 = vmatprep.subr.bf16.mxu0 0
  %2733 = vmatpush1.bf16.msra.mxu0 0
  %2734 = vmatprep.subr.bf16.mxu0 0
  %2735 = vmatpush1.bf16.msra.mxu0 0
  %2736 = vmatprep.subr.bf16.mxu0 0
  %2737 = vmatpush1.bf16.msra.mxu0 0
  %2738 = vmatprep.subr.bf16.mxu0 0
  %2739 = vmatpush1.bf16.msra.mxu0 0
  %2740 = vmatprep.subr.bf16.mxu0 0
  %2741 = vmatpush1.bf16.msra.mxu0 0
  %2742 = vmatprep.subr.bf16.mxu0 0
  %2743 = vmatpush1.bf16.msra.mxu0 0
  %2744 = vmatprep.subr.bf16.mxu0 0
  %2745 = vmatpush1.bf16.msra.mxu0 0
  %2746 = vmatprep.subr.bf16.mxu0 0
  %2747 = vmatpush1.bf16.msra.mxu0 0
  %2748 = vmatprep.subr.bf16.mxu0 0
  %2749 = vmatpush1.bf16.msra.mxu0 0
  %2750 = vmatprep.subr.bf16.mxu0 0
  %2751 = vmatpush1.bf16.msra.mxu0 0
  %2752 = vmatprep.subr.bf16.mxu0 0
  %2753 = vmatpush1.bf16.msra.mxu0 0
  %2754 = vmatprep.subr.bf16.mxu0 0
  %2755 = vmatpush1.bf16.msra.mxu0 0
  %2756 = vmatprep.subr.bf16.mxu0 0
  %2757 = vmatpush1.bf16.msra.mxu0 0
  %2758 = vmatprep.subr.bf16.mxu0 0
  %2759 = vmatpush1.bf16.msra.mxu0 0
  %2760 = vmatprep.mubr.bf16.mxu0 0
  %2761 = vmatmul.mubr.bf16.gmra.mrb[0].mxu0 %v2726
  %v2762 = vpop.f32.mrb[0].mxu0
  %v2763 = vadd.f32 %v2724, %v2762
  %v2764 = vpop.f32.mrb[0].mxu0
  %v2765 = vpop.f32.mrb[0].mxu0
  %v2766 = vadd.f32 %v2724, %v2765
  %v2767 = vpop.f32.mrb[0].mxu0
  %2768 = vdwg.mxu0
  %v2769 = vld [vmem:[%s2 + $0x558] sm:$0xff]
  %v2770 = vld [vmem:[%s2 + $0x560] sm:$0xff]
  %v2771 = vld [vmem:[%s2 + $0x568] sm:$0xff]
  %v2772 = vld [vmem:[%s2 + $0x570] sm:$0xff]
  %v2773 = vpack.c.bf16 %v2770, %v2769
  %v2774 = vpack.c.bf16 %v2772, %v2771
  %v2775 = vld [vmem:[%s2 + $0x578] sm:$0x1]
  %v2776 = vlaneseq
  %v2777 = vshrl.u32 %v2776, 7
  %v2778 = vsub.s32 0, %v2777
  %v2779 = vrot.slane %v2775, %v2778
  %2780 = vmatprep.subr.bf16.mxu0 0
  %2781 = vmatpush1.bf16.msra.mxu0 %v2773
  %2782 = vmatprep.subr.bf16.mxu0 0
  %2783 = vmatpush1.bf16.msra.mxu0 %v2774
  %2784 = vmatprep.subr.bf16.mxu0 0
  %2785 = vmatpush1.bf16.msra.mxu0 0
  %2786 = vmatprep.subr.bf16.mxu0 0
  %2787 = vmatpush1.bf16.msra.mxu0 0
  %2788 = vmatprep.subr.bf16.mxu0 0
  %2789 = vmatpush1.bf16.msra.mxu0 0
  %2790 = vmatprep.subr.bf16.mxu0 0
  %2791 = vmatpush1.bf16.msra.mxu0 0
  %2792 = vmatprep.subr.bf16.mxu0 0
  %2793 = vmatpush1.bf16.msra.mxu0 0
  %2794 = vmatprep.subr.bf16.mxu0 0
  %2795 = vmatpush1.bf16.msra.mxu0 0
  %2796 = vmatprep.subr.bf16.mxu0 0
  %2797 = vmatpush1.bf16.msra.mxu0 0
  %2798 = vmatprep.subr.bf16.mxu0 0
  %2799 = vmatpush1.bf16.msra.mxu0 0
  %2800 = vmatprep.subr.bf16.mxu0 0
  %2801 = vmatpush1.bf16.msra.mxu0 0
  %2802 = vmatprep.subr.bf16.mxu0 0
  %2803 = vmatpush1.bf16.msra.mxu0 0
  %2804 = vmatprep.subr.bf16.mxu0 0
  %2805 = vmatpush1.bf16.msra.mxu0 0
  %2806 = vmatprep.subr.bf16.mxu0 0
  %2807 = vmatpush1.bf16.msra.mxu0 0
  %2808 = vmatprep.subr.bf16.mxu0 0
  %2809 = vmatpush1.bf16.msra.mxu0 0
  %2810 = vmatprep.subr.bf16.mxu0 0
  %2811 = vmatpush1.bf16.msra.mxu0 0
  %2812 = vmatprep.mubr.bf16.mxu0 0
  %2813 = vmatmul.mubr.bf16.gmra.mrb[0].mxu0 %v1820
  %v2814 = vpop.f32.mrb[0].mxu0
  %v2815 = vadd.f32 %v2779, %v2814
  %v2816 = vpop.f32.mrb[0].mxu0
  %v2817 = vpop.f32.mrb[0].mxu0
  %v2818 = vadd.f32 %v2779, %v2817
  %v2819 = vpop.f32.mrb[0].mxu0
  %2820 = vdwg.mxu0
  %v2821 = vld [vmem:[%s2 + $0x580] sm:$0xff]
  %v2822 = vld [vmem:[%s2 + $0x588] sm:$0xff]
  %v2823 = vld [vmem:[%s2 + $0x590] sm:$0xff]
  %v2824 = vld [vmem:[%s2 + $0x598] sm:$0xff]
  %v2825 = vld [vmem:[%s2 + $0x5a0] sm:$0x1]
  %v2826 = vmul.f32 %v2815, %v15
  %v2827 = vmul.f32 %v2818, %v16
  %v2828 = vmul.f32 %v2815, %v17
  %v2829 = vmul.f32 %v2818, %v18
  %v2830 = vmul.f32 %v2815, %v19
  %v2831 = vmul.f32 %v2818, %v20
  %v2832 = vmul.f32 %v2815, %v21
  %v2833 = vmul.f32 %v2818, %v22
  %v2834 = vmul.f32 %v2815, %v178
  %v2835 = vmul.f32 %v2818, %v180
  %v2836 = vmul.f32 %v2815, %v182
  %v2837 = vmul.f32 %v2818, %v184
  %v2838 = vmul.f32 %v2815, %v186
  %v2839 = vmul.f32 %v2818, %v188
  %v2840 = vmul.f32 %v2815, %v190
  %v2841 = vmul.f32 %v2818, %v192
  %v2842 = vpack.c.bf16 %v2766, %v2763
  %v2843 = vpack.c.bf16 %v2827, %v2826
  %v2844 = vpack.c.bf16 %v2829, %v2828
  %v2845 = vpack.c.bf16 %v2831, %v2830
  %v2846 = vpack.c.bf16 %v2833, %v2832
  %v2848 = vsel %vm119, %v2842, 0
  %v2851 = vsel %vm119, %v2843, 0
  %v2854 = vsel %vm119, %v2844, 0
  %v2857 = vsel %vm119, %v2845, 0
  %v2860 = vsel %vm119, %v2846, 0
  %2862 = vmatprep.subr.bf16.mxu0 0
  %2863 = vmatpush1.bf16.xpose.msra.mxu0 %v2851
  %2864 = vmatprep.subr.bf16.mxu0 0
  %2865 = vmatpush1.bf16.xpose.msra.mxu0 %v2854
  %2866 = vmatprep.subr.bf16.mxu0 0
  %2867 = vmatpush1.bf16.xpose.msra.mxu0 %v2857
  %2868 = vmatprep.subr.bf16.mxu0 0
  %2869 = vmatpush1.bf16.xpose.msra.mxu0 %v2860
  %2870 = vmatprep.subr.bf16.mxu0 0
  %2871 = vmatpush1.bf16.xpose.msra.mxu0 0
  %2872 = vmatprep.subr.bf16.mxu0 0
  %2873 = vmatpush1.bf16.xpose.msra.mxu0 0
  %2874 = vmatprep.subr.bf16.mxu0 0
  %2875 = vmatpush1.bf16.xpose.msra.mxu0 0
  %2876 = vmatprep.subr.bf16.mxu0 0
  %2877 = vmatpush1.bf16.xpose.msra.mxu0 0
  %2878 = vmatprep.subr.bf16.mxu0 0
  %2879 = vmatpush1.bf16.xpose.msra.mxu0 0
  %2880 = vmatprep.subr.bf16.mxu0 0
  %2881 = vmatpush1.bf16.xpose.msra.mxu0 0
  %2882 = vmatprep.subr.bf16.mxu0 0
  %2883 = vmatpush1.bf16.xpose.msra.mxu0 0
  %2884 = vmatprep.subr.bf16.mxu0 0
  %2885 = vmatpush1.bf16.xpose.msra.mxu0 0
  %2886 = vmatprep.subr.bf16.mxu0 0
  %2887 = vmatpush1.bf16.xpose.msra.mxu0 0
  %2888 = vmatprep.subr.bf16.mxu0 0
  %2889 = vmatpush1.bf16.xpose.msra.mxu0 0
  %2890 = vmatprep.subr.bf16.mxu0 0
  %2891 = vmatpush1.bf16.xpose.msra.mxu0 0
  %2892 = vmatprep.subr.bf16.mxu0 0
  %2893 = vmatpush1.bf16.xpose.msra.mxu0 0
  %2894 = vmatprep.mubr.bf16.mxu0 0
  %2895 = vmatmul.mubr.bf16.gmra.mrb[0].mxu0 %v2848
  %v2896 = vpop.f32.mrb[0].mxu0
  %v2897 = vadd.f32 0.0, %v2896
  %v2898 = vpop.f32.mrb[0].mxu0
  %v2899 = vpop.f32.mrb[0].mxu0
  %v2900 = vadd.f32 0.0, %v2899
  %v2901 = vpop.f32.mrb[0].mxu0
  %2902 = vdwg.mxu0
  %v2903 = vmul.f32 %v2897, 0.35355338
  %v2904 = vmul.f32 %v2900, 0.35355338
  %v2905 = vadd.f32 %v2903, %v23
  %v2906 = vadd.f32 %v2904, %v24
  %v2907 = vsel %vm318, %v2905, -inf
  %2908 = vmax.xlane.f32.xlu0 %v2907
  %v2909 = vpop.xlane.xlu0 %2908
  %v2910 = vsel %vm318, %v2906, -inf
  %2911 = vmax.xlane.f32.xlu0 %v2910
  %v2912 = vpop.xlane.xlu0 %2911
  %v2913 = vsub.f32 %v2905, %v2909
  %v2914 = vsub.f32 %v2906, %v2912
  %v2915 = vmul.f32 %v2913, 1.442695
  %v2916 = vpow.pop %v2915
  %v2917 = vmul.f32 %v2914, 1.442695
  %v2918 = vpow.pop %v2917
  %v2919 = vpack.c.bf16 %v2918, %v2916
  %v2921 = vsel %vm318, %v2919, 0
  %2923 = vmatprep.subr.bf16.mxu0 0
  %2924 = vmatpush1.bf16.msra.mxu0 %v33
  %2925 = vmatprep.subr.bf16.mxu0 0
  %2926 = vmatpush1.bf16.msra.mxu0 %v34
  %2927 = vmatprep.subr.bf16.mxu0 0
  %2928 = vmatpush1.bf16.msra.mxu0 %v35
  %2929 = vmatprep.subr.bf16.mxu0 0
  %2930 = vmatpush1.bf16.msra.mxu0 %v36
  %2931 = vmatprep.subr.bf16.mxu0 0
  %2932 = vmatpush1.bf16.msra.mxu0 0
  %2933 = vmatprep.subr.bf16.mxu0 0
  %2934 = vmatpush1.bf16.msra.mxu0 0
  %2935 = vmatprep.subr.bf16.mxu0 0
  %2936 = vmatpush1.bf16.msra.mxu0 0
  %2937 = vmatprep.subr.bf16.mxu0 0
  %2938 = vmatpush1.bf16.msra.mxu0 0
  %2939 = vmatprep.subr.bf16.mxu0 0
  %2940 = vmatpush1.bf16.msra.mxu0 0
  %2941 = vmatprep.subr.bf16.mxu0 0
  %2942 = vmatpush1.bf16.msra.mxu0 0
  %2943 = vmatprep.subr.bf16.mxu0 0
  %2944 = vmatpush1.bf16.msra.mxu0 0
  %2945 = vmatprep.subr.bf16.mxu0 0
  %2946 = vmatpush1.bf16.msra.mxu0 0
  %2947 = vmatprep.subr.bf16.mxu0 0
  %2948 = vmatpush1.bf16.msra.mxu0 0
  %2949 = vmatprep.subr.bf16.mxu0 0
  %2950 = vmatpush1.bf16.msra.mxu0 0
  %2951 = vmatprep.subr.bf16.mxu0 0
  %2952 = vmatpush1.bf16.msra.mxu0 0
  %2953 = vmatprep.subr.bf16.mxu0 0
  %2954 = vmatpush1.bf16.msra.mxu0 0
  %2955 = vmatprep.mubr.bf16.mxu0 0
  %2956 = vmatmul.mubr.bf16.gmra.mrb[0].mxu0 %v2921
  %v2957 = vpop.f32.mrb[0].mxu0
  %v2958 = vadd.f32 0.0, %v2957
  %v2959 = vpop.f32.mrb[0].mxu0
  %v2960 = vpop.f32.mrb[0].mxu0
  %v2961 = vadd.f32 0.0, %v2960
  %v2962 = vpop.f32.mrb[0].mxu0
  %2963 = vdwg.mxu0
  %v2964 = vmax.f32 %v2958, 1e-30
  %v2965 = vmax.f32 %v2961, 1e-30
  %v2966 = vrcp.pop %v2964
  %v2967 = vrcp.pop %v2965
  %v2968 = vmul.f32 %v2916, %v2966
  %v2969 = vmul.f32 %v2918, %v2967
  %v2970 = vpack.c.bf16 %v2969, %v2968
  %v2971 = vpack.c.bf16 %v2835, %v2834
  %v2972 = vpack.c.bf16 %v2837, %v2836
  %v2973 = vpack.c.bf16 %v2839, %v2838
  %v2974 = vpack.c.bf16 %v2841, %v2840
  %2979 = vrot.lane.b32.xlu0 %v2971, 96
  %v2980 = vpop.permute.xlu0 %2979
  %2981 = vrot.lane.b32.xlu0 %v2972, 96
  %v2982 = vpop.permute.xlu0 %2981
  %2983 = vrot.lane.b32.xlu0 %v2973, 96
  %v2984 = vpop.permute.xlu0 %2983
  %2985 = vrot.lane.b32.xlu0 %v2974, 96
  %v2986 = vpop.permute.xlu0 %2985
  %v2992 = vsel %vm318, %v2970, 0
  %2994 = vmatprep.subr.bf16.mxu0 0
  %2995 = vmatpush1.bf16.msra.mxu0 %v2980
  %2996 = vmatprep.subr.bf16.mxu0 0
  %2997 = vmatpush1.bf16.msra.mxu0 %v2982
  %2998 = vmatprep.subr.bf16.mxu0 0
  %2999 = vmatpush1.bf16.msra.mxu0 %v2984
  %3000 = vmatprep.subr.bf16.mxu0 0
  %3001 = vmatpush1.bf16.msra.mxu0 %v2986
  %3002 = vmatprep.subr.bf16.mxu0 0
  %3003 = vmatpush1.bf16.msra.mxu0 0
  %3004 = vmatprep.subr.bf16.mxu0 0
  %3005 = vmatpush1.bf16.msra.mxu0 0
  %3006 = vmatprep.subr.bf16.mxu0 0
  %3007 = vmatpush1.bf16.msra.mxu0 0
  %3008 = vmatprep.subr.bf16.mxu0 0
  %3009 = vmatpush1.bf16.msra.mxu0 0
  %3010 = vmatprep.subr.bf16.mxu0 0
  %3011 = vmatpush1.bf16.msra.mxu0 0
  %3012 = vmatprep.subr.bf16.mxu0 0
  %3013 = vmatpush1.bf16.msra.mxu0 0
  %3014 = vmatprep.subr.bf16.mxu0 0
  %3015 = vmatpush1.bf16.msra.mxu0 0
  %3016 = vmatprep.subr.bf16.mxu0 0
  %3017 = vmatpush1.bf16.msra.mxu0 0
  %3018 = vmatprep.subr.bf16.mxu0 0
  %3019 = vmatpush1.bf16.msra.mxu0 0
  %3020 = vmatprep.subr.bf16.mxu0 0
  %3021 = vmatpush1.bf16.msra.mxu0 0
  %3022 = vmatprep.subr.bf16.mxu0 0
  %3023 = vmatpush1.bf16.msra.mxu0 0
  %3024 = vmatprep.subr.bf16.mxu0 0
  %3025 = vmatpush1.bf16.msra.mxu0 0
  %3026 = vmatprep.mubr.bf16.mxu0 0
  %3027 = vmatmul.mubr.bf16.gmra.mrb[0].mxu0 %v2992
  %v3028 = vpop.f32.mrb[0].mxu0
  %v3029 = vadd.f32 0.0, %v3028
  %v3030 = vpop.f32.mrb[0].mxu0
  %v3031 = vpop.f32.mrb[0].mxu0
  %v3032 = vadd.f32 0.0, %v3031
  %v3033 = vpop.f32.mrb[0].mxu0
  %3034 = vdwg.mxu0
  %v3035 = vpack.c.bf16 %v3032, %v3029
  %v3036 = vpack.c.bf16 %v2822, %v2821
  %v3037 = vpack.c.bf16 %v2824, %v2823
  %v3038 = vlaneseq
  %v3039 = vshrl.u32 %v3038, 7
  %v3040 = vsub.s32 0, %v3039
  %v3041 = vrot.slane %v2825, %v3040
  %v3043 = vsel %vm119, %v3035, 0
  %3045 = vmatprep.subr.bf16.mxu0 0
  %3046 = vmatpush1.bf16.msra.mxu0 %v3036
  %3047 = vmatprep.subr.bf16.mxu0 0
  %3048 = vmatpush1.bf16.msra.mxu0 %v3037
  %3049 = vmatprep.subr.bf16.mxu0 0
  %3050 = vmatpush1.bf16.msra.mxu0 0
  %3051 = vmatprep.subr.bf16.mxu0 0
  %3052 = vmatpush1.bf16.msra.mxu0 0
  %3053 = vmatprep.subr.bf16.mxu0 0
  %3054 = vmatpush1.bf16.msra.mxu0 0
  %3055 = vmatprep.subr.bf16.mxu0 0
  %3056 = vmatpush1.bf16.msra.mxu0 0
  %3057 = vmatprep.subr.bf16.mxu0 0
  %3058 = vmatpush1.bf16.msra.mxu0 0
  %3059 = vmatprep.subr.bf16.mxu0 0
  %3060 = vmatpush1.bf16.msra.mxu0 0
  %3061 = vmatprep.subr.bf16.mxu0 0
  %3062 = vmatpush1.bf16.msra.mxu0 0
  %3063 = vmatprep.subr.bf16.mxu0 0
  %3064 = vmatpush1.bf16.msra.mxu0 0
  %3065 = vmatprep.subr.bf16.mxu0 0
  %3066 = vmatpush1.bf16.msra.mxu0 0
  %3067 = vmatprep.subr.bf16.mxu0 0
  %3068 = vmatpush1.bf16.msra.mxu0 0
  %3069 = vmatprep.subr.bf16.mxu0 0
  %3070 = vmatpush1.bf16.msra.mxu0 0
  %3071 = vmatprep.subr.bf16.mxu0 0
  %3072 = vmatpush1.bf16.msra.mxu0 0
  %3073 = vmatprep.subr.bf16.mxu0 0
  %3074 = vmatpush1.bf16.msra.mxu0 0
  %3075 = vmatprep.subr.bf16.mxu0 0
  %3076 = vmatpush1.bf16.msra.mxu0 0
  %3077 = vmatprep.mubr.bf16.mxu0 0
  %3078 = vmatmul.mubr.bf16.gmra.mrb[0].mxu0 %v3043
  %v3079 = vpop.f32.mrb[0].mxu0
  %v3080 = vadd.f32 %v3041, %v3079
  %v3081 = vpop.f32.mrb[0].mxu0
  %v3082 = vpop.f32.mrb[0].mxu0
  %v3083 = vadd.f32 %v3041, %v3082
  %v3084 = vpop.f32.mrb[0].mxu0
  %3085 = vdwg.mxu0
  %v3086 = vadd.f32 %v2711, %v3080
  %v3087 = vadd.f32 %v2712, %v3083
  %v3088 = vld [vmem:[%s2 + $0x5b0] sm:$0x3]
  %v3089 = vsel %vm119, %v3086, 0.0
  %3090 = vadd.xlane.f32.xlu0 %v3089
  %v3091 = vpop.xlane.xlu0 %3090
  %v3092 = vsel %vm119, %v3087, 0.0
  %3093 = vadd.xlane.f32.xlu0 %v3092
  %v3094 = vpop.xlane.xlu0 %3093
  %v3095 = vmul.f32 %v3091, %v507
  %v3096 = vmul.f32 %v3094, %v507
  %v3097 = vsub.f32 %v3086, %v3095
  %v3098 = vsub.f32 %v3087, %v3096
  %v3099 = vmul.f32 %v3097, %v3097
  %v3100 = vmul.f32 %v3098, %v3098
  %v3101 = vsel %vm119, %v3099, 0.0
  %3102 = vadd.xlane.f32.xlu0 %v3101
  %v3103 = vpop.xlane.xlu0 %3102
  %v3104 = vsel %vm119, %v3100, 0.0
  %3105 = vadd.xlane.f32.xlu0 %v3104
  %v3106 = vpop.xlane.xlu0 %3105
  %v3107 = vmul.f32 %v3103, %v507
  %v3108 = vmul.f32 %v3106, %v507
  %v3109 = vadd.f32 %v3107, 1e-05
  %v3110 = vadd.f32 %v3108, 1e-05
  %v3111 = vrsqrt.pop %v3109
  %v3112 = vrsqrt.pop %v3110
  %v3113 = vmul.f32 %v3097, %v3111
  %v3114 = vmul.f32 %v3098, %v3112
  %v3115 = vlaneseq
  %v3116 = vshrl.u32 %v3115, 7
  %v3117 = vsub.s32 0, %v3116
  %v3118 = vrot.slane %v3088, %v3117
  %v3119 = vmul.f32 %v3113, %v3118
  %v3120 = vmul.f32 %v3114, %v3118
  %v3121 = vlaneseq
  %v3122 = vshrl.u32 %v3121, 7
  %v3123 = vsub.s32 1, %v3122
  %v3124 = vrot.slane %v3088, %v3123
  %v3125 = vadd.f32 %v3119, %v3124
  %v3126 = vadd.f32 %v3120, %v3124
  %v3127 = vld [vmem:[%s2 + $0x5c0] sm:$0xff]
  %v3128 = vld [vmem:[%s2 + $0x5c8] sm:$0xff]
  %v3129 = vld [vmem:[%s2 + $0x5d0] sm:$0xff]
  %v3130 = vld [vmem:[%s2 + $0x5d8] sm:$0xff]
  %v3131 = vpack.c.bf16 %v3126, %v3125
  %v3132 = vpack.c.bf16 %v3128, %v3127
  %v3133 = vpack.c.bf16 %v3130, %v3129
  %v3134 = vld [vmem:[%s2 + $0x5e0] sm:$0x1]
  %v3135 = vlaneseq
  %v3136 = vshrl.u32 %v3135, 7
  %v3137 = vsub.s32 0, %v3136
  %v3138 = vrot.slane %v3134, %v3137
  %v3140 = vsel %vm119, %v3131, 0
  %3142 = vmatprep.subr.bf16.mxu0 0
  %3143 = vmatpush1.bf16.msra.mxu0 %v3132
  %3144 = vmatprep.subr.bf16.mxu0 0
  %3145 = vmatpush1.bf16.msra.mxu0 %v3133
  %3146 = vmatprep.subr.bf16.mxu0 0
  %3147 = vmatpush1.bf16.msra.mxu0 0
  %3148 = vmatprep.subr.bf16.mxu0 0
  %3149 = vmatpush1.bf16.msra.mxu0 0
  %3150 = vmatprep.subr.bf16.mxu0 0
  %3151 = vmatpush1.bf16.msra.mxu0 0
  %3152 = vmatprep.subr.bf16.mxu0 0
  %3153 = vmatpush1.bf16.msra.mxu0 0
  %3154 = vmatprep.subr.bf16.mxu0 0
  %3155 = vmatpush1.bf16.msra.mxu0 0
  %3156 = vmatprep.subr.bf16.mxu0 0
  %3157 = vmatpush1.bf16.msra.mxu0 0
  %3158 = vmatprep.subr.bf16.mxu0 0
  %3159 = vmatpush1.bf16.msra.mxu0 0
  %3160 = vmatprep.subr.bf16.mxu0 0
  %3161 = vmatpush1.bf16.msra.mxu0 0
  %3162 = vmatprep.subr.bf16.mxu0 0
  %3163 = vmatpush1.bf16.msra.mxu0 0
  %3164 = vmatprep.subr.bf16.mxu0 0
  %3165 = vmatpush1.bf16.msra.mxu0 0
  %3166 = vmatprep.subr.bf16.mxu0 0
  %3167 = vmatpush1.bf16.msra.mxu0 0
  %3168 = vmatprep.subr.bf16.mxu0 0
  %3169 = vmatpush1.bf16.msra.mxu0 0
  %3170 = vmatprep.subr.bf16.mxu0 0
  %3171 = vmatpush1.bf16.msra.mxu0 0
  %3172 = vmatprep.subr.bf16.mxu0 0
  %3173 = vmatpush1.bf16.msra.mxu0 0
  %3174 = vmatprep.mubr.bf16.mxu0 0
  %3175 = vmatmul.mubr.bf16.gmra.mrb[0].mxu0 %v3140
  %v3176 = vpop.f32.mrb[0].mxu0
  %v3177 = vadd.f32 %v3138, %v3176
  %v3178 = vpop.f32.mrb[0].mxu0
  %v3179 = vpop.f32.mrb[0].mxu0
  %v3180 = vadd.f32 %v3138, %v3179
  %v3181 = vpop.f32.mrb[0].mxu0
  %3182 = vdwg.mxu0
  %v3183 = vmax.f32 %v3177, 0.0
  %v3184 = vmax.f32 %v3180, 0.0
  %v3185 = vld [vmem:[%s2 + $0x5e8] sm:$0xff]
  %v3186 = vld [vmem:[%s2 + $0x5f0] sm:$0xff]
  %v3187 = vld [vmem:[%s2 + $0x5f8] sm:$0xff]
  %v3188 = vld [vmem:[%s2 + $0x600] sm:$0xff]
  %v3189 = vld [vmem:[%s2 + $0x608] sm:$0xff]
  %v3190 = vld [vmem:[%s2 + $0x610] sm:$0xff]
  %v3191 = vld [vmem:[%s2 + $0x618] sm:$0xff]
  %v3192 = vld [vmem:[%s2 + $0x620] sm:$0xff]
  %v3193 = vld [vmem:[%s2 + $0x628] sm:$0xff]
  %v3194 = vld [vmem:[%s2 + $0x630] sm:$0xff]
  %v3195 = vld [vmem:[%s2 + $0x638] sm:$0xff]
  %v3196 = vld [vmem:[%s2 + $0x640] sm:$0xff]
  %v3197 = vld [vmem:[%s2 + $0x648] sm:$0xff]
  %v3198 = vld [vmem:[%s2 + $0x650] sm:$0xff]
  %v3199 = vld [vmem:[%s2 + $0x658] sm:$0xff]
  %v3200 = vld [vmem:[%s2 + $0x660] sm:$0xff]
  %v3201 = vpack.c.bf16 %v3184, %v3183
  %v3202 = vpack.c.bf16 %v3186, %v3185
  %v3203 = vpack.c.bf16 %v3188, %v3187
  %v3204 = vpack.c.bf16 %v3190, %v3189
  %v3205 = vpack.c.bf16 %v3192, %v3191
  %v3206 = vpack.c.bf16 %v3194, %v3193
  %v3207 = vpack.c.bf16 %v3196, %v3195
  %v3208 = vpack.c.bf16 %v3198, %v3197
  %v3209 = vpack.c.bf16 %v3200, %v3199
  %v3210 = vld [vmem:[%s2 + $0x668] sm:$0x1]
  %v3211 = vlaneseq
  %v3212 = vshrl.u32 %v3211, 7
  %v3213 = vsub.s32 0, %v3212
  %v3214 = vrot.slane %v3210, %v3213
  %3215 = vmatprep.subr.bf16.mxu0 0
  %3216 = vmatpush1.bf16.msra.mxu0 %v3202
  %3217 = vmatprep.subr.bf16.mxu0 0
  %3218 = vmatpush1.bf16.msra.mxu0 %v3203
  %3219 = vmatprep.subr.bf16.mxu0 0
  %3220 = vmatpush1.bf16.msra.mxu0 %v3204
  %3221 = vmatprep.subr.bf16.mxu0 0
  %3222 = vmatpush1.bf16.msra.mxu0 %v3205
  %3223 = vmatprep.subr.bf16.mxu0 0
  %3224 = vmatpush1.bf16.msra.mxu0 %v3206
  %3225 = vmatprep.subr.bf16.mxu0 0
  %3226 = vmatpush1.bf16.msra.mxu0 %v3207
  %3227 = vmatprep.subr.bf16.mxu0 0
  %3228 = vmatpush1.bf16.msra.mxu0 %v3208
  %3229 = vmatprep.subr.bf16.mxu0 0
  %3230 = vmatpush1.bf16.msra.mxu0 %v3209
  %3231 = vmatprep.subr.bf16.mxu0 0
  %3232 = vmatpush1.bf16.msra.mxu0 0
  %3233 = vmatprep.subr.bf16.mxu0 0
  %3234 = vmatpush1.bf16.msra.mxu0 0
  %3235 = vmatprep.subr.bf16.mxu0 0
  %3236 = vmatpush1.bf16.msra.mxu0 0
  %3237 = vmatprep.subr.bf16.mxu0 0
  %3238 = vmatpush1.bf16.msra.mxu0 0
  %3239 = vmatprep.subr.bf16.mxu0 0
  %3240 = vmatpush1.bf16.msra.mxu0 0
  %3241 = vmatprep.subr.bf16.mxu0 0
  %3242 = vmatpush1.bf16.msra.mxu0 0
  %3243 = vmatprep.subr.bf16.mxu0 0
  %3244 = vmatpush1.bf16.msra.mxu0 0
  %3245 = vmatprep.subr.bf16.mxu0 0
  %3246 = vmatpush1.bf16.msra.mxu0 0
  %3247 = vmatprep.mubr.bf16.mxu0 0
  %3248 = vmatmul.mubr.bf16.gmra.mrb[0].mxu0 %v3201
  %v3249 = vpop.f32.mrb[0].mxu0
  %v3250 = vadd.f32 %v3214, %v3249
  %v3251 = vpop.f32.mrb[0].mxu0
  %v3252 = vpop.f32.mrb[0].mxu0
  %v3253 = vadd.f32 %v3214, %v3252
  %v3254 = vpop.f32.mrb[0].mxu0
  %3255 = vdwg.mxu0
  %v3256 = vadd.f32 %v3125, %v3250
  %v3257 = vadd.f32 %v3126, %v3253
  %v3258 = vld [vmem:[%s2 + $0x5b8] sm:$0x3]
  %v3259 = vsel %vm119, %v3256, 0.0
  %3260 = vadd.xlane.f32.xlu0 %v3259
  %v3261 = vpop.xlane.xlu0 %3260
  %v3262 = vsel %vm119, %v3257, 0.0
  %3263 = vadd.xlane.f32.xlu0 %v3262
  %v3264 = vpop.xlane.xlu0 %3263
  %v3265 = vmul.f32 %v3261, %v507
  %v3266 = vmul.f32 %v3264, %v507
  %v3267 = vsub.f32 %v3256, %v3265
  %v3268 = vsub.f32 %v3257, %v3266
  %v3269 = vmul.f32 %v3267, %v3267
  %v3270 = vmul.f32 %v3268, %v3268
  %v3271 = vsel %vm119, %v3269, 0.0
  %3272 = vadd.xlane.f32.xlu0 %v3271
  %v3273 = vpop.xlane.xlu0 %3272
  %v3274 = vsel %vm119, %v3270, 0.0
  %3275 = vadd.xlane.f32.xlu0 %v3274
  %v3276 = vpop.xlane.xlu0 %3275
  %v3277 = vmul.f32 %v3273, %v507
  %v3278 = vmul.f32 %v3276, %v507
  %v3279 = vadd.f32 %v3277, 1e-05
  %v3280 = vadd.f32 %v3278, 1e-05
  %v3281 = vrsqrt.pop %v3279
  %v3282 = vrsqrt.pop %v3280
  %v3283 = vmul.f32 %v3267, %v3281
  %v3284 = vmul.f32 %v3268, %v3282
  %v3285 = vlaneseq
  %v3286 = vshrl.u32 %v3285, 7
  %v3287 = vsub.s32 0, %v3286
  %v3288 = vrot.slane %v3258, %v3287
  %v3289 = vmul.f32 %v3283, %v3288
  %v3290 = vmul.f32 %v3284, %v3288
  %v3291 = vlaneseq
  %v3292 = vshrl.u32 %v3291, 7
  %v3293 = vsub.s32 1, %v3292
  %v3294 = vrot.slane %v3258, %v3293
  %v3295 = vadd.f32 %v3289, %v3294
  %v3296 = vadd.f32 %v3290, %v3294
  %v3297 = vld [vmem:[%s2 + $0x670] sm:$0xff]
  %v3298 = vld [vmem:[%s2 + $0x678] sm:$0xff]
  %v3299 = vld [vmem:[%s2 + $0x680] sm:$0xff]
  %v3300 = vld [vmem:[%s2 + $0x688] sm:$0xff]
  %v3301 = vpack.c.bf16 %v3296, %v3295
  %v3302 = vpack.c.bf16 %v3298, %v3297
  %v3303 = vpack.c.bf16 %v3300, %v3299
  %v3304 = vld [vmem:[%s2 + $0x690] sm:$0x1]
  %v3305 = vlaneseq
  %v3306 = vshrl.u32 %v3305, 7
  %v3307 = vsub.s32 0, %v3306
  %v3308 = vrot.slane %v3304, %v3307
  %v3310 = vsel %vm119, %v3301, 0
  %3312 = vmatprep.subr.bf16.mxu0 0
  %3313 = vmatpush1.bf16.msra.mxu0 %v3302
  %3314 = vmatprep.subr.bf16.mxu0 0
  %3315 = vmatpush1.bf16.msra.mxu0 %v3303
  %3316 = vmatprep.subr.bf16.mxu0 0
  %3317 = vmatpush1.bf16.msra.mxu0 0
  %3318 = vmatprep.subr.bf16.mxu0 0
  %3319 = vmatpush1.bf16.msra.mxu0 0
  %3320 = vmatprep.subr.bf16.mxu0 0
  %3321 = vmatpush1.bf16.msra.mxu0 0
  %3322 = vmatprep.subr.bf16.mxu0 0
  %3323 = vmatpush1.bf16.msra.mxu0 0
  %3324 = vmatprep.subr.bf16.mxu0 0
  %3325 = vmatpush1.bf16.msra.mxu0 0
  %3326 = vmatprep.subr.bf16.mxu0 0
  %3327 = vmatpush1.bf16.msra.mxu0 0
  %3328 = vmatprep.subr.bf16.mxu0 0
  %3329 = vmatpush1.bf16.msra.mxu0 0
  %3330 = vmatprep.subr.bf16.mxu0 0
  %3331 = vmatpush1.bf16.msra.mxu0 0
  %3332 = vmatprep.subr.bf16.mxu0 0
  %3333 = vmatpush1.bf16.msra.mxu0 0
  %3334 = vmatprep.subr.bf16.mxu0 0
  %3335 = vmatpush1.bf16.msra.mxu0 0
  %3336 = vmatprep.subr.bf16.mxu0 0
  %3337 = vmatpush1.bf16.msra.mxu0 0
  %3338 = vmatprep.subr.bf16.mxu0 0
  %3339 = vmatpush1.bf16.msra.mxu0 0
  %3340 = vmatprep.subr.bf16.mxu0 0
  %3341 = vmatpush1.bf16.msra.mxu0 0
  %3342 = vmatprep.subr.bf16.mxu0 0
  %3343 = vmatpush1.bf16.msra.mxu0 0
  %3344 = vmatprep.mubr.bf16.mxu0 0
  %3345 = vmatmul.mubr.bf16.gmra.mrb[0].mxu0 %v3310
  %v3346 = vpop.f32.mrb[0].mxu0
  %v3347 = vadd.f32 %v3308, %v3346
  %v3348 = vpop.f32.mrb[0].mxu0
  %v3349 = vpop.f32.mrb[0].mxu0
  %v3350 = vadd.f32 %v3308, %v3349
  %v3351 = vpop.f32.mrb[0].mxu0
  %3352 = vdwg.mxu0
  %3353 = vst [vmem:[%s3] sm:$0xff] %v3347
  %3354 = vst [vmem:[%s3 + $0x8] sm:$0xff] %v3350
  // Predicated region
  $region14: #{intentformer_forward.1} parent=0 // pred_check
    _
  $region15: #{intentformer_forward.1} parent=0 // pred_check_branch
    %3356 = sbr.rel (0) target = $region17
  $region16: #{intentformer_forward.1} parent=0 // pred_region
    _
  $region17: #{intentformer_forward.1} parent=0 // pred_fallthru
    _
  // Predicated region
  $region18: #{intentformer_forward.1} parent=0 // pred_check
    _
  $region19: #{intentformer_forward.1} parent=0 // pred_check_branch
    %3358 = sbr.rel (0) target = $region21
  $region20: #{intentformer_forward.1} parent=0 // pred_region
    _
  $region21: #{intentformer_forward.1} parent=0 // pred_fallthru
    _

</llo_original>
